<compile_context>
chip_gen: v6e
topology: v6e:2x2x1
jax: 0.10.0
libtpu: 0.0.40
codegen_flags: <defaults>
</compile_context>

<pallas_src>
import functools
import math

import jax
import jax.numpy as jnp
from jax.experimental import pallas as pl
from jax.experimental.pallas import tpu as pltpu

# ---------------- model config (small, consistent with the module) -------------
VOCAB = 100
VOCAB_PAD = 128        # vocab padded to a full 128-lane tile
MAX_POS = 32
HIDDEN = 32
NUM_HEADS = 4
HEAD_DIM = HIDDEN // NUM_HEADS
INTERMEDIATE = 64
NUM_LAYERS = 2
NUM_CLASS = 5
LN_EPS = 1e-12
PAD_CLS = 128          # lane-dense padded output width (NUM_CLASS sliced outside)


# ----------------------------- fused Pallas kernel ------------------------------
def _bert_ner_kernel(
    ids_ref, lens_ref, gidx_ref,                        # per-batch int32 inputs
    wemb_ref, pt_ref, elng_ref, elnb_ref,               # embeddings + emb LN
    wq_ref, wk_ref, wv_ref, bq_ref, bk_ref, bv_ref,     # head-split attn proj
    wo_ref, bo_ref, ln1g_ref, ln1b_ref,                 # attn out proj + LN1
    w1_ref, b1_ref, w2_ref, b2_ref, ln2g_ref, ln2b_ref, # FFN + LN2
    mlpw1_ref, mlpb1_ref, mlpw2_ref, mlpb2_ref,         # NER head (w2/b2 padded)
    o_ref,                                              # [1, W, PAD_CLS] block
    *, seq, width):
  S, W, H = seq, width, HIDDEN
  NH, HD = NUM_HEADS, HEAD_DIM
  f32 = jnp.float32

  def layer_norm(x, g, b):
    mean = jnp.mean(x, axis=-1, keepdims=True)
    xc = x - mean
    var = jnp.mean(xc * xc, axis=-1, keepdims=True)
    return (xc * jax.lax.rsqrt(var + LN_EPS)) * g + b

  # ---- embeddings: word lookup as a 128-lane-aligned one-hot matmul (MXU) ----
  ids = ids_ref[0]                                                  # [S, 1] i32
  vocab_iota = jax.lax.broadcasted_iota(jnp.int32, (S, VOCAB_PAD), 1)
  onehot = (vocab_iota == ids).astype(jnp.bfloat16)                 # [S, 128]
  h = jnp.dot(onehot, wemb_ref[...], preferred_element_type=f32)    # [S, H] f32
  h = h + pt_ref[0:S, :]                                            # + pos/type
  h = layer_norm(h, elng_ref[...], elnb_ref[...])

  # ---- additive key mask from input_len (seq_len_to_mask), f32 ----
  key_pos = jax.lax.broadcasted_iota(jnp.int32, (1, 1, S), 2)
  mask_bias = jnp.where(key_pos < lens_ref[...], f32(0.0), f32(-1e9))  # [1,1,S]

  scale = 1.0 / math.sqrt(HD)

  # ---- encoder layers: head-batched einsum attention, bf16 MXU operands ----
  for l in range(NUM_LAYERS):
    h_bf = h.astype(jnp.bfloat16)                                   # [S, H]
    hz = jnp.broadcast_to(h_bf[None], (NH, S, H))                   # [NH, S, H]
    q = jnp.einsum('zsk,zkd->zsd', hz, wq_ref[l],
                   preferred_element_type=f32) + bq_ref[l]          # [NH, S, HD]
    k = jnp.einsum('zsk,zkd->zsd', hz, wk_ref[l],
                   preferred_element_type=f32) + bk_ref[l]
    v = jnp.einsum('zsk,zkd->zsd', hz, wv_ref[l],
                   preferred_element_type=f32) + bv_ref[l]

    s = jnp.einsum('zqd,zkd->zqk', q.astype(jnp.bfloat16),
                   k.astype(jnp.bfloat16), preferred_element_type=f32)
    s = s * scale + mask_bias                                       # [NH, S, S]
    m = jnp.max(s, axis=-1, keepdims=True)
    p = jnp.exp(s - m)                                              # f32 softmax
    denom = jnp.sum(p, axis=-1, keepdims=True)
    p = p * pl.reciprocal(denom, approx=True)

    ctx = jnp.einsum('zqk,zkd->zqd', p.astype(jnp.bfloat16),
                     v.astype(jnp.bfloat16), preferred_element_type=f32)
    ao = jnp.einsum('zsd,zdo->zso', ctx.astype(jnp.bfloat16), wo_ref[l],
                    preferred_element_type=f32)                     # [NH, S, H]
    ao = jnp.sum(ao, axis=0) + bo_ref[l]                            # [S, H]
    h = layer_norm(h + ao, ln1g_ref[l], ln1b_ref[l])

    ff = jnp.dot(h.astype(jnp.bfloat16), w1_ref[l],
                 preferred_element_type=f32) + b1_ref[l]
    # TODO(synk): PyTorch BERT uses exact erf GELU; tanh approximation kept for robust TPU lowering.
    ff = jax.nn.gelu(ff, approximate=True)
    ff = jnp.dot(ff.astype(jnp.bfloat16), w2_ref[l],
                 preferred_element_type=f32) + b2_ref[l]
    h = layer_norm(h + ff, ln2g_ref[l], ln2b_ref[l])

  # ---- first-BPE gather (one-hot matmul over sequence positions) + MLP head ----
  gidx = gidx_ref[0]                                                # [W, 1] i32
  row_iota = jax.lax.broadcasted_iota(jnp.int32, (W, S), 1)
  gmat = (row_iota == gidx).astype(jnp.bfloat16)                    # [W, S]
  g = jnp.dot(gmat, h.astype(jnp.bfloat16), preferred_element_type=f32)

  x = jnp.dot(g.astype(jnp.bfloat16), mlpw1_ref[...],
              preferred_element_type=f32) + mlpb1_ref[...]
  # Dropout(0.3) is identity in inference-mode forward.
  # TODO(synk): training-mode dropout (random masking) not applied here.
  pred = jnp.dot(x.astype(jnp.bfloat16), mlpw2_ref[...],
                 preferred_element_type=f32) + mlpb2_ref[...]       # [W, PAD_CLS]
  o_ref[0] = pred


# ----------------------------- parameters (kernel-ready) ------------------------
def init_params(key):
  keys = jax.random.split(key, 12)
  it = iter(keys)

  def nrm(shape, scale=0.02):
    return (scale * jax.random.normal(next(it), shape)).astype(jnp.float32)

  zeros = lambda s: jnp.zeros(s, jnp.float32)
  ones = lambda s: jnp.ones(s, jnp.float32)
  L, H, I, NH, HD = NUM_LAYERS, HIDDEN, INTERMEDIATE, NUM_HEADS, HEAD_DIM

  word_emb = nrm((VOCAB, H))
  pos_emb = nrm((MAX_POS, H))
  type_emb = nrm((2, H))

  return {
      # vocab padded to 128 rows, bf16 MXU operand for the one-hot gather matmul
      "wemb": jnp.zeros((VOCAB_PAD, H), jnp.float32).at[:VOCAB].set(
          word_emb).astype(jnp.bfloat16),
      # pos + token-type(0) table precomputed once (kernel slices first S rows)
      "pt": pos_emb + type_emb[0:1],
      "emb_ln_g": ones((1, H)), "emb_ln_b": zeros((1, H)),
      # attention projections stored head-split (bf16 MXU operands)
      "wq": nrm((L, NH, H, HD)).astype(jnp.bfloat16),
      "wk": nrm((L, NH, H, HD)).astype(jnp.bfloat16),
      "wv": nrm((L, NH, H, HD)).astype(jnp.bfloat16),
      "bq": zeros((L, NH, 1, HD)),
      "bk": zeros((L, NH, 1, HD)),
      "bv": zeros((L, NH, 1, HD)),
      "wo": nrm((L, NH, HD, H)).astype(jnp.bfloat16), "bo": zeros((L, 1, H)),
      "ln1_g": ones((L, 1, H)), "ln1_b": zeros((L, 1, H)),
      "w1": nrm((L, H, I)).astype(jnp.bfloat16), "b1": zeros((L, 1, I)),
      "w2": nrm((L, I, H)).astype(jnp.bfloat16), "b2": zeros((L, 1, H)),
      "ln2_g": ones((L, 1, H)), "ln2_b": zeros((L, 1, H)),
      "mlp_w1": nrm((H, H)).astype(jnp.bfloat16), "mlp_b1": zeros((1, H)),
      # final projection pre-padded once to a lane-dense 128-wide slab
      "mlp_w2": jnp.zeros((H, PAD_CLS), jnp.float32).at[:, :NUM_CLASS].set(
          nrm((H, NUM_CLASS))).astype(jnp.bfloat16),
      "mlp_b2": zeros((1, PAD_CLS)),
  }


# ----------------------------- forward pass -------------------------------------
def bert_ner_forward(params, input_ids, input_len, first):
  B, S = input_ids.shape
  W = S - 2

  # tiny per-call integer/layout glue
  ids = input_ids.reshape(B, S, 1).astype(jnp.int32)
  lens = input_len.reshape(B, 1, 1).astype(jnp.int32)
  gidx = first[:, 1:S - 1].astype(jnp.int32).reshape(B, W, 1)

  weight_args = [
      params["wemb"], params["pt"], params["emb_ln_g"], params["emb_ln_b"],
      params["wq"], params["wk"], params["wv"],
      params["bq"], params["bk"], params["bv"],
      params["wo"], params["bo"], params["ln1_g"], params["ln1_b"],
      params["w1"], params["b1"], params["w2"], params["b2"],
      params["ln2_g"], params["ln2_b"],
      params["mlp_w1"], params["mlp_b1"], params["mlp_w2"], params["mlp_b2"],
  ]

  def _full(shape):
    nd = len(shape)
    return pl.BlockSpec(shape, lambda b, _nd=nd: (0,) * _nd)

  in_specs = ([
      pl.BlockSpec((1, S, 1), lambda b: (b, 0, 0)),      # input_ids (per batch)
      pl.BlockSpec((1, 1, 1), lambda b: (b, 0, 0)),      # input_len (per batch)
      pl.BlockSpec((1, W, 1), lambda b: (b, 0, 0)),      # first-BPE ids
  ] + [_full(w.shape) for w in weight_args])              # weights: one block

  flops = B * (
      2 * S * VOCAB_PAD * HIDDEN
      + NUM_LAYERS * (3 * 2 * S * HIDDEN * HIDDEN
                      + 2 * 2 * NUM_HEADS * S * S * HEAD_DIM
                      + 2 * S * HIDDEN * HIDDEN
                      + 2 * 2 * S * HIDDEN * INTERMEDIATE)
      + 2 * W * S * HIDDEN + 2 * W * HIDDEN * HIDDEN + 2 * W * HIDDEN * PAD_CLS)
  transcendentals = B * NUM_LAYERS * (NUM_HEADS * S * S + S * INTERMEDIATE)
  bytes_accessed = int(
      sum(math.prod(a.shape) * a.dtype.itemsize
          for a in [ids, lens, gidx] + weight_args) + B * W * PAD_CLS * 4)

  out = pl.pallas_call(
      functools.partial(_bert_ner_kernel, seq=S, width=W),
      out_shape=jax.ShapeDtypeStruct((B, W, PAD_CLS), jnp.float32),
      grid=(B,),
      in_specs=in_specs,
      out_specs=pl.BlockSpec((1, W, PAD_CLS), lambda b: (b, 0, 0)),
      compiler_params=pltpu.CompilerParams(
          dimension_semantics=("parallel",)),          # 2x on v7x (2 TCs/chip)
      cost_estimate=pl.CostEstimate(flops=flops,
                                    transcendentals=transcendentals,
                                    bytes_accessed=bytes_accessed),
  )(ids, lens, gidx, *weight_args)

  return {"pred": out[..., :NUM_CLASS]}


# ----------------------------------- main ---------------------------------------
if __name__ == "__main__":
  key = jax.random.PRNGKey(0)
  kp, kids, kfirst = jax.random.split(key, 3)

  B, S = 2, 8
  params = init_params(kp)

  input_ids = jax.random.randint(kids, (B, S), 0, VOCAB, dtype=jnp.int32)
  input_len = jnp.array([8, 5], dtype=jnp.int32)
  first = jax.random.randint(kfirst, (B, S), 0, S, dtype=jnp.int32)

  fwd = jax.jit(bert_ner_forward)
  out = fwd(params, input_ids, input_len, first)
  pred = jax.block_until_ready(out["pred"])

  assert pred.shape == (B, S - 2, NUM_CLASS), pred.shape
  assert jnp.all(jnp.isfinite(pred))
  print("KERNEL_OK")
</pallas_src>

<mosaic_0001>
module attributes {stable_mosaic.version = 11 : i64} {
  func.func @_bert_ner_kernel(%arg0: i32, %arg1: memref<1x8x1xi32, #tpu.memory_space<vmem>>, %arg2: memref<1x1x1xi32, #tpu.memory_space<vmem>>, %arg3: memref<1x6x1xi32, #tpu.memory_space<vmem>>, %arg4: memref<128x32xbf16, #tpu.memory_space<vmem>>, %arg5: memref<32x32xf32, #tpu.memory_space<vmem>>, %arg6: memref<1x32xf32, #tpu.memory_space<vmem>>, %arg7: memref<1x32xf32, #tpu.memory_space<vmem>>, %arg8: memref<2x4x32x8xbf16, #tpu.memory_space<vmem>>, %arg9: memref<2x4x32x8xbf16, #tpu.memory_space<vmem>>, %arg10: memref<2x4x32x8xbf16, #tpu.memory_space<vmem>>, %arg11: memref<2x4x1x8xf32, #tpu.memory_space<vmem>>, %arg12: memref<2x4x1x8xf32, #tpu.memory_space<vmem>>, %arg13: memref<2x4x1x8xf32, #tpu.memory_space<vmem>>, %arg14: memref<2x4x8x32xbf16, #tpu.memory_space<vmem>>, %arg15: memref<2x1x32xf32, #tpu.memory_space<vmem>>, %arg16: memref<2x1x32xf32, #tpu.memory_space<vmem>>, %arg17: memref<2x1x32xf32, #tpu.memory_space<vmem>>, %arg18: memref<2x32x64xbf16, #tpu.memory_space<vmem>>, %arg19: memref<2x1x64xf32, #tpu.memory_space<vmem>>, %arg20: memref<2x64x32xbf16, #tpu.memory_space<vmem>>, %arg21: memref<2x1x32xf32, #tpu.memory_space<vmem>>, %arg22: memref<2x1x32xf32, #tpu.memory_space<vmem>>, %arg23: memref<2x1x32xf32, #tpu.memory_space<vmem>>, %arg24: memref<32x32xbf16, #tpu.memory_space<vmem>>, %arg25: memref<1x32xf32, #tpu.memory_space<vmem>>, %arg26: memref<32x128xbf16, #tpu.memory_space<vmem>>, %arg27: memref<1x128xf32, #tpu.memory_space<vmem>>, %arg28: memref<1x6x128xf32, #tpu.memory_space<vmem>>) attributes {dimension_semantics = [#tpu.dimension_semantics<parallel>], iteration_bounds = array<i64: 2>, scalar_prefetch = 0 : i64, scratch_operands = 0 : i64, tpu.core_type = #tpu.core_type<tc>, window_params = [{transform_indices = @transform_0, window_bounds = array<i64: 1, 8, 1>}, {transform_indices = @transform_1, window_bounds = array<i64: 1, 1, 1>}, {transform_indices = @transform_2, window_bounds = array<i64: 1, 6, 1>}, {pipeline_mode = #tpu.pipeline_mode<synchronous>, transform_indices = @transform_3, window_bounds = array<i64: 128, 32>}, {pipeline_mode = #tpu.pipeline_mode<synchronous>, transform_indices = @transform_4, window_bounds = array<i64: 32, 32>}, {pipeline_mode = #tpu.pipeline_mode<synchronous>, transform_indices = @transform_5, window_bounds = array<i64: 1, 32>}, {pipeline_mode = #tpu.pipeline_mode<synchronous>, transform_indices = @transform_6, window_bounds = array<i64: 1, 32>}, {pipeline_mode = #tpu.pipeline_mode<synchronous>, transform_indices = @transform_7, window_bounds = array<i64: 2, 4, 32, 8>}, {pipeline_mode = #tpu.pipeline_mode<synchronous>, transform_indices = @transform_8, window_bounds = array<i64: 2, 4, 32, 8>}, {pipeline_mode = #tpu.pipeline_mode<synchronous>, transform_indices = @transform_9, window_bounds = array<i64: 2, 4, 32, 8>}, {pipeline_mode = #tpu.pipeline_mode<synchronous>, transform_indices = @transform_10, window_bounds = array<i64: 2, 4, 1, 8>}, {pipeline_mode = #tpu.pipeline_mode<synchronous>, transform_indices = @transform_11, window_bounds = array<i64: 2, 4, 1, 8>}, {pipeline_mode = #tpu.pipeline_mode<synchronous>, transform_indices = @transform_12, window_bounds = array<i64: 2, 4, 1, 8>}, {pipeline_mode = #tpu.pipeline_mode<synchronous>, transform_indices = @transform_13, window_bounds = array<i64: 2, 4, 8, 32>}, {pipeline_mode = #tpu.pipeline_mode<synchronous>, transform_indices = @transform_14, window_bounds = array<i64: 2, 1, 32>}, {pipeline_mode = #tpu.pipeline_mode<synchronous>, transform_indices = @transform_15, window_bounds = array<i64: 2, 1, 32>}, {pipeline_mode = #tpu.pipeline_mode<synchronous>, transform_indices = @transform_16, window_bounds = array<i64: 2, 1, 32>}, {pipeline_mode = #tpu.pipeline_mode<synchronous>, transform_indices = @transform_17, window_bounds = array<i64: 2, 32, 64>}, {pipeline_mode = #tpu.pipeline_mode<synchronous>, transform_indices = @transform_18, window_bounds = array<i64: 2, 1, 64>}, {pipeline_mode = #tpu.pipeline_mode<synchronous>, transform_indices = @transform_19, window_bounds = array<i64: 2, 64, 32>}, {pipeline_mode = #tpu.pipeline_mode<synchronous>, transform_indices = @transform_20, window_bounds = array<i64: 2, 1, 32>}, {pipeline_mode = #tpu.pipeline_mode<synchronous>, transform_indices = @transform_21, window_bounds = array<i64: 2, 1, 32>}, {pipeline_mode = #tpu.pipeline_mode<synchronous>, transform_indices = @transform_22, window_bounds = array<i64: 2, 1, 32>}, {pipeline_mode = #tpu.pipeline_mode<synchronous>, transform_indices = @transform_23, window_bounds = array<i64: 32, 32>}, {pipeline_mode = #tpu.pipeline_mode<synchronous>, transform_indices = @transform_24, window_bounds = array<i64: 1, 32>}, {pipeline_mode = #tpu.pipeline_mode<synchronous>, transform_indices = @transform_25, window_bounds = array<i64: 32, 128>}, {pipeline_mode = #tpu.pipeline_mode<synchronous>, transform_indices = @transform_26, window_bounds = array<i64: 1, 128>}, {transform_indices = @transform_27, window_bounds = array<i64: 1, 6, 128>}]} {
    %c0 = arith.constant 0 : index
    %c0_0 = arith.constant 0 : index
    %c0_1 = arith.constant 0 : index
    %0 = vector.load %arg1[%c0, %c0_0, %c0_1] : memref<1x8x1xi32, #tpu.memory_space<vmem>>, vector<1x8x1xi32>
    %1 = vector.shape_cast %0 : vector<1x8x1xi32> to vector<8x1xi32>
    %2 = tpu.iota {dimensions = array<i32: 1>} : vector<8x128xi32>
    %3 = vector.broadcast %1 : vector<8x1xi32> to vector<8x128xi32>
    %4 = arith.cmpi eq, %2, %3 : vector<8x128xi32>
    %5 = arith.extui %4 : vector<8x128xi1> to vector<8x128xi32>
    %6 = arith.sitofp %5 : vector<8x128xi32> to vector<8x128xf32>
    %7 = arith.truncf %6 : vector<8x128xf32> to vector<8x128xbf16>
    %c0_2 = arith.constant 0 : index
    %c0_3 = arith.constant 0 : index
    %8 = vector.load %arg4[%c0_2, %c0_3] : memref<128x32xbf16, #tpu.memory_space<vmem>>, vector<128x32xbf16>
    %cst = arith.constant dense<0.000000e+00> : vector<8x32xf32>
    %9 = tpu.matmul %7, %8, %cst {dimension_numbers = #tpu.dot_dimension_numbers<[1], [0], [0], [1], [0, 0, 1, 1], [], []>} : vector<8x128xbf16>, vector<128x32xbf16>, vector<8x32xf32> -> vector<8x32xf32>
    %c0_4 = arith.constant 0 : index
    %c0_5 = arith.constant 0 : index
    %10 = vector.load %arg5[%c0_4, %c0_5] : memref<32x32xf32, #tpu.memory_space<vmem>>, vector<8x32xf32>
    %11 = arith.addf %9, %10 : vector<8x32xf32>
    %c0_6 = arith.constant 0 : index
    %c0_7 = arith.constant 0 : index
    %12 = vector.load %arg6[%c0_6, %c0_7] : memref<1x32xf32, #tpu.memory_space<vmem>>, vector<1x32xf32>
    %c0_8 = arith.constant 0 : index
    %c0_9 = arith.constant 0 : index
    %13 = vector.load %arg7[%c0_8, %c0_9] : memref<1x32xf32, #tpu.memory_space<vmem>>, vector<1x32xf32>
    %cst_10 = arith.constant dense<0.000000e+00> : vector<8xf32>
    %14 = vector.multi_reduction <add>, %11, %cst_10 [1] : vector<8x32xf32> to vector<8xf32>
    %15 = vector.shape_cast %14 : vector<8xf32> to vector<8x1xf32>
    %cst_11 = arith.constant 3.200000e+01 : f32
    %16 = vector.broadcast %cst_11 : f32 to vector<8x1xf32>
    %17 = arith.divf %15, %16 : vector<8x1xf32>
    %18 = vector.broadcast %17 : vector<8x1xf32> to vector<8x32xf32>
    %19 = arith.subf %11, %18 : vector<8x32xf32>
    %20 = arith.mulf %19, %19 : vector<8x32xf32>
    %cst_12 = arith.constant dense<0.000000e+00> : vector<8xf32>
    %21 = vector.multi_reduction <add>, %20, %cst_12 [1] : vector<8x32xf32> to vector<8xf32>
    %22 = vector.shape_cast %21 : vector<8xf32> to vector<8x1xf32>
    %cst_13 = arith.constant 3.200000e+01 : f32
    %23 = vector.broadcast %cst_13 : f32 to vector<8x1xf32>
    %24 = arith.divf %22, %23 : vector<8x1xf32>
    %cst_14 = arith.constant 9.99999996E-13 : f32
    %25 = vector.broadcast %cst_14 : f32 to vector<8x1xf32>
    %26 = arith.addf %24, %25 : vector<8x1xf32>
    %27 = math.rsqrt %26 : vector<8x1xf32>
    %28 = vector.broadcast %27 : vector<8x1xf32> to vector<8x32xf32>
    %29 = arith.mulf %19, %28 : vector<8x32xf32>
    %30 = vector.broadcast %12 : vector<1x32xf32> to vector<8x32xf32>
    %31 = arith.mulf %29, %30 : vector<8x32xf32>
    %32 = vector.broadcast %13 : vector<1x32xf32> to vector<8x32xf32>
    %33 = arith.addf %31, %32 : vector<8x32xf32>
    %34 = tpu.iota {dimensions = array<i32: 2>} : vector<1x1x8xi32>
    %c0_15 = arith.constant 0 : index
    %c0_16 = arith.constant 0 : index
    %c0_17 = arith.constant 0 : index
    %35 = vector.load %arg2[%c0_15, %c0_16, %c0_17] : memref<1x1x1xi32, #tpu.memory_space<vmem>>, vector<1x1x1xi32>
    %36 = vector.broadcast %35 : vector<1x1x1xi32> to vector<1x1x8xi32>
    %37 = arith.cmpi slt, %34, %36 : vector<1x1x8xi32>
    %cst_18 = arith.constant 0.000000e+00 : f32
    %cst_19 = arith.constant -1.000000e+09 : f32
    %38 = vector.broadcast %cst_18 : f32 to vector<1x1x8xf32>
    %39 = vector.broadcast %cst_19 : f32 to vector<1x1x8xf32>
    %40 = arith.select %37, %38, %39 : vector<1x1x8xi1>, vector<1x1x8xf32>
    %41 = arith.truncf %33 : vector<8x32xf32> to vector<8x32xbf16>
    %42 = vector.shape_cast %41 : vector<8x32xbf16> to vector<1x8x32xbf16>
    %43 = vector.shape_cast %42 : vector<1x8x32xbf16> to vector<1x8x32xbf16>
    %44 = vector.broadcast %43 : vector<1x8x32xbf16> to vector<4x8x32xbf16>
    %c0_20 = arith.constant 0 : index
    %c0_21 = arith.constant 0 : index
    %c0_22 = arith.constant 0 : index
    %c0_23 = arith.constant 0 : index
    %45 = vector.load %arg8[%c0_20, %c0_21, %c0_22, %c0_23] : memref<2x4x32x8xbf16, #tpu.memory_space<vmem>>, vector<1x4x32x8xbf16>
    %46 = vector.shape_cast %45 : vector<1x4x32x8xbf16> to vector<4x32x8xbf16>
    "tpu.trace_start"() <{level = 10 : i32, message = "zsk,zkd->zsd"}> : () -> ()
    %cst_24 = arith.constant dense<0.000000e+00> : vector<4x8x8xf32>
    %47 = tpu.matmul %44, %46, %cst_24 {dimension_numbers = #tpu.dot_dimension_numbers<[2], [1], [1], [2], [0, 0, 0, 1, 1, 2], [0], [0]>} : vector<4x8x32xbf16>, vector<4x32x8xbf16>, vector<4x8x8xf32> -> vector<4x8x8xf32>
    "tpu.trace_stop"() : () -> ()
    %c0_25 = arith.constant 0 : index
    %c0_26 = arith.constant 0 : index
    %c0_27 = arith.constant 0 : index
    %c0_28 = arith.constant 0 : index
    %48 = vector.load %arg11[%c0_25, %c0_26, %c0_27, %c0_28] : memref<2x4x1x8xf32, #tpu.memory_space<vmem>>, vector<1x4x1x8xf32>
    %49 = vector.shape_cast %48 : vector<1x4x1x8xf32> to vector<4x1x8xf32>
    %50 = vector.broadcast %49 : vector<4x1x8xf32> to vector<4x8x8xf32>
    %51 = arith.addf %47, %50 : vector<4x8x8xf32>
    %c0_29 = arith.constant 0 : index
    %c0_30 = arith.constant 0 : index
    %c0_31 = arith.constant 0 : index
    %c0_32 = arith.constant 0 : index
    %52 = vector.load %arg9[%c0_29, %c0_30, %c0_31, %c0_32] : memref<2x4x32x8xbf16, #tpu.memory_space<vmem>>, vector<1x4x32x8xbf16>
    %53 = vector.shape_cast %52 : vector<1x4x32x8xbf16> to vector<4x32x8xbf16>
    "tpu.trace_start"() <{level = 10 : i32, message = "zsk,zkd->zsd"}> : () -> ()
    %cst_33 = arith.constant dense<0.000000e+00> : vector<4x8x8xf32>
    %54 = tpu.matmul %44, %53, %cst_33 {dimension_numbers = #tpu.dot_dimension_numbers<[2], [1], [1], [2], [0, 0, 0, 1, 1, 2], [0], [0]>} : vector<4x8x32xbf16>, vector<4x32x8xbf16>, vector<4x8x8xf32> -> vector<4x8x8xf32>
    "tpu.trace_stop"() : () -> ()
    %c0_34 = arith.constant 0 : index
    %c0_35 = arith.constant 0 : index
    %c0_36 = arith.constant 0 : index
    %c0_37 = arith.constant 0 : index
    %55 = vector.load %arg12[%c0_34, %c0_35, %c0_36, %c0_37] : memref<2x4x1x8xf32, #tpu.memory_space<vmem>>, vector<1x4x1x8xf32>
    %56 = vector.shape_cast %55 : vector<1x4x1x8xf32> to vector<4x1x8xf32>
    %57 = vector.broadcast %56 : vector<4x1x8xf32> to vector<4x8x8xf32>
    %58 = arith.addf %54, %57 : vector<4x8x8xf32>
    %c0_38 = arith.constant 0 : index
    %c0_39 = arith.constant 0 : index
    %c0_40 = arith.constant 0 : index
    %c0_41 = arith.constant 0 : index
    %59 = vector.load %arg10[%c0_38, %c0_39, %c0_40, %c0_41] : memref<2x4x32x8xbf16, #tpu.memory_space<vmem>>, vector<1x4x32x8xbf16>
    %60 = vector.shape_cast %59 : vector<1x4x32x8xbf16> to vector<4x32x8xbf16>
    "tpu.trace_start"() <{level = 10 : i32, message = "zsk,zkd->zsd"}> : () -> ()
    %cst_42 = arith.constant dense<0.000000e+00> : vector<4x8x8xf32>
    %61 = tpu.matmul %44, %60, %cst_42 {dimension_numbers = #tpu.dot_dimension_numbers<[2], [1], [1], [2], [0, 0, 0, 1, 1, 2], [0], [0]>} : vector<4x8x32xbf16>, vector<4x32x8xbf16>, vector<4x8x8xf32> -> vector<4x8x8xf32>
    "tpu.trace_stop"() : () -> ()
    %c0_43 = arith.constant 0 : index
    %c0_44 = arith.constant 0 : index
    %c0_45 = arith.constant 0 : index
    %c0_46 = arith.constant 0 : index
    %62 = vector.load %arg13[%c0_43, %c0_44, %c0_45, %c0_46] : memref<2x4x1x8xf32, #tpu.memory_space<vmem>>, vector<1x4x1x8xf32>
    %63 = vector.shape_cast %62 : vector<1x4x1x8xf32> to vector<4x1x8xf32>
    %64 = vector.broadcast %63 : vector<4x1x8xf32> to vector<4x8x8xf32>
    %65 = arith.addf %61, %64 : vector<4x8x8xf32>
    %66 = arith.truncf %51 : vector<4x8x8xf32> to vector<4x8x8xbf16>
    %67 = arith.truncf %58 : vector<4x8x8xf32> to vector<4x8x8xbf16>
    "tpu.trace_start"() <{level = 10 : i32, message = "zqd,zkd->zqk"}> : () -> ()
    %cst_47 = arith.constant dense<0.000000e+00> : vector<4x8x8xf32>
    %68 = tpu.matmul %66, %67, %cst_47 {dimension_numbers = #tpu.dot_dimension_numbers<[2], [2], [1], [1], [0, 0, 0, 1, 1, 1], [0], [0]>} : vector<4x8x8xbf16>, vector<4x8x8xbf16>, vector<4x8x8xf32> -> vector<4x8x8xf32>
    "tpu.trace_stop"() : () -> ()
    %cst_48 = arith.constant 0.353553385 : f32
    %69 = vector.broadcast %cst_48 : f32 to vector<4x8x8xf32>
    %70 = arith.mulf %68, %69 : vector<4x8x8xf32>
    %71 = vector.broadcast %40 : vector<1x1x8xf32> to vector<4x8x8xf32>
    %72 = arith.addf %70, %71 : vector<4x8x8xf32>
    %cst_49 = arith.constant dense<0xFF800000> : vector<4x8xf32>
    %73 = vector.multi_reduction <maximumf>, %72, %cst_49 [2] : vector<4x8x8xf32> to vector<4x8xf32>
    %74 = vector.shape_cast %73 : vector<4x8xf32> to vector<4x8x1xf32>
    %75 = vector.broadcast %74 : vector<4x8x1xf32> to vector<4x8x8xf32>
    %76 = arith.subf %72, %75 : vector<4x8x8xf32>
    %77 = math.exp %76 : vector<4x8x8xf32>
    %cst_50 = arith.constant dense<0.000000e+00> : vector<4x8xf32>
    %78 = vector.multi_reduction <add>, %77, %cst_50 [2] : vector<4x8x8xf32> to vector<4x8xf32>
    %79 = vector.shape_cast %78 : vector<4x8xf32> to vector<4x8x1xf32>
    %80 = tpu.reciprocal %79 {approx = true} : vector<4x8x1xf32> -> vector<4x8x1xf32>
    %81 = vector.broadcast %80 : vector<4x8x1xf32> to vector<4x8x8xf32>
    %82 = arith.mulf %77, %81 : vector<4x8x8xf32>
    %83 = arith.truncf %82 : vector<4x8x8xf32> to vector<4x8x8xbf16>
    %84 = arith.truncf %65 : vector<4x8x8xf32> to vector<4x8x8xbf16>
    "tpu.trace_start"() <{level = 10 : i32, message = "zqk,zkd->zqd"}> : () -> ()
    %cst_51 = arith.constant dense<0.000000e+00> : vector<4x8x8xf32>
    %85 = tpu.matmul %83, %84, %cst_51 {dimension_numbers = #tpu.dot_dimension_numbers<[2], [1], [1], [2], [0, 0, 0, 1, 1, 2], [0], [0]>} : vector<4x8x8xbf16>, vector<4x8x8xbf16>, vector<4x8x8xf32> -> vector<4x8x8xf32>
    "tpu.trace_stop"() : () -> ()
    %86 = arith.truncf %85 : vector<4x8x8xf32> to vector<4x8x8xbf16>
    %c0_52 = arith.constant 0 : index
    %c0_53 = arith.constant 0 : index
    %c0_54 = arith.constant 0 : index
    %c0_55 = arith.constant 0 : index
    %87 = vector.load %arg14[%c0_52, %c0_53, %c0_54, %c0_55] : memref<2x4x8x32xbf16, #tpu.memory_space<vmem>>, vector<1x4x8x32xbf16>
    %88 = vector.shape_cast %87 : vector<1x4x8x32xbf16> to vector<4x8x32xbf16>
    "tpu.trace_start"() <{level = 10 : i32, message = "zsd,zdo->zso"}> : () -> ()
    %cst_56 = arith.constant dense<0.000000e+00> : vector<4x8x32xf32>
    %89 = tpu.matmul %86, %88, %cst_56 {dimension_numbers = #tpu.dot_dimension_numbers<[2], [1], [1], [2], [0, 0, 0, 1, 1, 2], [0], [0]>} : vector<4x8x8xbf16>, vector<4x8x32xbf16>, vector<4x8x32xf32> -> vector<4x8x32xf32>
    "tpu.trace_stop"() : () -> ()
    %cst_57 = arith.constant dense<0.000000e+00> : vector<8x32xf32>
    %90 = vector.multi_reduction <add>, %89, %cst_57 [0] : vector<4x8x32xf32> to vector<8x32xf32>
    %c0_58 = arith.constant 0 : index
    %c0_59 = arith.constant 0 : index
    %c0_60 = arith.constant 0 : index
    %91 = vector.load %arg15[%c0_58, %c0_59, %c0_60] : memref<2x1x32xf32, #tpu.memory_space<vmem>>, vector<1x1x32xf32>
    %92 = vector.shape_cast %91 : vector<1x1x32xf32> to vector<1x32xf32>
    %93 = vector.broadcast %92 : vector<1x32xf32> to vector<8x32xf32>
    %94 = arith.addf %90, %93 : vector<8x32xf32>
    %95 = arith.addf %33, %94 : vector<8x32xf32>
    %c0_61 = arith.constant 0 : index
    %c0_62 = arith.constant 0 : index
    %c0_63 = arith.constant 0 : index
    %96 = vector.load %arg16[%c0_61, %c0_62, %c0_63] : memref<2x1x32xf32, #tpu.memory_space<vmem>>, vector<1x1x32xf32>
    %97 = vector.shape_cast %96 : vector<1x1x32xf32> to vector<1x32xf32>
    %c0_64 = arith.constant 0 : index
    %c0_65 = arith.constant 0 : index
    %c0_66 = arith.constant 0 : index
    %98 = vector.load %arg17[%c0_64, %c0_65, %c0_66] : memref<2x1x32xf32, #tpu.memory_space<vmem>>, vector<1x1x32xf32>
    %99 = vector.shape_cast %98 : vector<1x1x32xf32> to vector<1x32xf32>
    %cst_67 = arith.constant dense<0.000000e+00> : vector<8xf32>
    %100 = vector.multi_reduction <add>, %95, %cst_67 [1] : vector<8x32xf32> to vector<8xf32>
    %101 = vector.shape_cast %100 : vector<8xf32> to vector<8x1xf32>
    %cst_68 = arith.constant 3.200000e+01 : f32
    %102 = vector.broadcast %cst_68 : f32 to vector<8x1xf32>
    %103 = arith.divf %101, %102 : vector<8x1xf32>
    %104 = vector.broadcast %103 : vector<8x1xf32> to vector<8x32xf32>
    %105 = arith.subf %95, %104 : vector<8x32xf32>
    %106 = arith.mulf %105, %105 : vector<8x32xf32>
    %cst_69 = arith.constant dense<0.000000e+00> : vector<8xf32>
    %107 = vector.multi_reduction <add>, %106, %cst_69 [1] : vector<8x32xf32> to vector<8xf32>
    %108 = vector.shape_cast %107 : vector<8xf32> to vector<8x1xf32>
    %cst_70 = arith.constant 3.200000e+01 : f32
    %109 = vector.broadcast %cst_70 : f32 to vector<8x1xf32>
    %110 = arith.divf %108, %109 : vector<8x1xf32>
    %cst_71 = arith.constant 9.99999996E-13 : f32
    %111 = vector.broadcast %cst_71 : f32 to vector<8x1xf32>
    %112 = arith.addf %110, %111 : vector<8x1xf32>
    %113 = math.rsqrt %112 : vector<8x1xf32>
    %114 = vector.broadcast %113 : vector<8x1xf32> to vector<8x32xf32>
    %115 = arith.mulf %105, %114 : vector<8x32xf32>
    %116 = vector.broadcast %97 : vector<1x32xf32> to vector<8x32xf32>
    %117 = arith.mulf %115, %116 : vector<8x32xf32>
    %118 = vector.broadcast %99 : vector<1x32xf32> to vector<8x32xf32>
    %119 = arith.addf %117, %118 : vector<8x32xf32>
    %120 = arith.truncf %119 : vector<8x32xf32> to vector<8x32xbf16>
    %c0_72 = arith.constant 0 : index
    %c0_73 = arith.constant 0 : index
    %c0_74 = arith.constant 0 : index
    %121 = vector.load %arg18[%c0_72, %c0_73, %c0_74] : memref<2x32x64xbf16, #tpu.memory_space<vmem>>, vector<1x32x64xbf16>
    %122 = vector.shape_cast %121 : vector<1x32x64xbf16> to vector<32x64xbf16>
    %cst_75 = arith.constant dense<0.000000e+00> : vector<8x64xf32>
    %123 = tpu.matmul %120, %122, %cst_75 {dimension_numbers = #tpu.dot_dimension_numbers<[1], [0], [0], [1], [0, 0, 1, 1], [], []>} : vector<8x32xbf16>, vector<32x64xbf16>, vector<8x64xf32> -> vector<8x64xf32>
    %c0_76 = arith.constant 0 : index
    %c0_77 = arith.constant 0 : index
    %c0_78 = arith.constant 0 : index
    %124 = vector.load %arg19[%c0_76, %c0_77, %c0_78] : memref<2x1x64xf32, #tpu.memory_space<vmem>>, vector<1x1x64xf32>
    %125 = vector.shape_cast %124 : vector<1x1x64xf32> to vector<1x64xf32>
    %126 = vector.broadcast %125 : vector<1x64xf32> to vector<8x64xf32>
    %127 = arith.addf %123, %126 : vector<8x64xf32>
    %128 = arith.mulf %127, %127 : vector<8x64xf32>
    %129 = arith.mulf %127, %128 : vector<8x64xf32>
    %cst_79 = arith.constant 4.471500e-02 : f32
    %130 = vector.broadcast %cst_79 : f32 to vector<8x64xf32>
    %131 = arith.mulf %130, %129 : vector<8x64xf32>
    %132 = arith.addf %127, %131 : vector<8x64xf32>
    %cst_80 = arith.constant 0.797884583 : f32
    %133 = vector.broadcast %cst_80 : f32 to vector<8x64xf32>
    %134 = arith.mulf %133, %132 : vector<8x64xf32>
    %135 = math.tanh %134 : vector<8x64xf32>
    %cst_81 = arith.constant 1.000000e+00 : f32
    %136 = vector.broadcast %cst_81 : f32 to vector<8x64xf32>
    %137 = arith.addf %136, %135 : vector<8x64xf32>
    %cst_82 = arith.constant 5.000000e-01 : f32
    %138 = vector.broadcast %cst_82 : f32 to vector<8x64xf32>
    %139 = arith.mulf %138, %137 : vector<8x64xf32>
    %140 = arith.mulf %127, %139 : vector<8x64xf32>
    %141 = arith.truncf %140 : vector<8x64xf32> to vector<8x64xbf16>
    %c0_83 = arith.constant 0 : index
    %c0_84 = arith.constant 0 : index
    %c0_85 = arith.constant 0 : index
    %142 = vector.load %arg20[%c0_83, %c0_84, %c0_85] : memref<2x64x32xbf16, #tpu.memory_space<vmem>>, vector<1x64x32xbf16>
    %143 = vector.shape_cast %142 : vector<1x64x32xbf16> to vector<64x32xbf16>
    %cst_86 = arith.constant dense<0.000000e+00> : vector<8x32xf32>
    %144 = tpu.matmul %141, %143, %cst_86 {dimension_numbers = #tpu.dot_dimension_numbers<[1], [0], [0], [1], [0, 0, 1, 1], [], []>} : vector<8x64xbf16>, vector<64x32xbf16>, vector<8x32xf32> -> vector<8x32xf32>
    %c0_87 = arith.constant 0 : index
    %c0_88 = arith.constant 0 : index
    %c0_89 = arith.constant 0 : index
    %145 = vector.load %arg21[%c0_87, %c0_88, %c0_89] : memref<2x1x32xf32, #tpu.memory_space<vmem>>, vector<1x1x32xf32>
    %146 = vector.shape_cast %145 : vector<1x1x32xf32> to vector<1x32xf32>
    %147 = vector.broadcast %146 : vector<1x32xf32> to vector<8x32xf32>
    %148 = arith.addf %144, %147 : vector<8x32xf32>
    %149 = arith.addf %119, %148 : vector<8x32xf32>
    %c0_90 = arith.constant 0 : index
    %c0_91 = arith.constant 0 : index
    %c0_92 = arith.constant 0 : index
    %150 = vector.load %arg22[%c0_90, %c0_91, %c0_92] : memref<2x1x32xf32, #tpu.memory_space<vmem>>, vector<1x1x32xf32>
    %151 = vector.shape_cast %150 : vector<1x1x32xf32> to vector<1x32xf32>
    %c0_93 = arith.constant 0 : index
    %c0_94 = arith.constant 0 : index
    %c0_95 = arith.constant 0 : index
    %152 = vector.load %arg23[%c0_93, %c0_94, %c0_95] : memref<2x1x32xf32, #tpu.memory_space<vmem>>, vector<1x1x32xf32>
    %153 = vector.shape_cast %152 : vector<1x1x32xf32> to vector<1x32xf32>
    %cst_96 = arith.constant dense<0.000000e+00> : vector<8xf32>
    %154 = vector.multi_reduction <add>, %149, %cst_96 [1] : vector<8x32xf32> to vector<8xf32>
    %155 = vector.shape_cast %154 : vector<8xf32> to vector<8x1xf32>
    %cst_97 = arith.constant 3.200000e+01 : f32
    %156 = vector.broadcast %cst_97 : f32 to vector<8x1xf32>
    %157 = arith.divf %155, %156 : vector<8x1xf32>
    %158 = vector.broadcast %157 : vector<8x1xf32> to vector<8x32xf32>
    %159 = arith.subf %149, %158 : vector<8x32xf32>
    %160 = arith.mulf %159, %159 : vector<8x32xf32>
    %cst_98 = arith.constant dense<0.000000e+00> : vector<8xf32>
    %161 = vector.multi_reduction <add>, %160, %cst_98 [1] : vector<8x32xf32> to vector<8xf32>
    %162 = vector.shape_cast %161 : vector<8xf32> to vector<8x1xf32>
    %cst_99 = arith.constant 3.200000e+01 : f32
    %163 = vector.broadcast %cst_99 : f32 to vector<8x1xf32>
    %164 = arith.divf %162, %163 : vector<8x1xf32>
    %cst_100 = arith.constant 9.99999996E-13 : f32
    %165 = vector.broadcast %cst_100 : f32 to vector<8x1xf32>
    %166 = arith.addf %164, %165 : vector<8x1xf32>
    %167 = math.rsqrt %166 : vector<8x1xf32>
    %168 = vector.broadcast %167 : vector<8x1xf32> to vector<8x32xf32>
    %169 = arith.mulf %159, %168 : vector<8x32xf32>
    %170 = vector.broadcast %151 : vector<1x32xf32> to vector<8x32xf32>
    %171 = arith.mulf %169, %170 : vector<8x32xf32>
    %172 = vector.broadcast %153 : vector<1x32xf32> to vector<8x32xf32>
    %173 = arith.addf %171, %172 : vector<8x32xf32>
    %174 = arith.truncf %173 : vector<8x32xf32> to vector<8x32xbf16>
    %175 = vector.shape_cast %174 : vector<8x32xbf16> to vector<1x8x32xbf16>
    %176 = vector.shape_cast %175 : vector<1x8x32xbf16> to vector<1x8x32xbf16>
    %177 = vector.broadcast %176 : vector<1x8x32xbf16> to vector<4x8x32xbf16>
    %c1 = arith.constant 1 : index
    %c0_101 = arith.constant 0 : index
    %c0_102 = arith.constant 0 : index
    %c0_103 = arith.constant 0 : index
    %178 = vector.load %arg8[%c1, %c0_101, %c0_102, %c0_103] : memref<2x4x32x8xbf16, #tpu.memory_space<vmem>>, vector<1x4x32x8xbf16>
    %179 = vector.shape_cast %178 : vector<1x4x32x8xbf16> to vector<4x32x8xbf16>
    "tpu.trace_start"() <{level = 10 : i32, message = "zsk,zkd->zsd"}> : () -> ()
    %cst_104 = arith.constant dense<0.000000e+00> : vector<4x8x8xf32>
    %180 = tpu.matmul %177, %179, %cst_104 {dimension_numbers = #tpu.dot_dimension_numbers<[2], [1], [1], [2], [0, 0, 0, 1, 1, 2], [0], [0]>} : vector<4x8x32xbf16>, vector<4x32x8xbf16>, vector<4x8x8xf32> -> vector<4x8x8xf32>
    "tpu.trace_stop"() : () -> ()
    %c1_105 = arith.constant 1 : index
    %c0_106 = arith.constant 0 : index
    %c0_107 = arith.constant 0 : index
    %c0_108 = arith.constant 0 : index
    %181 = vector.load %arg11[%c1_105, %c0_106, %c0_107, %c0_108] : memref<2x4x1x8xf32, #tpu.memory_space<vmem>>, vector<1x4x1x8xf32>
    %182 = vector.shape_cast %181 : vector<1x4x1x8xf32> to vector<4x1x8xf32>
    %183 = vector.broadcast %182 : vector<4x1x8xf32> to vector<4x8x8xf32>
    %184 = arith.addf %180, %183 : vector<4x8x8xf32>
    %c1_109 = arith.constant 1 : index
    %c0_110 = arith.constant 0 : index
    %c0_111 = arith.constant 0 : index
    %c0_112 = arith.constant 0 : index
    %185 = vector.load %arg9[%c1_109, %c0_110, %c0_111, %c0_112] : memref<2x4x32x8xbf16, #tpu.memory_space<vmem>>, vector<1x4x32x8xbf16>
    %186 = vector.shape_cast %185 : vector<1x4x32x8xbf16> to vector<4x32x8xbf16>
    "tpu.trace_start"() <{level = 10 : i32, message = "zsk,zkd->zsd"}> : () -> ()
    %cst_113 = arith.constant dense<0.000000e+00> : vector<4x8x8xf32>
    %187 = tpu.matmul %177, %186, %cst_113 {dimension_numbers = #tpu.dot_dimension_numbers<[2], [1], [1], [2], [0, 0, 0, 1, 1, 2], [0], [0]>} : vector<4x8x32xbf16>, vector<4x32x8xbf16>, vector<4x8x8xf32> -> vector<4x8x8xf32>
    "tpu.trace_stop"() : () -> ()
    %c1_114 = arith.constant 1 : index
    %c0_115 = arith.constant 0 : index
    %c0_116 = arith.constant 0 : index
    %c0_117 = arith.constant 0 : index
    %188 = vector.load %arg12[%c1_114, %c0_115, %c0_116, %c0_117] : memref<2x4x1x8xf32, #tpu.memory_space<vmem>>, vector<1x4x1x8xf32>
    %189 = vector.shape_cast %188 : vector<1x4x1x8xf32> to vector<4x1x8xf32>
    %190 = vector.broadcast %189 : vector<4x1x8xf32> to vector<4x8x8xf32>
    %191 = arith.addf %187, %190 : vector<4x8x8xf32>
    %c1_118 = arith.constant 1 : index
    %c0_119 = arith.constant 0 : index
    %c0_120 = arith.constant 0 : index
    %c0_121 = arith.constant 0 : index
    %192 = vector.load %arg10[%c1_118, %c0_119, %c0_120, %c0_121] : memref<2x4x32x8xbf16, #tpu.memory_space<vmem>>, vector<1x4x32x8xbf16>
    %193 = vector.shape_cast %192 : vector<1x4x32x8xbf16> to vector<4x32x8xbf16>
    "tpu.trace_start"() <{level = 10 : i32, message = "zsk,zkd->zsd"}> : () -> ()
    %cst_122 = arith.constant dense<0.000000e+00> : vector<4x8x8xf32>
    %194 = tpu.matmul %177, %193, %cst_122 {dimension_numbers = #tpu.dot_dimension_numbers<[2], [1], [1], [2], [0, 0, 0, 1, 1, 2], [0], [0]>} : vector<4x8x32xbf16>, vector<4x32x8xbf16>, vector<4x8x8xf32> -> vector<4x8x8xf32>
    "tpu.trace_stop"() : () -> ()
    %c1_123 = arith.constant 1 : index
    %c0_124 = arith.constant 0 : index
    %c0_125 = arith.constant 0 : index
    %c0_126 = arith.constant 0 : index
    %195 = vector.load %arg13[%c1_123, %c0_124, %c0_125, %c0_126] : memref<2x4x1x8xf32, #tpu.memory_space<vmem>>, vector<1x4x1x8xf32>
    %196 = vector.shape_cast %195 : vector<1x4x1x8xf32> to vector<4x1x8xf32>
    %197 = vector.broadcast %196 : vector<4x1x8xf32> to vector<4x8x8xf32>
    %198 = arith.addf %194, %197 : vector<4x8x8xf32>
    %199 = arith.truncf %184 : vector<4x8x8xf32> to vector<4x8x8xbf16>
    %200 = arith.truncf %191 : vector<4x8x8xf32> to vector<4x8x8xbf16>
    "tpu.trace_start"() <{level = 10 : i32, message = "zqd,zkd->zqk"}> : () -> ()
    %cst_127 = arith.constant dense<0.000000e+00> : vector<4x8x8xf32>
    %201 = tpu.matmul %199, %200, %cst_127 {dimension_numbers = #tpu.dot_dimension_numbers<[2], [2], [1], [1], [0, 0, 0, 1, 1, 1], [0], [0]>} : vector<4x8x8xbf16>, vector<4x8x8xbf16>, vector<4x8x8xf32> -> vector<4x8x8xf32>
    "tpu.trace_stop"() : () -> ()
    %cst_128 = arith.constant 0.353553385 : f32
    %202 = vector.broadcast %cst_128 : f32 to vector<4x8x8xf32>
    %203 = arith.mulf %201, %202 : vector<4x8x8xf32>
    %204 = vector.broadcast %40 : vector<1x1x8xf32> to vector<4x8x8xf32>
    %205 = arith.addf %203, %204 : vector<4x8x8xf32>
    %cst_129 = arith.constant dense<0xFF800000> : vector<4x8xf32>
    %206 = vector.multi_reduction <maximumf>, %205, %cst_129 [2] : vector<4x8x8xf32> to vector<4x8xf32>
    %207 = vector.shape_cast %206 : vector<4x8xf32> to vector<4x8x1xf32>
    %208 = vector.broadcast %207 : vector<4x8x1xf32> to vector<4x8x8xf32>
    %209 = arith.subf %205, %208 : vector<4x8x8xf32>
    %210 = math.exp %209 : vector<4x8x8xf32>
    %cst_130 = arith.constant dense<0.000000e+00> : vector<4x8xf32>
    %211 = vector.multi_reduction <add>, %210, %cst_130 [2] : vector<4x8x8xf32> to vector<4x8xf32>
    %212 = vector.shape_cast %211 : vector<4x8xf32> to vector<4x8x1xf32>
    %213 = tpu.reciprocal %212 {approx = true} : vector<4x8x1xf32> -> vector<4x8x1xf32>
    %214 = vector.broadcast %213 : vector<4x8x1xf32> to vector<4x8x8xf32>
    %215 = arith.mulf %210, %214 : vector<4x8x8xf32>
    %216 = arith.truncf %215 : vector<4x8x8xf32> to vector<4x8x8xbf16>
    %217 = arith.truncf %198 : vector<4x8x8xf32> to vector<4x8x8xbf16>
    "tpu.trace_start"() <{level = 10 : i32, message = "zqk,zkd->zqd"}> : () -> ()
    %cst_131 = arith.constant dense<0.000000e+00> : vector<4x8x8xf32>
    %218 = tpu.matmul %216, %217, %cst_131 {dimension_numbers = #tpu.dot_dimension_numbers<[2], [1], [1], [2], [0, 0, 0, 1, 1, 2], [0], [0]>} : vector<4x8x8xbf16>, vector<4x8x8xbf16>, vector<4x8x8xf32> -> vector<4x8x8xf32>
    "tpu.trace_stop"() : () -> ()
    %219 = arith.truncf %218 : vector<4x8x8xf32> to vector<4x8x8xbf16>
    %c1_132 = arith.constant 1 : index
    %c0_133 = arith.constant 0 : index
    %c0_134 = arith.constant 0 : index
    %c0_135 = arith.constant 0 : index
    %220 = vector.load %arg14[%c1_132, %c0_133, %c0_134, %c0_135] : memref<2x4x8x32xbf16, #tpu.memory_space<vmem>>, vector<1x4x8x32xbf16>
    %221 = vector.shape_cast %220 : vector<1x4x8x32xbf16> to vector<4x8x32xbf16>
    "tpu.trace_start"() <{level = 10 : i32, message = "zsd,zdo->zso"}> : () -> ()
    %cst_136 = arith.constant dense<0.000000e+00> : vector<4x8x32xf32>
    %222 = tpu.matmul %219, %221, %cst_136 {dimension_numbers = #tpu.dot_dimension_numbers<[2], [1], [1], [2], [0, 0, 0, 1, 1, 2], [0], [0]>} : vector<4x8x8xbf16>, vector<4x8x32xbf16>, vector<4x8x32xf32> -> vector<4x8x32xf32>
    "tpu.trace_stop"() : () -> ()
    %cst_137 = arith.constant dense<0.000000e+00> : vector<8x32xf32>
    %223 = vector.multi_reduction <add>, %222, %cst_137 [0] : vector<4x8x32xf32> to vector<8x32xf32>
    %c1_138 = arith.constant 1 : index
    %c0_139 = arith.constant 0 : index
    %c0_140 = arith.constant 0 : index
    %224 = vector.load %arg15[%c1_138, %c0_139, %c0_140] : memref<2x1x32xf32, #tpu.memory_space<vmem>>, vector<1x1x32xf32>
    %225 = vector.shape_cast %224 : vector<1x1x32xf32> to vector<1x32xf32>
    %226 = vector.broadcast %225 : vector<1x32xf32> to vector<8x32xf32>
    %227 = arith.addf %223, %226 : vector<8x32xf32>
    %228 = arith.addf %173, %227 : vector<8x32xf32>
    %c1_141 = arith.constant 1 : index
    %c0_142 = arith.constant 0 : index
    %c0_143 = arith.constant 0 : index
    %229 = vector.load %arg16[%c1_141, %c0_142, %c0_143] : memref<2x1x32xf32, #tpu.memory_space<vmem>>, vector<1x1x32xf32>
    %230 = vector.shape_cast %229 : vector<1x1x32xf32> to vector<1x32xf32>
    %c1_144 = arith.constant 1 : index
    %c0_145 = arith.constant 0 : index
    %c0_146 = arith.constant 0 : index
    %231 = vector.load %arg17[%c1_144, %c0_145, %c0_146] : memref<2x1x32xf32, #tpu.memory_space<vmem>>, vector<1x1x32xf32>
    %232 = vector.shape_cast %231 : vector<1x1x32xf32> to vector<1x32xf32>
    %cst_147 = arith.constant dense<0.000000e+00> : vector<8xf32>
    %233 = vector.multi_reduction <add>, %228, %cst_147 [1] : vector<8x32xf32> to vector<8xf32>
    %234 = vector.shape_cast %233 : vector<8xf32> to vector<8x1xf32>
    %cst_148 = arith.constant 3.200000e+01 : f32
    %235 = vector.broadcast %cst_148 : f32 to vector<8x1xf32>
    %236 = arith.divf %234, %235 : vector<8x1xf32>
    %237 = vector.broadcast %236 : vector<8x1xf32> to vector<8x32xf32>
    %238 = arith.subf %228, %237 : vector<8x32xf32>
    %239 = arith.mulf %238, %238 : vector<8x32xf32>
    %cst_149 = arith.constant dense<0.000000e+00> : vector<8xf32>
    %240 = vector.multi_reduction <add>, %239, %cst_149 [1] : vector<8x32xf32> to vector<8xf32>
    %241 = vector.shape_cast %240 : vector<8xf32> to vector<8x1xf32>
    %cst_150 = arith.constant 3.200000e+01 : f32
    %242 = vector.broadcast %cst_150 : f32 to vector<8x1xf32>
    %243 = arith.divf %241, %242 : vector<8x1xf32>
    %cst_151 = arith.constant 9.99999996E-13 : f32
    %244 = vector.broadcast %cst_151 : f32 to vector<8x1xf32>
    %245 = arith.addf %243, %244 : vector<8x1xf32>
    %246 = math.rsqrt %245 : vector<8x1xf32>
    %247 = vector.broadcast %246 : vector<8x1xf32> to vector<8x32xf32>
    %248 = arith.mulf %238, %247 : vector<8x32xf32>
    %249 = vector.broadcast %230 : vector<1x32xf32> to vector<8x32xf32>
    %250 = arith.mulf %248, %249 : vector<8x32xf32>
    %251 = vector.broadcast %232 : vector<1x32xf32> to vector<8x32xf32>
    %252 = arith.addf %250, %251 : vector<8x32xf32>
    %253 = arith.truncf %252 : vector<8x32xf32> to vector<8x32xbf16>
    %c1_152 = arith.constant 1 : index
    %c0_153 = arith.constant 0 : index
    %c0_154 = arith.constant 0 : index
    %254 = vector.load %arg18[%c1_152, %c0_153, %c0_154] : memref<2x32x64xbf16, #tpu.memory_space<vmem>>, vector<1x32x64xbf16>
    %255 = vector.shape_cast %254 : vector<1x32x64xbf16> to vector<32x64xbf16>
    %cst_155 = arith.constant dense<0.000000e+00> : vector<8x64xf32>
    %256 = tpu.matmul %253, %255, %cst_155 {dimension_numbers = #tpu.dot_dimension_numbers<[1], [0], [0], [1], [0, 0, 1, 1], [], []>} : vector<8x32xbf16>, vector<32x64xbf16>, vector<8x64xf32> -> vector<8x64xf32>
    %c1_156 = arith.constant 1 : index
    %c0_157 = arith.constant 0 : index
    %c0_158 = arith.constant 0 : index
    %257 = vector.load %arg19[%c1_156, %c0_157, %c0_158] : memref<2x1x64xf32, #tpu.memory_space<vmem>>, vector<1x1x64xf32>
    %258 = vector.shape_cast %257 : vector<1x1x64xf32> to vector<1x64xf32>
    %259 = vector.broadcast %258 : vector<1x64xf32> to vector<8x64xf32>
    %260 = arith.addf %256, %259 : vector<8x64xf32>
    %261 = arith.mulf %260, %260 : vector<8x64xf32>
    %262 = arith.mulf %260, %261 : vector<8x64xf32>
    %cst_159 = arith.constant 4.471500e-02 : f32
    %263 = vector.broadcast %cst_159 : f32 to vector<8x64xf32>
    %264 = arith.mulf %263, %262 : vector<8x64xf32>
    %265 = arith.addf %260, %264 : vector<8x64xf32>
    %cst_160 = arith.constant 0.797884583 : f32
    %266 = vector.broadcast %cst_160 : f32 to vector<8x64xf32>
    %267 = arith.mulf %266, %265 : vector<8x64xf32>
    %268 = math.tanh %267 : vector<8x64xf32>
    %cst_161 = arith.constant 1.000000e+00 : f32
    %269 = vector.broadcast %cst_161 : f32 to vector<8x64xf32>
    %270 = arith.addf %269, %268 : vector<8x64xf32>
    %cst_162 = arith.constant 5.000000e-01 : f32
    %271 = vector.broadcast %cst_162 : f32 to vector<8x64xf32>
    %272 = arith.mulf %271, %270 : vector<8x64xf32>
    %273 = arith.mulf %260, %272 : vector<8x64xf32>
    %274 = arith.truncf %273 : vector<8x64xf32> to vector<8x64xbf16>
    %c1_163 = arith.constant 1 : index
    %c0_164 = arith.constant 0 : index
    %c0_165 = arith.constant 0 : index
    %275 = vector.load %arg20[%c1_163, %c0_164, %c0_165] : memref<2x64x32xbf16, #tpu.memory_space<vmem>>, vector<1x64x32xbf16>
    %276 = vector.shape_cast %275 : vector<1x64x32xbf16> to vector<64x32xbf16>
    %cst_166 = arith.constant dense<0.000000e+00> : vector<8x32xf32>
    %277 = tpu.matmul %274, %276, %cst_166 {dimension_numbers = #tpu.dot_dimension_numbers<[1], [0], [0], [1], [0, 0, 1, 1], [], []>} : vector<8x64xbf16>, vector<64x32xbf16>, vector<8x32xf32> -> vector<8x32xf32>
    %c1_167 = arith.constant 1 : index
    %c0_168 = arith.constant 0 : index
    %c0_169 = arith.constant 0 : index
    %278 = vector.load %arg21[%c1_167, %c0_168, %c0_169] : memref<2x1x32xf32, #tpu.memory_space<vmem>>, vector<1x1x32xf32>
    %279 = vector.shape_cast %278 : vector<1x1x32xf32> to vector<1x32xf32>
    %280 = vector.broadcast %279 : vector<1x32xf32> to vector<8x32xf32>
    %281 = arith.addf %277, %280 : vector<8x32xf32>
    %282 = arith.addf %252, %281 : vector<8x32xf32>
    %c1_170 = arith.constant 1 : index
    %c0_171 = arith.constant 0 : index
    %c0_172 = arith.constant 0 : index
    %283 = vector.load %arg22[%c1_170, %c0_171, %c0_172] : memref<2x1x32xf32, #tpu.memory_space<vmem>>, vector<1x1x32xf32>
    %284 = vector.shape_cast %283 : vector<1x1x32xf32> to vector<1x32xf32>
    %c1_173 = arith.constant 1 : index
    %c0_174 = arith.constant 0 : index
    %c0_175 = arith.constant 0 : index
    %285 = vector.load %arg23[%c1_173, %c0_174, %c0_175] : memref<2x1x32xf32, #tpu.memory_space<vmem>>, vector<1x1x32xf32>
    %286 = vector.shape_cast %285 : vector<1x1x32xf32> to vector<1x32xf32>
    %cst_176 = arith.constant dense<0.000000e+00> : vector<8xf32>
    %287 = vector.multi_reduction <add>, %282, %cst_176 [1] : vector<8x32xf32> to vector<8xf32>
    %288 = vector.shape_cast %287 : vector<8xf32> to vector<8x1xf32>
    %cst_177 = arith.constant 3.200000e+01 : f32
    %289 = vector.broadcast %cst_177 : f32 to vector<8x1xf32>
    %290 = arith.divf %288, %289 : vector<8x1xf32>
    %291 = vector.broadcast %290 : vector<8x1xf32> to vector<8x32xf32>
    %292 = arith.subf %282, %291 : vector<8x32xf32>
    %293 = arith.mulf %292, %292 : vector<8x32xf32>
    %cst_178 = arith.constant dense<0.000000e+00> : vector<8xf32>
    %294 = vector.multi_reduction <add>, %293, %cst_178 [1] : vector<8x32xf32> to vector<8xf32>
    %295 = vector.shape_cast %294 : vector<8xf32> to vector<8x1xf32>
    %cst_179 = arith.constant 3.200000e+01 : f32
    %296 = vector.broadcast %cst_179 : f32 to vector<8x1xf32>
    %297 = arith.divf %295, %296 : vector<8x1xf32>
    %cst_180 = arith.constant 9.99999996E-13 : f32
    %298 = vector.broadcast %cst_180 : f32 to vector<8x1xf32>
    %299 = arith.addf %297, %298 : vector<8x1xf32>
    %300 = math.rsqrt %299 : vector<8x1xf32>
    %301 = vector.broadcast %300 : vector<8x1xf32> to vector<8x32xf32>
    %302 = arith.mulf %292, %301 : vector<8x32xf32>
    %303 = vector.broadcast %284 : vector<1x32xf32> to vector<8x32xf32>
    %304 = arith.mulf %302, %303 : vector<8x32xf32>
    %305 = vector.broadcast %286 : vector<1x32xf32> to vector<8x32xf32>
    %306 = arith.addf %304, %305 : vector<8x32xf32>
    %c0_181 = arith.constant 0 : index
    %c0_182 = arith.constant 0 : index
    %c0_183 = arith.constant 0 : index
    %307 = vector.load %arg3[%c0_181, %c0_182, %c0_183] : memref<1x6x1xi32, #tpu.memory_space<vmem>>, vector<1x6x1xi32>
    %308 = vector.shape_cast %307 : vector<1x6x1xi32> to vector<6x1xi32>
    %309 = tpu.iota {dimensions = array<i32: 1>} : vector<6x8xi32>
    %310 = vector.broadcast %308 : vector<6x1xi32> to vector<6x8xi32>
    %311 = arith.cmpi eq, %309, %310 : vector<6x8xi32>
    %312 = arith.extui %311 : vector<6x8xi1> to vector<6x8xi32>
    %313 = arith.sitofp %312 : vector<6x8xi32> to vector<6x8xf32>
    %314 = arith.truncf %313 : vector<6x8xf32> to vector<6x8xbf16>
    %315 = arith.truncf %306 : vector<8x32xf32> to vector<8x32xbf16>
    %cst_184 = arith.constant dense<0.000000e+00> : vector<6x32xf32>
    %316 = tpu.matmul %314, %315, %cst_184 {dimension_numbers = #tpu.dot_dimension_numbers<[1], [0], [0], [1], [0, 0, 1, 1], [], []>} : vector<6x8xbf16>, vector<8x32xbf16>, vector<6x32xf32> -> vector<6x32xf32>
    %317 = arith.truncf %316 : vector<6x32xf32> to vector<6x32xbf16>
    %c0_185 = arith.constant 0 : index
    %c0_186 = arith.constant 0 : index
    %318 = vector.load %arg24[%c0_185, %c0_186] : memref<32x32xbf16, #tpu.memory_space<vmem>>, vector<32x32xbf16>
    %cst_187 = arith.constant dense<0.000000e+00> : vector<6x32xf32>
    %319 = tpu.matmul %317, %318, %cst_187 {dimension_numbers = #tpu.dot_dimension_numbers<[1], [0], [0], [1], [0, 0, 1, 1], [], []>} : vector<6x32xbf16>, vector<32x32xbf16>, vector<6x32xf32> -> vector<6x32xf32>
    %c0_188 = arith.constant 0 : index
    %c0_189 = arith.constant 0 : index
    %320 = vector.load %arg25[%c0_188, %c0_189] : memref<1x32xf32, #tpu.memory_space<vmem>>, vector<1x32xf32>
    %321 = vector.broadcast %320 : vector<1x32xf32> to vector<6x32xf32>
    %322 = arith.addf %319, %321 : vector<6x32xf32>
    %323 = arith.truncf %322 : vector<6x32xf32> to vector<6x32xbf16>
    %c0_190 = arith.constant 0 : index
    %c0_191 = arith.constant 0 : index
    %324 = vector.load %arg26[%c0_190, %c0_191] : memref<32x128xbf16, #tpu.memory_space<vmem>>, vector<32x128xbf16>
    %cst_192 = arith.constant dense<0.000000e+00> : vector<6x128xf32>
    %325 = tpu.matmul %323, %324, %cst_192 {dimension_numbers = #tpu.dot_dimension_numbers<[1], [0], [0], [1], [0, 0, 1, 1], [], []>} : vector<6x32xbf16>, vector<32x128xbf16>, vector<6x128xf32> -> vector<6x128xf32>
    %c0_193 = arith.constant 0 : index
    %c0_194 = arith.constant 0 : index
    %326 = vector.load %arg27[%c0_193, %c0_194] : memref<1x128xf32, #tpu.memory_space<vmem>>, vector<1x128xf32>
    %327 = vector.broadcast %326 : vector<1x128xf32> to vector<6x128xf32>
    %328 = arith.addf %325, %327 : vector<6x128xf32>
    %c0_195 = arith.constant 0 : index
    %c0_196 = arith.constant 0 : index
    %c0_197 = arith.constant 0 : index
    %329 = vector.load %arg28[%c0_195, %c0_196, %c0_197] : memref<1x6x128xf32, #tpu.memory_space<vmem>>, vector<1x6x128xf32>
    %330 = vector.shape_cast %329 : vector<1x6x128xf32> to vector<6x128xf32>
    %331 = vector.shape_cast %328 : vector<6x128xf32> to vector<1x6x128xf32>
    tpu.vector_store %arg28[%c0_195, %c0_196, %c0_197], %331 {strides = array<i32>} : memref<1x6x128xf32, #tpu.memory_space<vmem>>, vector<1x6x128xf32>,
    return
  }
  func.func @transform_0(%arg0: i32) -> (i32, i32, i32) {
    %c0_i32 = arith.constant 0 : i32
    %c0_i32_0 = arith.constant 0 : i32
    %c0_i32_1 = arith.constant 0 : i32
    return %arg0, %c0_i32, %c0_i32_0 : i32, i32, i32
  }
  func.func @transform_1(%arg0: i32) -> (i32, i32, i32) {
    %c0_i32 = arith.constant 0 : i32
    %c0_i32_0 = arith.constant 0 : i32
    %c0_i32_1 = arith.constant 0 : i32
    return %arg0, %c0_i32, %c0_i32_0 : i32, i32, i32
  }
  func.func @transform_2(%arg0: i32) -> (i32, i32, i32) {
    %c0_i32 = arith.constant 0 : i32
    %c0_i32_0 = arith.constant 0 : i32
    %c0_i32_1 = arith.constant 0 : i32
    return %arg0, %c0_i32, %c0_i32_0 : i32, i32, i32
  }
  func.func @transform_3(%arg0: i32) -> (i32, i32) {
    %c0_i32 = arith.constant 0 : i32
    %c0_i32_0 = arith.constant 0 : i32
    %c0_i32_1 = arith.constant 0 : i32
    return %c0_i32, %c0_i32_0 : i32, i32
  }
  func.func @transform_4(%arg0: i32) -> (i32, i32) {
    %c0_i32 = arith.constant 0 : i32
    %c0_i32_0 = arith.constant 0 : i32
    %c0_i32_1 = arith.constant 0 : i32
    return %c0_i32, %c0_i32_0 : i32, i32
  }
  func.func @transform_5(%arg0: i32) -> (i32, i32) {
    %c0_i32 = arith.constant 0 : i32
    %c0_i32_0 = arith.constant 0 : i32
    %c0_i32_1 = arith.constant 0 : i32
    return %c0_i32, %c0_i32_0 : i32, i32
  }
  func.func @transform_6(%arg0: i32) -> (i32, i32) {
    %c0_i32 = arith.constant 0 : i32
    %c0_i32_0 = arith.constant 0 : i32
    %c0_i32_1 = arith.constant 0 : i32
    return %c0_i32, %c0_i32_0 : i32, i32
  }
  func.func @transform_7(%arg0: i32) -> (i32, i32, i32, i32) {
    %c0_i32 = arith.constant 0 : i32
    %c0_i32_0 = arith.constant 0 : i32
    %c0_i32_1 = arith.constant 0 : i32
    %c0_i32_2 = arith.constant 0 : i32
    %c0_i32_3 = arith.constant 0 : i32
    return %c0_i32, %c0_i32_0, %c0_i32_1, %c0_i32_2 : i32, i32, i32, i32
  }
  func.func @transform_8(%arg0: i32) -> (i32, i32, i32, i32) {
    %c0_i32 = arith.constant 0 : i32
    %c0_i32_0 = arith.constant 0 : i32
    %c0_i32_1 = arith.constant 0 : i32
    %c0_i32_2 = arith.constant 0 : i32
    %c0_i32_3 = arith.constant 0 : i32
    return %c0_i32, %c0_i32_0, %c0_i32_1, %c0_i32_2 : i32, i32, i32, i32
  }
  func.func @transform_9(%arg0: i32) -> (i32, i32, i32, i32) {
    %c0_i32 = arith.constant 0 : i32
    %c0_i32_0 = arith.constant 0 : i32
    %c0_i32_1 = arith.constant 0 : i32
    %c0_i32_2 = arith.constant 0 : i32
    %c0_i32_3 = arith.constant 0 : i32
    return %c0_i32, %c0_i32_0, %c0_i32_1, %c0_i32_2 : i32, i32, i32, i32
  }
  func.func @transform_10(%arg0: i32) -> (i32, i32, i32, i32) {
    %c0_i32 = arith.constant 0 : i32
    %c0_i32_0 = arith.constant 0 : i32
    %c0_i32_1 = arith.constant 0 : i32
    %c0_i32_2 = arith.constant 0 : i32
    %c0_i32_3 = arith.constant 0 : i32
    return %c0_i32, %c0_i32_0, %c0_i32_1, %c0_i32_2 : i32, i32, i32, i32
  }
  func.func @transform_11(%arg0: i32) -> (i32, i32, i32, i32) {
    %c0_i32 = arith.constant 0 : i32
    %c0_i32_0 = arith.constant 0 : i32
    %c0_i32_1 = arith.constant 0 : i32
    %c0_i32_2 = arith.constant 0 : i32
    %c0_i32_3 = arith.constant 0 : i32
    return %c0_i32, %c0_i32_0, %c0_i32_1, %c0_i32_2 : i32, i32, i32, i32
  }
  func.func @transform_12(%arg0: i32) -> (i32, i32, i32, i32) {
    %c0_i32 = arith.constant 0 : i32
    %c0_i32_0 = arith.constant 0 : i32
    %c0_i32_1 = arith.constant 0 : i32
    %c0_i32_2 = arith.constant 0 : i32
    %c0_i32_3 = arith.constant 0 : i32
    return %c0_i32, %c0_i32_0, %c0_i32_1, %c0_i32_2 : i32, i32, i32, i32
  }
  func.func @transform_13(%arg0: i32) -> (i32, i32, i32, i32) {
    %c0_i32 = arith.constant 0 : i32
    %c0_i32_0 = arith.constant 0 : i32
    %c0_i32_1 = arith.constant 0 : i32
    %c0_i32_2 = arith.constant 0 : i32
    %c0_i32_3 = arith.constant 0 : i32
    return %c0_i32, %c0_i32_0, %c0_i32_1, %c0_i32_2 : i32, i32, i32, i32
  }
  func.func @transform_14(%arg0: i32) -> (i32, i32, i32) {
    %c0_i32 = arith.constant 0 : i32
    %c0_i32_0 = arith.constant 0 : i32
    %c0_i32_1 = arith.constant 0 : i32
    %c0_i32_2 = arith.constant 0 : i32
    return %c0_i32, %c0_i32_0, %c0_i32_1 : i32, i32, i32
  }
  func.func @transform_15(%arg0: i32) -> (i32, i32, i32) {
    %c0_i32 = arith.constant 0 : i32
    %c0_i32_0 = arith.constant 0 : i32
    %c0_i32_1 = arith.constant 0 : i32
    %c0_i32_2 = arith.constant 0 : i32
    return %c0_i32, %c0_i32_0, %c0_i32_1 : i32, i32, i32
  }
  func.func @transform_16(%arg0: i32) -> (i32, i32, i32) {
    %c0_i32 = arith.constant 0 : i32
    %c0_i32_0 = arith.constant 0 : i32
    %c0_i32_1 = arith.constant 0 : i32
    %c0_i32_2 = arith.constant 0 : i32
    return %c0_i32, %c0_i32_0, %c0_i32_1 : i32, i32, i32
  }
  func.func @transform_17(%arg0: i32) -> (i32, i32, i32) {
    %c0_i32 = arith.constant 0 : i32
    %c0_i32_0 = arith.constant 0 : i32
    %c0_i32_1 = arith.constant 0 : i32
    %c0_i32_2 = arith.constant 0 : i32
    return %c0_i32, %c0_i32_0, %c0_i32_1 : i32, i32, i32
  }
  func.func @transform_18(%arg0: i32) -> (i32, i32, i32) {
    %c0_i32 = arith.constant 0 : i32
    %c0_i32_0 = arith.constant 0 : i32
    %c0_i32_1 = arith.constant 0 : i32
    %c0_i32_2 = arith.constant 0 : i32
    return %c0_i32, %c0_i32_0, %c0_i32_1 : i32, i32, i32
  }
  func.func @transform_19(%arg0: i32) -> (i32, i32, i32) {
    %c0_i32 = arith.constant 0 : i32
    %c0_i32_0 = arith.constant 0 : i32
    %c0_i32_1 = arith.constant 0 : i32
    %c0_i32_2 = arith.constant 0 : i32
    return %c0_i32, %c0_i32_0, %c0_i32_1 : i32, i32, i32
  }
  func.func @transform_20(%arg0: i32) -> (i32, i32, i32) {
    %c0_i32 = arith.constant 0 : i32
    %c0_i32_0 = arith.constant 0 : i32
    %c0_i32_1 = arith.constant 0 : i32
    %c0_i32_2 = arith.constant 0 : i32
    return %c0_i32, %c0_i32_0, %c0_i32_1 : i32, i32, i32
  }
  func.func @transform_21(%arg0: i32) -> (i32, i32, i32) {
    %c0_i32 = arith.constant 0 : i32
    %c0_i32_0 = arith.constant 0 : i32
    %c0_i32_1 = arith.constant 0 : i32
    %c0_i32_2 = arith.constant 0 : i32
    return %c0_i32, %c0_i32_0, %c0_i32_1 : i32, i32, i32
  }
  func.func @transform_22(%arg0: i32) -> (i32, i32, i32) {
    %c0_i32 = arith.constant 0 : i32
    %c0_i32_0 = arith.constant 0 : i32
    %c0_i32_1 = arith.constant 0 : i32
    %c0_i32_2 = arith.constant 0 : i32
    return %c0_i32, %c0_i32_0, %c0_i32_1 : i32, i32, i32
  }
  func.func @transform_23(%arg0: i32) -> (i32, i32) {
    %c0_i32 = arith.constant 0 : i32
    %c0_i32_0 = arith.constant 0 : i32
    %c0_i32_1 = arith.constant 0 : i32
    return %c0_i32, %c0_i32_0 : i32, i32
  }
  func.func @transform_24(%arg0: i32) -> (i32, i32) {
    %c0_i32 = arith.constant 0 : i32
    %c0_i32_0 = arith.constant 0 : i32
    %c0_i32_1 = arith.constant 0 : i32
    return %c0_i32, %c0_i32_0 : i32, i32
  }
  func.func @transform_25(%arg0: i32) -> (i32, i32) {
    %c0_i32 = arith.constant 0 : i32
    %c0_i32_0 = arith.constant 0 : i32
    %c0_i32_1 = arith.constant 0 : i32
    return %c0_i32, %c0_i32_0 : i32, i32
  }
  func.func @transform_26(%arg0: i32) -> (i32, i32) {
    %c0_i32 = arith.constant 0 : i32
    %c0_i32_0 = arith.constant 0 : i32
    %c0_i32_1 = arith.constant 0 : i32
    return %c0_i32, %c0_i32_0 : i32, i32
  }
  func.func @transform_27(%arg0: i32) -> (i32, i32, i32) {
    %c0_i32 = arith.constant 0 : i32
    %c0_i32_0 = arith.constant 0 : i32
    %c0_i32_1 = arith.constant 0 : i32
    return %arg0, %c0_i32, %c0_i32_0 : i32, i32, i32
  }
}

</mosaic_0001>

<llo_original>
// kernel: bert_ner_forward.1
$region0: #{bert_ner_forward.1}
  #allocation0 [shape = 'u32[]', space=smem, size = 0x4, offset = 0x4, fixed_abs, tag = 'smem constant byte address 0x4 - core index']
  #allocation1 [shape = 'u32[144,128]{1,0:T(1,128)}', space=vmem, size = 0x12000, scoped, tag = 'internal scratch']
  %s0 = inlined_call_operand.vmem [shape: s32[2,8,1], index: 0, kind: input, shape index: {}]
  %s1 = inlined_call_operand.vmem [shape: s32[2,1,1], index: 1, kind: input, shape index: {}]
  %s2 = inlined_call_operand.vmem [shape: s32[2,6,1], index: 2, kind: input, shape index: {}]
  %s3 = inlined_call_operand.vmem [shape: bf16[128,32], index: 3, kind: input, shape index: {}]
  %s4 = inlined_call_operand.vmem [shape: f32[32,32], index: 4, kind: input, shape index: {}]
  %s5 = inlined_call_operand.vmem [shape: f32[1,32], index: 5, kind: input, shape index: {}]
  %s6 = inlined_call_operand.vmem [shape: f32[1,32], index: 6, kind: input, shape index: {}]
  %s7 = inlined_call_operand.vmem [shape: bf16[2,4,32,8], index: 7, kind: input, shape index: {}]
  %s8 = inlined_call_operand.vmem [shape: bf16[2,4,32,8], index: 8, kind: input, shape index: {}]
  %s9 = inlined_call_operand.vmem [shape: bf16[2,4,32,8], index: 9, kind: input, shape index: {}]
  %s10 = inlined_call_operand.vmem [shape: f32[2,4,1,8], index: 10, kind: input, shape index: {}]
  %s11 = inlined_call_operand.vmem [shape: f32[2,4,1,8], index: 11, kind: input, shape index: {}]
  %s12 = inlined_call_operand.vmem [shape: f32[2,4,1,8], index: 12, kind: input, shape index: {}]
  %s13 = inlined_call_operand.vmem [shape: bf16[2,4,8,32], index: 13, kind: input, shape index: {}]
  %s14 = inlined_call_operand.vmem [shape: f32[2,1,32], index: 14, kind: input, shape index: {}]
  %s15 = inlined_call_operand.vmem [shape: f32[2,1,32], index: 15, kind: input, shape index: {}]
  %s16 = inlined_call_operand.vmem [shape: f32[2,1,32], index: 16, kind: input, shape index: {}]
  %s17 = inlined_call_operand.vmem [shape: bf16[2,32,64], index: 17, kind: input, shape index: {}]
  %s18 = inlined_call_operand.vmem [shape: f32[2,1,64], index: 18, kind: input, shape index: {}]
  %s19 = inlined_call_operand.vmem [shape: bf16[2,64,32], index: 19, kind: input, shape index: {}]
  %s20 = inlined_call_operand.vmem [shape: f32[2,1,32], index: 20, kind: input, shape index: {}]
  %s21 = inlined_call_operand.vmem [shape: f32[2,1,32], index: 21, kind: input, shape index: {}]
  %s22 = inlined_call_operand.vmem [shape: f32[2,1,32], index: 22, kind: input, shape index: {}]
  %s23 = inlined_call_operand.vmem [shape: bf16[32,32], index: 23, kind: input, shape index: {}]
  %s24 = inlined_call_operand.vmem [shape: f32[1,32], index: 24, kind: input, shape index: {}]
  %s25 = inlined_call_operand.vmem [shape: bf16[32,128], index: 25, kind: input, shape index: {}]
  %s26 = inlined_call_operand.vmem [shape: f32[1,128], index: 26, kind: input, shape index: {}]
  %s27 = inlined_call_operand.vmem [shape: f32[2,6,128], index: 27, kind: output, shape index: {}]
  %s28 = sld [smem:[#allocation0]]
  $region141: #{bert_ner_forward.1} parent=0
    _
  %s30 = ssub.s32 1, %s28
  %s31 = scalar_select 0, %s30, %s28
  loop: start=0, step=1, limit=4
  $region2: #{bert_ner_forward.1} parent=0 // loop_pre_header
    _
  $region3: #{bert_ner_forward.1} parent=0 // loop_header
    %s33 = sphi 0, %s37
    %p34 = scmp.ge.s32.totalorder %s33, 4
    %s43 = sphi 0, %s45
    %s46 = sphi 0, %s43
    %s47 = sphi 0, %s46
    %s63 = sphi 0, %s47
    %s69 = sphi 0, %s71
    %s72 = sphi 0, %s69
    %s73 = sphi 0, %s72
    %s89 = sphi 0, %s73
    %s95 = sphi 0, %s97
    %s98 = sphi 0, %s95
    %s99 = sphi 0, %s98
    %s115 = sphi 0, %s99
    %s119 = sphi 0, %s119
    %s121 = sphi 0, %s119
    %s122 = sphi 0, %s121
    %s136 = sphi 0, %s122
    %s140 = sphi 0, %s140
    %s142 = sphi 0, %s140
    %s143 = sphi 0, %s142
    %s157 = sphi 0, %s143
    %s161 = sphi 0, %s161
    %s163 = sphi 0, %s161
    %s164 = sphi 0, %s163
    %s178 = sphi 0, %s164
    %s182 = sphi 0, %s182
    %s184 = sphi 0, %s182
    %s185 = sphi 0, %s184
    %s199 = sphi 0, %s185
    %s203 = sphi 0, %s203
    %s205 = sphi 0, %s203
    %s206 = sphi 0, %s205
    %s220 = sphi 0, %s206
    %s224 = sphi 0, %s224
    %s226 = sphi 0, %s224
    %s227 = sphi 0, %s226
    %s241 = sphi 0, %s227
    %s245 = sphi 0, %s245
    %s247 = sphi 0, %s245
    %s248 = sphi 0, %s247
    %s262 = sphi 0, %s248
    %s266 = sphi 0, %s266
    %s268 = sphi 0, %s266
    %s269 = sphi 0, %s268
    %s283 = sphi 0, %s269
    %s287 = sphi 0, %s287
    %s289 = sphi 0, %s287
    %s290 = sphi 0, %s289
    %s304 = sphi 0, %s290
    %s308 = sphi 0, %s308
    %s310 = sphi 0, %s308
    %s311 = sphi 0, %s310
    %s325 = sphi 0, %s311
    %s329 = sphi 0, %s329
    %s331 = sphi 0, %s329
    %s332 = sphi 0, %s331
    %s346 = sphi 0, %s332
    %s350 = sphi 0, %s350
    %s352 = sphi 0, %s350
    %s353 = sphi 0, %s352
    %s367 = sphi 0, %s353
    %s371 = sphi 0, %s371
    %s373 = sphi 0, %s371
    %s374 = sphi 0, %s373
    %s388 = sphi 0, %s374
    %s392 = sphi 0, %s392
    %s394 = sphi 0, %s392
    %s395 = sphi 0, %s394
    %s409 = sphi 0, %s395
    %s413 = sphi 0, %s413
    %s415 = sphi 0, %s413
    %s416 = sphi 0, %s415
    %s430 = sphi 0, %s416
    %s434 = sphi 0, %s434
    %s436 = sphi 0, %s434
    %s437 = sphi 0, %s436
    %s451 = sphi 0, %s437
    %s455 = sphi 0, %s455
    %s457 = sphi 0, %s455
    %s458 = sphi 0, %s457
    %s472 = sphi 0, %s458
    %s476 = sphi 0, %s476
    %s478 = sphi 0, %s476
    %s479 = sphi 0, %s478
    %s493 = sphi 0, %s479
    %s497 = sphi 0, %s497
    %s499 = sphi 0, %s497
    %s500 = sphi 0, %s499
    %s514 = sphi 0, %s500
    %s518 = sphi 0, %s518
    %s520 = sphi 0, %s518
    %s521 = sphi 0, %s520
    %s535 = sphi 0, %s521
    %s539 = sphi 0, %s539
    %s541 = sphi 0, %s539
    %s542 = sphi 0, %s541
    %s556 = sphi 0, %s542
    %s560 = sphi 0, %s560
    %s562 = sphi 0, %s560
    %s563 = sphi 0, %s562
    %s577 = sphi 0, %s563
    %s581 = sphi 0, %s581
    %s583 = sphi 0, %s581
    %s584 = sphi 0, %s583
    %s598 = sphi 0, %s584
    %s602 = sphi 0, %s602
    %s604 = sphi 0, %s602
    %s605 = sphi 0, %s604
    %s619 = sphi 0, %s605
    %s625 = sphi 0, %s627
    %s628 = sphi 0, %s625
    %s629 = sphi 0, %s628
    %s645 = sphi 0, %s629
  $region4: #{bert_ner_forward.1} parent=0 // loop_header_branch
    %36 = sbr.rel (%p34) target = $region8
  $region5: #{bert_ner_forward.1} parent=0 // loop_body
    %s38 = ssub.s32 %s33, 1
    %s39 = ssub.s32 %s33, 2
    %s40 = sadd.s32 %s33, 1
    %s41 = ssub.s32 %s33, %s40
    %p42 = scmp.eq.s32.totalorder %s41, 0
    %s44 = sadd.s32 %s43, 1
    %s45 = scalar_select %p42, %s43, %s44
    %p48 = pneg %p42
    %p49 = scmp.eq.s32.totalorder %s33, 1
    %p50 = por %p48, %p49
    %p51 = scmp.ne.s32.totalorder %s43, %s46
    %p52 = scmp.eq.s32.totalorder %s33, 0
    %p53 = por %p51, %p52
    %p54 = scmp.ne.s32.totalorder %s43, %s46
    %p55 = scmp.eq.s32.totalorder %s38, 1
    %p56 = por %p54, %p55
    %p57 = scmp.ne.s32.totalorder %s46, %s47
    %p58 = scmp.eq.s32.totalorder %s38, 0
    %p59 = por %p57, %p58
    %p60 = scmp.ne.s32.totalorder %s46, %s47
    %p61 = scmp.eq.s32.totalorder %s39, 1
    %p62 = por %p60, %p61
    %p64 = scmp.ne.s32.totalorder %s47, %s63
    %p65 = scmp.eq.s32.totalorder %s39, 0
    %p66 = por %p64, %p65
    %s67 = ssub.s32 %s33, %s40
    %p68 = scmp.eq.s32.totalorder %s67, 0
    %s70 = sadd.s32 %s69, 1
    %s71 = scalar_select %p68, %s69, %s70
    %p74 = pneg %p68
    %p75 = scmp.eq.s32.totalorder %s33, 1
    %p76 = por %p74, %p75
    %p77 = scmp.ne.s32.totalorder %s69, %s72
    %p78 = scmp.eq.s32.totalorder %s33, 0
    %p79 = por %p77, %p78
    %p80 = scmp.ne.s32.totalorder %s69, %s72
    %p81 = scmp.eq.s32.totalorder %s38, 1
    %p82 = por %p80, %p81
    %p83 = scmp.ne.s32.totalorder %s72, %s73
    %p84 = scmp.eq.s32.totalorder %s38, 0
    %p85 = por %p83, %p84
    %p86 = scmp.ne.s32.totalorder %s72, %s73
    %p87 = scmp.eq.s32.totalorder %s39, 1
    %p88 = por %p86, %p87
    %p90 = scmp.ne.s32.totalorder %s73, %s89
    %p91 = scmp.eq.s32.totalorder %s39, 0
    %p92 = por %p90, %p91
    %s93 = ssub.s32 %s33, %s40
    %p94 = scmp.eq.s32.totalorder %s93, 0
    %s96 = sadd.s32 %s95, 1
    %s97 = scalar_select %p94, %s95, %s96
    %p100 = pneg %p94
    %p101 = scmp.eq.s32.totalorder %s33, 1
    %p102 = por %p100, %p101
    %p103 = scmp.ne.s32.totalorder %s95, %s98
    %p104 = scmp.eq.s32.totalorder %s33, 0
    %p105 = por %p103, %p104
    %p106 = scmp.ne.s32.totalorder %s95, %s98
    %p107 = scmp.eq.s32.totalorder %s38, 1
    %p108 = por %p106, %p107
    %p109 = scmp.ne.s32.totalorder %s98, %s99
    %p110 = scmp.eq.s32.totalorder %s38, 0
    %p111 = por %p109, %p110
    %p112 = scmp.ne.s32.totalorder %s98, %s99
    %p113 = scmp.eq.s32.totalorder %s39, 1
    %p114 = por %p112, %p113
    %p116 = scmp.ne.s32.totalorder %s99, %s115
    %p117 = scmp.eq.s32.totalorder %s39, 0
    %p118 = por %p116, %p117
    %s120 = sadd.s32 %s119, 1
    %p123 = scmp.eq.s32.totalorder %s33, 1
    %p124 = scmp.ne.s32.totalorder %s119, %s121
    %p125 = scmp.eq.s32.totalorder %s33, 0
    %p126 = por %p124, %p125
    %p127 = scmp.ne.s32.totalorder %s119, %s121
    %p128 = scmp.eq.s32.totalorder %s38, 1
    %p129 = por %p127, %p128
    %p130 = scmp.ne.s32.totalorder %s121, %s122
    %p131 = scmp.eq.s32.totalorder %s38, 0
    %p132 = por %p130, %p131
    %p133 = scmp.ne.s32.totalorder %s121, %s122
    %p134 = scmp.eq.s32.totalorder %s39, 1
    %p135 = por %p133, %p134
    %p137 = scmp.ne.s32.totalorder %s122, %s136
    %p138 = scmp.eq.s32.totalorder %s39, 0
    %p139 = por %p137, %p138
    %s141 = sadd.s32 %s140, 1
    %p144 = scmp.eq.s32.totalorder %s33, 1
    %p145 = scmp.ne.s32.totalorder %s140, %s142
    %p146 = scmp.eq.s32.totalorder %s33, 0
    %p147 = por %p145, %p146
    %p148 = scmp.ne.s32.totalorder %s140, %s142
    %p149 = scmp.eq.s32.totalorder %s38, 1
    %p150 = por %p148, %p149
    %p151 = scmp.ne.s32.totalorder %s142, %s143
    %p152 = scmp.eq.s32.totalorder %s38, 0
    %p153 = por %p151, %p152
    %p154 = scmp.ne.s32.totalorder %s142, %s143
    %p155 = scmp.eq.s32.totalorder %s39, 1
    %p156 = por %p154, %p155
    %p158 = scmp.ne.s32.totalorder %s143, %s157
    %p159 = scmp.eq.s32.totalorder %s39, 0
    %p160 = por %p158, %p159
    %s162 = sadd.s32 %s161, 1
    %p165 = scmp.eq.s32.totalorder %s33, 1
    %p166 = scmp.ne.s32.totalorder %s161, %s163
    %p167 = scmp.eq.s32.totalorder %s33, 0
    %p168 = por %p166, %p167
    %p169 = scmp.ne.s32.totalorder %s161, %s163
    %p170 = scmp.eq.s32.totalorder %s38, 1
    %p171 = por %p169, %p170
    %p172 = scmp.ne.s32.totalorder %s163, %s164
    %p173 = scmp.eq.s32.totalorder %s38, 0
    %p174 = por %p172, %p173
    %p175 = scmp.ne.s32.totalorder %s163, %s164
    %p176 = scmp.eq.s32.totalorder %s39, 1
    %p177 = por %p175, %p176
    %p179 = scmp.ne.s32.totalorder %s164, %s178
    %p180 = scmp.eq.s32.totalorder %s39, 0
    %p181 = por %p179, %p180
    %s183 = sadd.s32 %s182, 1
    %p186 = scmp.eq.s32.totalorder %s33, 1
    %p187 = scmp.ne.s32.totalorder %s182, %s184
    %p188 = scmp.eq.s32.totalorder %s33, 0
    %p189 = por %p187, %p188
    %p190 = scmp.ne.s32.totalorder %s182, %s184
    %p191 = scmp.eq.s32.totalorder %s38, 1
    %p192 = por %p190, %p191
    %p193 = scmp.ne.s32.totalorder %s184, %s185
    %p194 = scmp.eq.s32.totalorder %s38, 0
    %p195 = por %p193, %p194
    %p196 = scmp.ne.s32.totalorder %s184, %s185
    %p197 = scmp.eq.s32.totalorder %s39, 1
    %p198 = por %p196, %p197
    %p200 = scmp.ne.s32.totalorder %s185, %s199
    %p201 = scmp.eq.s32.totalorder %s39, 0
    %p202 = por %p200, %p201
    %s204 = sadd.s32 %s203, 1
    %p207 = scmp.eq.s32.totalorder %s33, 1
    %p208 = scmp.ne.s32.totalorder %s203, %s205
    %p209 = scmp.eq.s32.totalorder %s33, 0
    %p210 = por %p208, %p209
    %p211 = scmp.ne.s32.totalorder %s203, %s205
    %p212 = scmp.eq.s32.totalorder %s38, 1
    %p213 = por %p211, %p212
    %p214 = scmp.ne.s32.totalorder %s205, %s206
    %p215 = scmp.eq.s32.totalorder %s38, 0
    %p216 = por %p214, %p215
    %p217 = scmp.ne.s32.totalorder %s205, %s206
    %p218 = scmp.eq.s32.totalorder %s39, 1
    %p219 = por %p217, %p218
    %p221 = scmp.ne.s32.totalorder %s206, %s220
    %p222 = scmp.eq.s32.totalorder %s39, 0
    %p223 = por %p221, %p222
    %s225 = sadd.s32 %s224, 1
    %p228 = scmp.eq.s32.totalorder %s33, 1
    %p229 = scmp.ne.s32.totalorder %s224, %s226
    %p230 = scmp.eq.s32.totalorder %s33, 0
    %p231 = por %p229, %p230
    %p232 = scmp.ne.s32.totalorder %s224, %s226
    %p233 = scmp.eq.s32.totalorder %s38, 1
    %p234 = por %p232, %p233
    %p235 = scmp.ne.s32.totalorder %s226, %s227
    %p236 = scmp.eq.s32.totalorder %s38, 0
    %p237 = por %p235, %p236
    %p238 = scmp.ne.s32.totalorder %s226, %s227
    %p239 = scmp.eq.s32.totalorder %s39, 1
    %p240 = por %p238, %p239
    %p242 = scmp.ne.s32.totalorder %s227, %s241
    %p243 = scmp.eq.s32.totalorder %s39, 0
    %p244 = por %p242, %p243
    %s246 = sadd.s32 %s245, 1
    %p249 = scmp.eq.s32.totalorder %s33, 1
    %p250 = scmp.ne.s32.totalorder %s245, %s247
    %p251 = scmp.eq.s32.totalorder %s33, 0
    %p252 = por %p250, %p251
    %p253 = scmp.ne.s32.totalorder %s245, %s247
    %p254 = scmp.eq.s32.totalorder %s38, 1
    %p255 = por %p253, %p254
    %p256 = scmp.ne.s32.totalorder %s247, %s248
    %p257 = scmp.eq.s32.totalorder %s38, 0
    %p258 = por %p256, %p257
    %p259 = scmp.ne.s32.totalorder %s247, %s248
    %p260 = scmp.eq.s32.totalorder %s39, 1
    %p261 = por %p259, %p260
    %p263 = scmp.ne.s32.totalorder %s248, %s262
    %p264 = scmp.eq.s32.totalorder %s39, 0
    %p265 = por %p263, %p264
    %s267 = sadd.s32 %s266, 1
    %p270 = scmp.eq.s32.totalorder %s33, 1
    %p271 = scmp.ne.s32.totalorder %s266, %s268
    %p272 = scmp.eq.s32.totalorder %s33, 0
    %p273 = por %p271, %p272
    %p274 = scmp.ne.s32.totalorder %s266, %s268
    %p275 = scmp.eq.s32.totalorder %s38, 1
    %p276 = por %p274, %p275
    %p277 = scmp.ne.s32.totalorder %s268, %s269
    %p278 = scmp.eq.s32.totalorder %s38, 0
    %p279 = por %p277, %p278
    %p280 = scmp.ne.s32.totalorder %s268, %s269
    %p281 = scmp.eq.s32.totalorder %s39, 1
    %p282 = por %p280, %p281
    %p284 = scmp.ne.s32.totalorder %s269, %s283
    %p285 = scmp.eq.s32.totalorder %s39, 0
    %p286 = por %p284, %p285
    %s288 = sadd.s32 %s287, 1
    %p291 = scmp.eq.s32.totalorder %s33, 1
    %p292 = scmp.ne.s32.totalorder %s287, %s289
    %p293 = scmp.eq.s32.totalorder %s33, 0
    %p294 = por %p292, %p293
    %p295 = scmp.ne.s32.totalorder %s287, %s289
    %p296 = scmp.eq.s32.totalorder %s38, 1
    %p297 = por %p295, %p296
    %p298 = scmp.ne.s32.totalorder %s289, %s290
    %p299 = scmp.eq.s32.totalorder %s38, 0
    %p300 = por %p298, %p299
    %p301 = scmp.ne.s32.totalorder %s289, %s290
    %p302 = scmp.eq.s32.totalorder %s39, 1
    %p303 = por %p301, %p302
    %p305 = scmp.ne.s32.totalorder %s290, %s304
    %p306 = scmp.eq.s32.totalorder %s39, 0
    %p307 = por %p305, %p306
    %s309 = sadd.s32 %s308, 1
    %p312 = scmp.eq.s32.totalorder %s33, 1
    %p313 = scmp.ne.s32.totalorder %s308, %s310
    %p314 = scmp.eq.s32.totalorder %s33, 0
    %p315 = por %p313, %p314
    %p316 = scmp.ne.s32.totalorder %s308, %s310
    %p317 = scmp.eq.s32.totalorder %s38, 1
    %p318 = por %p316, %p317
    %p319 = scmp.ne.s32.totalorder %s310, %s311
    %p320 = scmp.eq.s32.totalorder %s38, 0
    %p321 = por %p319, %p320
    %p322 = scmp.ne.s32.totalorder %s310, %s311
    %p323 = scmp.eq.s32.totalorder %s39, 1
    %p324 = por %p322, %p323
    %p326 = scmp.ne.s32.totalorder %s311, %s325
    %p327 = scmp.eq.s32.totalorder %s39, 0
    %p328 = por %p326, %p327
    %s330 = sadd.s32 %s329, 1
    %p333 = scmp.eq.s32.totalorder %s33, 1
    %p334 = scmp.ne.s32.totalorder %s329, %s331
    %p335 = scmp.eq.s32.totalorder %s33, 0
    %p336 = por %p334, %p335
    %p337 = scmp.ne.s32.totalorder %s329, %s331
    %p338 = scmp.eq.s32.totalorder %s38, 1
    %p339 = por %p337, %p338
    %p340 = scmp.ne.s32.totalorder %s331, %s332
    %p341 = scmp.eq.s32.totalorder %s38, 0
    %p342 = por %p340, %p341
    %p343 = scmp.ne.s32.totalorder %s331, %s332
    %p344 = scmp.eq.s32.totalorder %s39, 1
    %p345 = por %p343, %p344
    %p347 = scmp.ne.s32.totalorder %s332, %s346
    %p348 = scmp.eq.s32.totalorder %s39, 0
    %p349 = por %p347, %p348
    %s351 = sadd.s32 %s350, 1
    %p354 = scmp.eq.s32.totalorder %s33, 1
    %p355 = scmp.ne.s32.totalorder %s350, %s352
    %p356 = scmp.eq.s32.totalorder %s33, 0
    %p357 = por %p355, %p356
    %p358 = scmp.ne.s32.totalorder %s350, %s352
    %p359 = scmp.eq.s32.totalorder %s38, 1
    %p360 = por %p358, %p359
    %p361 = scmp.ne.s32.totalorder %s352, %s353
    %p362 = scmp.eq.s32.totalorder %s38, 0
    %p363 = por %p361, %p362
    %p364 = scmp.ne.s32.totalorder %s352, %s353
    %p365 = scmp.eq.s32.totalorder %s39, 1
    %p366 = por %p364, %p365
    %p368 = scmp.ne.s32.totalorder %s353, %s367
    %p369 = scmp.eq.s32.totalorder %s39, 0
    %p370 = por %p368, %p369
    %s372 = sadd.s32 %s371, 1
    %p375 = scmp.eq.s32.totalorder %s33, 1
    %p376 = scmp.ne.s32.totalorder %s371, %s373
    %p377 = scmp.eq.s32.totalorder %s33, 0
    %p378 = por %p376, %p377
    %p379 = scmp.ne.s32.totalorder %s371, %s373
    %p380 = scmp.eq.s32.totalorder %s38, 1
    %p381 = por %p379, %p380
    %p382 = scmp.ne.s32.totalorder %s373, %s374
    %p383 = scmp.eq.s32.totalorder %s38, 0
    %p384 = por %p382, %p383
    %p385 = scmp.ne.s32.totalorder %s373, %s374
    %p386 = scmp.eq.s32.totalorder %s39, 1
    %p387 = por %p385, %p386
    %p389 = scmp.ne.s32.totalorder %s374, %s388
    %p390 = scmp.eq.s32.totalorder %s39, 0
    %p391 = por %p389, %p390
    %s393 = sadd.s32 %s392, 1
    %p396 = scmp.eq.s32.totalorder %s33, 1
    %p397 = scmp.ne.s32.totalorder %s392, %s394
    %p398 = scmp.eq.s32.totalorder %s33, 0
    %p399 = por %p397, %p398
    %p400 = scmp.ne.s32.totalorder %s392, %s394
    %p401 = scmp.eq.s32.totalorder %s38, 1
    %p402 = por %p400, %p401
    %p403 = scmp.ne.s32.totalorder %s394, %s395
    %p404 = scmp.eq.s32.totalorder %s38, 0
    %p405 = por %p403, %p404
    %p406 = scmp.ne.s32.totalorder %s394, %s395
    %p407 = scmp.eq.s32.totalorder %s39, 1
    %p408 = por %p406, %p407
    %p410 = scmp.ne.s32.totalorder %s395, %s409
    %p411 = scmp.eq.s32.totalorder %s39, 0
    %p412 = por %p410, %p411
    %s414 = sadd.s32 %s413, 1
    %p417 = scmp.eq.s32.totalorder %s33, 1
    %p418 = scmp.ne.s32.totalorder %s413, %s415
    %p419 = scmp.eq.s32.totalorder %s33, 0
    %p420 = por %p418, %p419
    %p421 = scmp.ne.s32.totalorder %s413, %s415
    %p422 = scmp.eq.s32.totalorder %s38, 1
    %p423 = por %p421, %p422
    %p424 = scmp.ne.s32.totalorder %s415, %s416
    %p425 = scmp.eq.s32.totalorder %s38, 0
    %p426 = por %p424, %p425
    %p427 = scmp.ne.s32.totalorder %s415, %s416
    %p428 = scmp.eq.s32.totalorder %s39, 1
    %p429 = por %p427, %p428
    %p431 = scmp.ne.s32.totalorder %s416, %s430
    %p432 = scmp.eq.s32.totalorder %s39, 0
    %p433 = por %p431, %p432
    %s435 = sadd.s32 %s434, 1
    %p438 = scmp.eq.s32.totalorder %s33, 1
    %p439 = scmp.ne.s32.totalorder %s434, %s436
    %p440 = scmp.eq.s32.totalorder %s33, 0
    %p441 = por %p439, %p440
    %p442 = scmp.ne.s32.totalorder %s434, %s436
    %p443 = scmp.eq.s32.totalorder %s38, 1
    %p444 = por %p442, %p443
    %p445 = scmp.ne.s32.totalorder %s436, %s437
    %p446 = scmp.eq.s32.totalorder %s38, 0
    %p447 = por %p445, %p446
    %p448 = scmp.ne.s32.totalorder %s436, %s437
    %p449 = scmp.eq.s32.totalorder %s39, 1
    %p450 = por %p448, %p449
    %p452 = scmp.ne.s32.totalorder %s437, %s451
    %p453 = scmp.eq.s32.totalorder %s39, 0
    %p454 = por %p452, %p453
    %s456 = sadd.s32 %s455, 1
    %p459 = scmp.eq.s32.totalorder %s33, 1
    %p460 = scmp.ne.s32.totalorder %s455, %s457
    %p461 = scmp.eq.s32.totalorder %s33, 0
    %p462 = por %p460, %p461
    %p463 = scmp.ne.s32.totalorder %s455, %s457
    %p464 = scmp.eq.s32.totalorder %s38, 1
    %p465 = por %p463, %p464
    %p466 = scmp.ne.s32.totalorder %s457, %s458
    %p467 = scmp.eq.s32.totalorder %s38, 0
    %p468 = por %p466, %p467
    %p469 = scmp.ne.s32.totalorder %s457, %s458
    %p470 = scmp.eq.s32.totalorder %s39, 1
    %p471 = por %p469, %p470
    %p473 = scmp.ne.s32.totalorder %s458, %s472
    %p474 = scmp.eq.s32.totalorder %s39, 0
    %p475 = por %p473, %p474
    %s477 = sadd.s32 %s476, 1
    %p480 = scmp.eq.s32.totalorder %s33, 1
    %p481 = scmp.ne.s32.totalorder %s476, %s478
    %p482 = scmp.eq.s32.totalorder %s33, 0
    %p483 = por %p481, %p482
    %p484 = scmp.ne.s32.totalorder %s476, %s478
    %p485 = scmp.eq.s32.totalorder %s38, 1
    %p486 = por %p484, %p485
    %p487 = scmp.ne.s32.totalorder %s478, %s479
    %p488 = scmp.eq.s32.totalorder %s38, 0
    %p489 = por %p487, %p488
    %p490 = scmp.ne.s32.totalorder %s478, %s479
    %p491 = scmp.eq.s32.totalorder %s39, 1
    %p492 = por %p490, %p491
    %p494 = scmp.ne.s32.totalorder %s479, %s493
    %p495 = scmp.eq.s32.totalorder %s39, 0
    %p496 = por %p494, %p495
    %s498 = sadd.s32 %s497, 1
    %p501 = scmp.eq.s32.totalorder %s33, 1
    %p502 = scmp.ne.s32.totalorder %s497, %s499
    %p503 = scmp.eq.s32.totalorder %s33, 0
    %p504 = por %p502, %p503
    %p505 = scmp.ne.s32.totalorder %s497, %s499
    %p506 = scmp.eq.s32.totalorder %s38, 1
    %p507 = por %p505, %p506
    %p508 = scmp.ne.s32.totalorder %s499, %s500
    %p509 = scmp.eq.s32.totalorder %s38, 0
    %p510 = por %p508, %p509
    %p511 = scmp.ne.s32.totalorder %s499, %s500
    %p512 = scmp.eq.s32.totalorder %s39, 1
    %p513 = por %p511, %p512
    %p515 = scmp.ne.s32.totalorder %s500, %s514
    %p516 = scmp.eq.s32.totalorder %s39, 0
    %p517 = por %p515, %p516
    %s519 = sadd.s32 %s518, 1
    %p522 = scmp.eq.s32.totalorder %s33, 1
    %p523 = scmp.ne.s32.totalorder %s518, %s520
    %p524 = scmp.eq.s32.totalorder %s33, 0
    %p525 = por %p523, %p524
    %p526 = scmp.ne.s32.totalorder %s518, %s520
    %p527 = scmp.eq.s32.totalorder %s38, 1
    %p528 = por %p526, %p527
    %p529 = scmp.ne.s32.totalorder %s520, %s521
    %p530 = scmp.eq.s32.totalorder %s38, 0
    %p531 = por %p529, %p530
    %p532 = scmp.ne.s32.totalorder %s520, %s521
    %p533 = scmp.eq.s32.totalorder %s39, 1
    %p534 = por %p532, %p533
    %p536 = scmp.ne.s32.totalorder %s521, %s535
    %p537 = scmp.eq.s32.totalorder %s39, 0
    %p538 = por %p536, %p537
    %s540 = sadd.s32 %s539, 1
    %p543 = scmp.eq.s32.totalorder %s33, 1
    %p544 = scmp.ne.s32.totalorder %s539, %s541
    %p545 = scmp.eq.s32.totalorder %s33, 0
    %p546 = por %p544, %p545
    %p547 = scmp.ne.s32.totalorder %s539, %s541
    %p548 = scmp.eq.s32.totalorder %s38, 1
    %p549 = por %p547, %p548
    %p550 = scmp.ne.s32.totalorder %s541, %s542
    %p551 = scmp.eq.s32.totalorder %s38, 0
    %p552 = por %p550, %p551
    %p553 = scmp.ne.s32.totalorder %s541, %s542
    %p554 = scmp.eq.s32.totalorder %s39, 1
    %p555 = por %p553, %p554
    %p557 = scmp.ne.s32.totalorder %s542, %s556
    %p558 = scmp.eq.s32.totalorder %s39, 0
    %p559 = por %p557, %p558
    %s561 = sadd.s32 %s560, 1
    %p564 = scmp.eq.s32.totalorder %s33, 1
    %p565 = scmp.ne.s32.totalorder %s560, %s562
    %p566 = scmp.eq.s32.totalorder %s33, 0
    %p567 = por %p565, %p566
    %p568 = scmp.ne.s32.totalorder %s560, %s562
    %p569 = scmp.eq.s32.totalorder %s38, 1
    %p570 = por %p568, %p569
    %p571 = scmp.ne.s32.totalorder %s562, %s563
    %p572 = scmp.eq.s32.totalorder %s38, 0
    %p573 = por %p571, %p572
    %p574 = scmp.ne.s32.totalorder %s562, %s563
    %p575 = scmp.eq.s32.totalorder %s39, 1
    %p576 = por %p574, %p575
    %p578 = scmp.ne.s32.totalorder %s563, %s577
    %p579 = scmp.eq.s32.totalorder %s39, 0
    %p580 = por %p578, %p579
    %s582 = sadd.s32 %s581, 1
    %p585 = scmp.eq.s32.totalorder %s33, 1
    %p586 = scmp.ne.s32.totalorder %s581, %s583
    %p587 = scmp.eq.s32.totalorder %s33, 0
    %p588 = por %p586, %p587
    %p589 = scmp.ne.s32.totalorder %s581, %s583
    %p590 = scmp.eq.s32.totalorder %s38, 1
    %p591 = por %p589, %p590
    %p592 = scmp.ne.s32.totalorder %s583, %s584
    %p593 = scmp.eq.s32.totalorder %s38, 0
    %p594 = por %p592, %p593
    %p595 = scmp.ne.s32.totalorder %s583, %s584
    %p596 = scmp.eq.s32.totalorder %s39, 1
    %p597 = por %p595, %p596
    %p599 = scmp.ne.s32.totalorder %s584, %s598
    %p600 = scmp.eq.s32.totalorder %s39, 0
    %p601 = por %p599, %p600
    %s603 = sadd.s32 %s602, 1
    %p606 = scmp.eq.s32.totalorder %s33, 1
    %p607 = scmp.ne.s32.totalorder %s602, %s604
    %p608 = scmp.eq.s32.totalorder %s33, 0
    %p609 = por %p607, %p608
    %p610 = scmp.ne.s32.totalorder %s602, %s604
    %p611 = scmp.eq.s32.totalorder %s38, 1
    %p612 = por %p610, %p611
    %p613 = scmp.ne.s32.totalorder %s604, %s605
    %p614 = scmp.eq.s32.totalorder %s38, 0
    %p615 = por %p613, %p614
    %p616 = scmp.ne.s32.totalorder %s604, %s605
    %p617 = scmp.eq.s32.totalorder %s39, 1
    %p618 = por %p616, %p617
    %p620 = scmp.ne.s32.totalorder %s605, %s619
    %p621 = scmp.eq.s32.totalorder %s39, 0
    %p622 = por %p620, %p621
    %s623 = ssub.s32 %s33, %s40
    %p624 = scmp.eq.s32.totalorder %s623, 0
    %s626 = sadd.s32 %s625, 1
    %s627 = scalar_select %p624, %s625, %s626
    %p630 = pneg %p624
    %p631 = scmp.eq.s32.totalorder %s33, 1
    %p632 = por %p630, %p631
    %p633 = scmp.ne.s32.totalorder %s625, %s628
    %p634 = scmp.eq.s32.totalorder %s33, 0
    %p635 = por %p633, %p634
    %p636 = scmp.ne.s32.totalorder %s625, %s628
    %p637 = scmp.eq.s32.totalorder %s38, 1
    %p638 = por %p636, %p637
    %p639 = scmp.ne.s32.totalorder %s628, %s629
    %p640 = scmp.eq.s32.totalorder %s38, 0
    %p641 = por %p639, %p640
    %p642 = scmp.ne.s32.totalorder %s628, %s629
    %p643 = scmp.eq.s32.totalorder %s39, 1
    %p644 = por %p642, %p643
    %p646 = scmp.ne.s32.totalorder %s629, %s645
    %p647 = scmp.eq.s32.totalorder %s39, 0
    %p648 = por %p646, %p647
    %p649 = scmp.le.s32.totalorder 1, %s33
    %p650 = scmp.lt.s32.totalorder %s33, 3
    %p651 = pnand %p649, %p650
    %p652 = pneg %p651
    // Predicated region
    $region9: #{bert_ner_forward.1} parent=5 // pred_check
      _
    $region10: #{bert_ner_forward.1} parent=5 // pred_check_branch
      %654 = sbr.rel (%p651) target = $region12
    $region11: #{bert_ner_forward.1} parent=5 // pred_region
      %s655 = ssub.s32 %s33, 1
      // Predicated region
      $region13: #{bert_ner_forward.1} parent=11 // pred_check
        %p656 = pneg %p132
      $region14: #{bert_ner_forward.1} parent=11 // pred_check_branch
        %658 = sbr.rel (%p656) target = $region16
      $region15: #{bert_ner_forward.1} parent=11 // pred_region
        _
      $region16: #{bert_ner_forward.1} parent=11 // pred_fallthru
        _
      // Predicated region
      $region17: #{bert_ner_forward.1} parent=11 // pred_check
        %p659 = pneg %p153
      $region18: #{bert_ner_forward.1} parent=11 // pred_check_branch
        %661 = sbr.rel (%p659) target = $region20
      $region19: #{bert_ner_forward.1} parent=11 // pred_region
        _
      $region20: #{bert_ner_forward.1} parent=11 // pred_fallthru
        _
      // Predicated region
      $region21: #{bert_ner_forward.1} parent=11 // pred_check
        %p662 = pneg %p174
      $region22: #{bert_ner_forward.1} parent=11 // pred_check_branch
        %664 = sbr.rel (%p662) target = $region24
      $region23: #{bert_ner_forward.1} parent=11 // pred_region
        _
      $region24: #{bert_ner_forward.1} parent=11 // pred_fallthru
        _
      // Predicated region
      $region25: #{bert_ner_forward.1} parent=11 // pred_check
        %p665 = pneg %p195
      $region26: #{bert_ner_forward.1} parent=11 // pred_check_branch
        %667 = sbr.rel (%p665) target = $region28
      $region27: #{bert_ner_forward.1} parent=11 // pred_region
        _
      $region28: #{bert_ner_forward.1} parent=11 // pred_fallthru
        _
      // Predicated region
      $region29: #{bert_ner_forward.1} parent=11 // pred_check
        %p668 = pneg %p216
      $region30: #{bert_ner_forward.1} parent=11 // pred_check_branch
        %670 = sbr.rel (%p668) target = $region32
      $region31: #{bert_ner_forward.1} parent=11 // pred_region
        _
      $region32: #{bert_ner_forward.1} parent=11 // pred_fallthru
        _
      // Predicated region
      $region33: #{bert_ner_forward.1} parent=11 // pred_check
        %p671 = pneg %p237
      $region34: #{bert_ner_forward.1} parent=11 // pred_check_branch
        %673 = sbr.rel (%p671) target = $region36
      $region35: #{bert_ner_forward.1} parent=11 // pred_region
        _
      $region36: #{bert_ner_forward.1} parent=11 // pred_fallthru
        _
      // Predicated region
      $region37: #{bert_ner_forward.1} parent=11 // pred_check
        %p674 = pneg %p258
      $region38: #{bert_ner_forward.1} parent=11 // pred_check_branch
        %676 = sbr.rel (%p674) target = $region40
      $region39: #{bert_ner_forward.1} parent=11 // pred_region
        _
      $region40: #{bert_ner_forward.1} parent=11 // pred_fallthru
        _
      // Predicated region
      $region41: #{bert_ner_forward.1} parent=11 // pred_check
        %p677 = pneg %p279
      $region42: #{bert_ner_forward.1} parent=11 // pred_check_branch
        %679 = sbr.rel (%p677) target = $region44
      $region43: #{bert_ner_forward.1} parent=11 // pred_region
        _
      $region44: #{bert_ner_forward.1} parent=11 // pred_fallthru
        _
      // Predicated region
      $region45: #{bert_ner_forward.1} parent=11 // pred_check
        %p680 = pneg %p300
      $region46: #{bert_ner_forward.1} parent=11 // pred_check_branch
        %682 = sbr.rel (%p680) target = $region48
      $region47: #{bert_ner_forward.1} parent=11 // pred_region
        _
      $region48: #{bert_ner_forward.1} parent=11 // pred_fallthru
        _
      // Predicated region
      $region49: #{bert_ner_forward.1} parent=11 // pred_check
        %p683 = pneg %p321
      $region50: #{bert_ner_forward.1} parent=11 // pred_check_branch
        %685 = sbr.rel (%p683) target = $region52
      $region51: #{bert_ner_forward.1} parent=11 // pred_region
        _
      $region52: #{bert_ner_forward.1} parent=11 // pred_fallthru
        _
      // Predicated region
      $region53: #{bert_ner_forward.1} parent=11 // pred_check
        %p686 = pneg %p342
      $region54: #{bert_ner_forward.1} parent=11 // pred_check_branch
        %688 = sbr.rel (%p686) target = $region56
      $region55: #{bert_ner_forward.1} parent=11 // pred_region
        _
      $region56: #{bert_ner_forward.1} parent=11 // pred_fallthru
        _
      // Predicated region
      $region57: #{bert_ner_forward.1} parent=11 // pred_check
        %p689 = pneg %p363
      $region58: #{bert_ner_forward.1} parent=11 // pred_check_branch
        %691 = sbr.rel (%p689) target = $region60
      $region59: #{bert_ner_forward.1} parent=11 // pred_region
        _
      $region60: #{bert_ner_forward.1} parent=11 // pred_fallthru
        _
      // Predicated region
      $region61: #{bert_ner_forward.1} parent=11 // pred_check
        %p692 = pneg %p384
      $region62: #{bert_ner_forward.1} parent=11 // pred_check_branch
        %694 = sbr.rel (%p692) target = $region64
      $region63: #{bert_ner_forward.1} parent=11 // pred_region
        _
      $region64: #{bert_ner_forward.1} parent=11 // pred_fallthru
        _
      // Predicated region
      $region65: #{bert_ner_forward.1} parent=11 // pred_check
        %p695 = pneg %p405
      $region66: #{bert_ner_forward.1} parent=11 // pred_check_branch
        %697 = sbr.rel (%p695) target = $region68
      $region67: #{bert_ner_forward.1} parent=11 // pred_region
        _
      $region68: #{bert_ner_forward.1} parent=11 // pred_fallthru
        _
      // Predicated region
      $region69: #{bert_ner_forward.1} parent=11 // pred_check
        %p698 = pneg %p426
      $region70: #{bert_ner_forward.1} parent=11 // pred_check_branch
        %700 = sbr.rel (%p698) target = $region72
      $region71: #{bert_ner_forward.1} parent=11 // pred_region
        _
      $region72: #{bert_ner_forward.1} parent=11 // pred_fallthru
        _
      // Predicated region
      $region73: #{bert_ner_forward.1} parent=11 // pred_check
        %p701 = pneg %p447
      $region74: #{bert_ner_forward.1} parent=11 // pred_check_branch
        %703 = sbr.rel (%p701) target = $region76
      $region75: #{bert_ner_forward.1} parent=11 // pred_region
        _
      $region76: #{bert_ner_forward.1} parent=11 // pred_fallthru
        _
      // Predicated region
      $region77: #{bert_ner_forward.1} parent=11 // pred_check
        %p704 = pneg %p468
      $region78: #{bert_ner_forward.1} parent=11 // pred_check_branch
        %706 = sbr.rel (%p704) target = $region80
      $region79: #{bert_ner_forward.1} parent=11 // pred_region
        _
      $region80: #{bert_ner_forward.1} parent=11 // pred_fallthru
        _
      // Predicated region
      $region81: #{bert_ner_forward.1} parent=11 // pred_check
        %p707 = pneg %p489
      $region82: #{bert_ner_forward.1} parent=11 // pred_check_branch
        %709 = sbr.rel (%p707) target = $region84
      $region83: #{bert_ner_forward.1} parent=11 // pred_region
        _
      $region84: #{bert_ner_forward.1} parent=11 // pred_fallthru
        _
      // Predicated region
      $region85: #{bert_ner_forward.1} parent=11 // pred_check
        %p710 = pneg %p510
      $region86: #{bert_ner_forward.1} parent=11 // pred_check_branch
        %712 = sbr.rel (%p710) target = $region88
      $region87: #{bert_ner_forward.1} parent=11 // pred_region
        _
      $region88: #{bert_ner_forward.1} parent=11 // pred_fallthru
        _
      // Predicated region
      $region89: #{bert_ner_forward.1} parent=11 // pred_check
        %p713 = pneg %p531
      $region90: #{bert_ner_forward.1} parent=11 // pred_check_branch
        %715 = sbr.rel (%p713) target = $region92
      $region91: #{bert_ner_forward.1} parent=11 // pred_region
        _
      $region92: #{bert_ner_forward.1} parent=11 // pred_fallthru
        _
      // Predicated region
      $region93: #{bert_ner_forward.1} parent=11 // pred_check
        %p716 = pneg %p552
      $region94: #{bert_ner_forward.1} parent=11 // pred_check_branch
        %718 = sbr.rel (%p716) target = $region96
      $region95: #{bert_ner_forward.1} parent=11 // pred_region
        _
      $region96: #{bert_ner_forward.1} parent=11 // pred_fallthru
        _
      // Predicated region
      $region97: #{bert_ner_forward.1} parent=11 // pred_check
        %p719 = pneg %p573
      $region98: #{bert_ner_forward.1} parent=11 // pred_check_branch
        %721 = sbr.rel (%p719) target = $region100
      $region99: #{bert_ner_forward.1} parent=11 // pred_region
        _
      $region100: #{bert_ner_forward.1} parent=11 // pred_fallthru
        _
      // Predicated region
      $region101: #{bert_ner_forward.1} parent=11 // pred_check
        %p722 = pneg %p594
      $region102: #{bert_ner_forward.1} parent=11 // pred_check_branch
        %724 = sbr.rel (%p722) target = $region104
      $region103: #{bert_ner_forward.1} parent=11 // pred_region
        _
      $region104: #{bert_ner_forward.1} parent=11 // pred_fallthru
        _
      // Predicated region
      $region105: #{bert_ner_forward.1} parent=11 // pred_check
        %p725 = pneg %p615
      $region106: #{bert_ner_forward.1} parent=11 // pred_check_branch
        %727 = sbr.rel (%p725) target = $region108
      $region107: #{bert_ner_forward.1} parent=11 // pred_region
        _
      $region108: #{bert_ner_forward.1} parent=11 // pred_fallthru
        _
    $region12: #{bert_ner_forward.1} parent=5 // pred_fallthru
      _
    %p728 = scmp.lt.s32.totalorder %s33, 2
    // Predicated region
    $region109: #{bert_ner_forward.1} parent=5 // pred_check
      %p729 = pneg %p728
    $region110: #{bert_ner_forward.1} parent=5 // pred_check_branch
      %731 = sbr.rel (%p729) target = $region112
    $region111: #{bert_ner_forward.1} parent=5 // pred_region
      // Predicated region
      $region113: #{bert_ner_forward.1} parent=111 // pred_check
        %p732 = pneg %p53
      $region114: #{bert_ner_forward.1} parent=111 // pred_check_branch
        %734 = sbr.rel (%p732) target = $region116
      $region115: #{bert_ner_forward.1} parent=111 // pred_region
        %p735 = scmp.lt.s32.totalorder %s33, 1
        %s736 = scalar_select %p735, %s33, 1
        %s737 = smul.addr %s736, 8
        %s738 = scalar_lea.vmem %s0, %s737
      $region116: #{bert_ner_forward.1} parent=111 // pred_fallthru
        _
      // Predicated region
      $region117: #{bert_ner_forward.1} parent=111 // pred_check
        %p739 = pneg %p79
      $region118: #{bert_ner_forward.1} parent=111 // pred_check_branch
        %741 = sbr.rel (%p739) target = $region120
      $region119: #{bert_ner_forward.1} parent=111 // pred_region
        %p742 = scmp.lt.s32.totalorder %s33, 1
        %s743 = scalar_select %p742, %s33, 1
        %s744 = scalar_lea.vmem %s1, %s743
      $region120: #{bert_ner_forward.1} parent=111 // pred_fallthru
        _
      // Predicated region
      $region121: #{bert_ner_forward.1} parent=111 // pred_check
        %p745 = pneg %p105
      $region122: #{bert_ner_forward.1} parent=111 // pred_check_branch
        %747 = sbr.rel (%p745) target = $region124
      $region123: #{bert_ner_forward.1} parent=111 // pred_region
        %p748 = scmp.lt.s32.totalorder %s33, 1
        %s749 = scalar_select %p748, %s33, 1
        %s750 = smul.addr %s749, 8
        %s751 = scalar_lea.vmem %s2, %s750
      $region124: #{bert_ner_forward.1} parent=111 // pred_fallthru
        _
    $region112: #{bert_ner_forward.1} parent=5 // pred_fallthru
      _
    %p752 = scmp.le.s32.totalorder 1, %s33
    %p753 = scmp.lt.s32.totalorder %s33, 3
    %p754 = pnand %p752, %p753
    %p755 = pneg %p754
    // Predicated region
    $region125: #{bert_ner_forward.1} parent=5 // pred_check
      _
    $region126: #{bert_ner_forward.1} parent=5 // pred_check_branch
      %757 = sbr.rel (%p754) target = $region128
    $region127: #{bert_ner_forward.1} parent=5 // pred_region
      %s758 = ssub.s32 %s33, 1
      %p759 = scmp.lt.s32.totalorder %s38, 1
      %s760 = scalar_select %p759, %s38, 1
      %s761 = smul.addr %s760, 8
      %s762 = scalar_lea.vmem %s0, %s761
      %p763 = pneg %p59
      %p764 = pneg %p56
      %p765 = scmp.lt.s32.totalorder %s38, 1
      %s766 = scalar_select %p765, %s38, 1
      %s767 = scalar_lea.vmem %s1, %s766
      %p768 = pneg %p85
      %p769 = pneg %p82
      %p770 = scmp.lt.s32.totalorder %s38, 1
      %s771 = scalar_select %p770, %s38, 1
      %s772 = smul.addr %s771, 8
      %s773 = scalar_lea.vmem %s2, %s772
      %p774 = pneg %p111
      %p775 = pneg %p108
      %p776 = pneg %p132
      %p777 = pneg %p129
      %p778 = pneg %p153
      %p779 = pneg %p150
      %p780 = pneg %p174
      %p781 = pneg %p171
      %p782 = pneg %p195
      %p783 = pneg %p192
      %p784 = pneg %p216
      %p785 = pneg %p213
      %p786 = pneg %p237
      %p787 = pneg %p234
      %p788 = pneg %p258
      %p789 = pneg %p255
      %p790 = pneg %p279
      %p791 = pneg %p276
      %p792 = pneg %p300
      %p793 = pneg %p297
      %p794 = pneg %p321
      %p795 = pneg %p318
      %p796 = pneg %p342
      %p797 = pneg %p339
      %p798 = pneg %p363
      %p799 = pneg %p360
      %p800 = pneg %p384
      %p801 = pneg %p381
      %p802 = pneg %p405
      %p803 = pneg %p402
      %p804 = pneg %p426
      %p805 = pneg %p423
      %p806 = pneg %p447
      %p807 = pneg %p444
      %p808 = pneg %p468
      %p809 = pneg %p465
      %p810 = pneg %p489
      %p811 = pneg %p486
      %p812 = pneg %p510
      %p813 = pneg %p507
      %p814 = pneg %p531
      %p815 = pneg %p528
      %p816 = pneg %p552
      %p817 = pneg %p549
      %p818 = pneg %p573
      %p819 = pneg %p570
      %p820 = pneg %p594
      %p821 = pneg %p591
      %p822 = pneg %p615
      %p823 = pneg %p612
      %p824 = pneg %p641
      %p825 = pneg %p638
      %p826 = scmp.lt.s32.totalorder %s38, 1
      %s827 = scalar_select %p826, %s38, 1
      %s828 = smul.addr %s827, 8
      %s829 = scalar_lea.vmem %s27, %s828
      %p830 = scmp.lt.s32.totalorder %s38, 1
      %s831 = scalar_select %p830, %s38, 1
      %s832 = smul.addr %s831, 8
      %s833 = scalar_lea.vmem %s0, %s832
      %p834 = scmp.lt.s32.totalorder %s38, 1
      %s835 = scalar_select %p834, %s38, 1
      %s836 = scalar_lea.vmem %s1, %s835
      %p837 = scmp.lt.s32.totalorder %s38, 1
      %s838 = scalar_select %p837, %s38, 1
      %s839 = smul.addr %s838, 8
      %s840 = scalar_lea.vmem %s2, %s839
      %p841 = scmp.lt.s32.totalorder %s38, 1
      %s842 = scalar_select %p841, %s38, 1
      %s843 = smul.addr %s842, 8
      %s844 = scalar_lea.vmem %s27, %s843
      %v846 = vld [vmem:[%s833] sm:$0xff]
      %v847 = vlaneseq
      %v848 = vand.u32 %v847, 127
      %849 = vset.pattern.permute.xlu0 0
      %850 = vperm.xlu0 %849, %v846
      %v851 = vpop.permute.xlu0 %850
      %vm852 = vcmp.eq.s32.totalorder %v848, %v851
      %v853 = vsel %vm852, 1, 0
      %v854 = vcvt.s32.f32 %v853
      %v855 = vpack.c.bf16 %v854, %v854
      %v856 = vld [vmem:[%s3] sm:$0xf]
      %v857 = vld [vmem:[%s3 + $0x4] sm:$0xf]
      %v858 = vld [vmem:[%s3 + $0x8] sm:$0xf]
      %v859 = vld [vmem:[%s3 + $0xc] sm:$0xf]
      %v860 = vld [vmem:[%s3 + $0x10] sm:$0xf]
      %v861 = vld [vmem:[%s3 + $0x14] sm:$0xf]
      %v862 = vld [vmem:[%s3 + $0x18] sm:$0xf]
      %v863 = vld [vmem:[%s3 + $0x1c] sm:$0xf]
      %v864 = vld [vmem:[%s3 + $0x20] sm:$0xf]
      %v865 = vld [vmem:[%s3 + $0x24] sm:$0xf]
      %v866 = vld [vmem:[%s3 + $0x28] sm:$0xf]
      %v867 = vld [vmem:[%s3 + $0x2c] sm:$0xf]
      %v868 = vld [vmem:[%s3 + $0x30] sm:$0xf]
      %v869 = vld [vmem:[%s3 + $0x34] sm:$0xf]
      %v870 = vld [vmem:[%s3 + $0x38] sm:$0xf]
      %v871 = vld [vmem:[%s3 + $0x3c] sm:$0xf]
      %v872 = vld [vmem:[%s4] sm:$0xff]
      %v889 = vunpack.c.l.b16 %v856
      %v890 = vunpack.c.l.b16 %v857
      %v891 = vunpack.c.l.b16 %v858
      %v892 = vunpack.c.l.b16 %v859
      %v893 = vunpack.c.l.b16 %v860
      %v894 = vunpack.c.l.b16 %v861
      %v895 = vunpack.c.l.b16 %v862
      %v896 = vunpack.c.l.b16 %v863
      %v897 = vunpack.c.l.b16 %v864
      %v898 = vunpack.c.l.b16 %v865
      %v899 = vunpack.c.l.b16 %v866
      %v900 = vunpack.c.l.b16 %v867
      %v901 = vunpack.c.l.b16 %v868
      %v902 = vunpack.c.l.b16 %v869
      %v903 = vunpack.c.l.b16 %v870
      %v904 = vunpack.c.l.b16 %v871
      %v905 = vpack.c.b16 %v890, %v889
      %v906 = vpack.c.b16 %v892, %v891
      %v907 = vpack.c.b16 %v894, %v893
      %v908 = vpack.c.b16 %v896, %v895
      %v909 = vpack.c.b16 %v898, %v897
      %v910 = vpack.c.b16 %v900, %v899
      %v911 = vpack.c.b16 %v902, %v901
      %v912 = vpack.c.b16 %v904, %v903
      %921 = vmatprep.subr.bf16.mxu0 0
      %922 = vmatpush1.bf16.msra.mxu0 %v912
      %923 = vmatprep.subr.bf16.mxu0 0
      %924 = vmatpush1.bf16.msra.mxu0 %v911
      %925 = vmatprep.subr.bf16.mxu0 0
      %926 = vmatpush1.bf16.msra.mxu0 %v910
      %927 = vmatprep.subr.bf16.mxu0 0
      %928 = vmatpush1.bf16.msra.mxu0 %v909
      %929 = vmatprep.subr.bf16.mxu0 0
      %930 = vmatpush1.bf16.msra.mxu0 %v908
      %931 = vmatprep.subr.bf16.mxu0 0
      %932 = vmatpush1.bf16.msra.mxu0 %v907
      %933 = vmatprep.subr.bf16.mxu0 0
      %934 = vmatpush1.bf16.msra.mxu0 %v906
      %935 = vmatprep.subr.bf16.mxu0 0
      %936 = vmatpush1.bf16.msra.mxu0 %v905
      %937 = vmatprep.subr.bf16.mxu0 0
      %938 = vmatpush2.bf16.msra.mxu0 0
      %939 = vmatprep.subr.bf16.mxu0 0
      %940 = vmatpush2.bf16.msra.mxu0 0
      %941 = vmatprep.subr.bf16.mxu0 0
      %942 = vmatpush2.bf16.msra.mxu0 0
      %943 = vmatprep.subr.bf16.mxu0 0
      %944 = vmatpush2.bf16.msra.mxu0 0
      %945 = vmatprep.subr.bf16.mxu0 0
      %946 = vmatpush2.bf16.msra.mxu0 0
      %947 = vmatprep.subr.bf16.mxu0 0
      %948 = vmatpush2.bf16.msra.mxu0 0
      %949 = vmatprep.subr.bf16.mxu0 0
      %950 = vmatpush2.bf16.msra.mxu0 0
      %951 = vmatprep.subr.bf16.mxu0 0
      %952 = vmatpush2.bf16.msra.mxu0 0
      %953 = vmatprep.mubr.bf16.mxu0 0
      %954 = vmatmul.mubr.bf16.gmra.mxu0 %v855
      %v955 = vpop.f32.mrf.mxu0
      %v956 = vadd.f32 %v872, %v955
      %v957 = vpop.f32.mrf.mxu0
      %v958 = vpop.f32.mrf.mxu0
      %v959 = vpop.f32.mrf.mxu0
      %960 = vdwg.mxu0
      %v961 = vld [vmem:[%s5] sm:$0x1]
      %v962 = vld [vmem:[%s6] sm:$0x1]
      %vm963 = vcmask 261120
      %v964 = vsel %vm963, %v956, 0.0
      %965 = vadd.xlane.f32.xlu0 %v964
      %v966 = vpop.xlane.xlu0 %965
      %v967 = vrcp.pop 32.0
      %v968 = vmul.f32 %v966, %v967
      %v969 = vsub.f32 %v956, %v968
      %v970 = vmul.f32 %v969, %v969
      %v971 = vsel %vm963, %v970, 0.0
      %972 = vadd.xlane.f32.xlu0 %v971
      %v973 = vpop.xlane.xlu0 %972
      %v974 = vmul.f32 %v973, %v967
      %v975 = vadd.f32 %v974, 1e-12
      %v976 = vrsqrt.pop %v975
      %v977 = vmul.f32 %v969, %v976
      %v979 = vlaneseq
      %v980 = vshrl.u32 %v979, 7
      %v981 = vsub.s32 0, %v980
      %v982 = vrot.slane %v961, %v981
      %v984 = vmul.f32 %v977, %v982
      %v986 = vlaneseq
      %v987 = vshrl.u32 %v986, 7
      %v988 = vsub.s32 0, %v987
      %v989 = vrot.slane %v962, %v988
      %v991 = vadd.f32 %v984, %v989
      %v992 = vld [vmem:[%s836] sm:$0x1]
      %993 = vset.pattern.permute.xlu0 0
      %994 = vperm.xlu0 %993, %v992
      %v995 = vpop.permute.xlu0 %994
      %v996 = vlaneseq
      %v997 = vshrl.u32 %v996, 7
      %v998 = vsub.s32 0, %v997
      %v999 = vrot.slane %v995, %v998
      %vm1000 = vcmp.lt.s32.totalorder %v848, %v999
      %v1001 = vsel %vm1000, 0.0, -1e+09
      %v1002 = vpack.c.bf16 %v991, %v991
      %v1003 = vld [vmem:[%s7] sm:$0xf]
      %v1004 = vld [vmem:[%s7 + $0x4] sm:$0xf]
      %v1005 = vld [vmem:[%s7 + $0x8] sm:$0xf]
      %v1006 = vld [vmem:[%s7 + $0xc] sm:$0xf]
      %v1007 = vld [vmem:[%s7 + $0x10] sm:$0xf]
      %v1008 = vld [vmem:[%s7 + $0x14] sm:$0xf]
      %v1009 = vld [vmem:[%s7 + $0x18] sm:$0xf]
      %v1010 = vld [vmem:[%s7 + $0x1c] sm:$0xf]
      %v1011 = vld [vmem:[%s7 + $0x20] sm:$0xf]
      %v1012 = vld [vmem:[%s7 + $0x24] sm:$0xf]
      %v1013 = vld [vmem:[%s7 + $0x28] sm:$0xf]
      %v1014 = vld [vmem:[%s7 + $0x2c] sm:$0xf]
      %v1015 = vld [vmem:[%s7 + $0x30] sm:$0xf]
      %v1016 = vld [vmem:[%s7 + $0x34] sm:$0xf]
      %v1017 = vld [vmem:[%s7 + $0x38] sm:$0xf]
      %v1018 = vld [vmem:[%s7 + $0x3c] sm:$0xf]
      %v1019 = vld [vmem:[%s10] sm:$0x1]
      %v1020 = vld [vmem:[%s10 + $0x1] sm:$0x1]
      %v1021 = vld [vmem:[%s10 + $0x2] sm:$0x1]
      %v1022 = vld [vmem:[%s10 + $0x3] sm:$0x1]
      %v1027 = vlaneseq
      %v1028 = vshrl.u32 %v1027, 7
      %v1029 = vsub.s32 0, %v1028
      %v1030 = vrot.slane %v1019, %v1029
      %v1031 = vlaneseq
      %v1032 = vshrl.u32 %v1031, 7
      %v1033 = vsub.s32 0, %v1032
      %v1034 = vrot.slane %v1020, %v1033
      %v1035 = vlaneseq
      %v1036 = vshrl.u32 %v1035, 7
      %v1037 = vsub.s32 0, %v1036
      %v1038 = vrot.slane %v1021, %v1037
      %v1039 = vlaneseq
      %v1040 = vshrl.u32 %v1039, 7
      %v1041 = vsub.s32 0, %v1040
      %v1042 = vrot.slane %v1022, %v1041
      %v1051 = vunpack.c.l.b16 %v1003
      %v1052 = vunpack.c.l.b16 %v1004
      %v1053 = vunpack.c.l.b16 %v1005
      %v1054 = vunpack.c.l.b16 %v1006
      %v1055 = vpack.c.b16 %v1052, %v1051
      %v1056 = vpack.c.b16 %v1054, %v1053
      %v1060 = vsel %vm963, %v1002, 0
      %1062 = vmatprep.subr.bf16.mxu0 0
      %1063 = vmatpush1.bf16.msra.mxu0 0
      %1064 = vmatprep.subr.bf16.mxu0 0
      %1065 = vmatpush1.bf16.msra.mxu0 0
      %1066 = vmatprep.subr.bf16.mxu0 0
      %1067 = vmatpush1.bf16.msra.mxu0 0
      %1068 = vmatprep.subr.bf16.mxu0 0
      %1069 = vmatpush1.bf16.msra.mxu0 0
      %1070 = vmatprep.subr.bf16.mxu0 0
      %1071 = vmatpush1.bf16.msra.mxu0 0
      %1072 = vmatprep.subr.bf16.mxu0 0
      %1073 = vmatpush1.bf16.msra.mxu0 0
      %1074 = vmatprep.subr.bf16.mxu0 0
      %1075 = vmatpush1.bf16.msra.mxu0 %v1056
      %1076 = vmatprep.subr.bf16.mxu0 0
      %1077 = vmatpush1.bf16.msra.mxu0 %v1055
      %1078 = vmatprep.subr.bf16.mxu0 0
      %1079 = vmatpush2.bf16.msra.mxu0 0
      %1080 = vmatprep.subr.bf16.mxu0 0
      %1081 = vmatpush2.bf16.msra.mxu0 0
      %1082 = vmatprep.subr.bf16.mxu0 0
      %1083 = vmatpush2.bf16.msra.mxu0 0
      %1084 = vmatprep.subr.bf16.mxu0 0
      %1085 = vmatpush2.bf16.msra.mxu0 0
      %1086 = vmatprep.subr.bf16.mxu0 0
      %1087 = vmatpush2.bf16.msra.mxu0 0
      %1088 = vmatprep.subr.bf16.mxu0 0
      %1089 = vmatpush2.bf16.msra.mxu0 0
      %1090 = vmatprep.subr.bf16.mxu0 0
      %1091 = vmatpush2.bf16.msra.mxu0 0
      %1092 = vmatprep.subr.bf16.mxu0 0
      %1093 = vmatpush2.bf16.msra.mxu0 0
      %1094 = vmatprep.mubr.bf16.mxu0 0
      %1095 = vmatmul.mubr.bf16.gmra.mxu0 %v1060
      %v1096 = vpop.f32.mrf.mxu0
      %v1097 = vadd.f32 %v1030, %v1096
      %v1098 = vpop.f32.mrf.mxu0
      %v1099 = vpop.f32.mrf.mxu0
      %v1100 = vpop.f32.mrf.mxu0
      %1101 = vdwg.mxu0
      %v1106 = vunpack.c.l.b16 %v1007
      %v1107 = vunpack.c.l.b16 %v1008
      %v1108 = vunpack.c.l.b16 %v1009
      %v1109 = vunpack.c.l.b16 %v1010
      %v1110 = vpack.c.b16 %v1107, %v1106
      %v1111 = vpack.c.b16 %v1109, %v1108
      %1114 = vmatprep.subr.bf16.mxu0 0
      %1115 = vmatpush1.bf16.msra.mxu0 0
      %1116 = vmatprep.subr.bf16.mxu0 0
      %1117 = vmatpush1.bf16.msra.mxu0 0
      %1118 = vmatprep.subr.bf16.mxu0 0
      %1119 = vmatpush1.bf16.msra.mxu0 0
      %1120 = vmatprep.subr.bf16.mxu0 0
      %1121 = vmatpush1.bf16.msra.mxu0 0
      %1122 = vmatprep.subr.bf16.mxu0 0
      %1123 = vmatpush1.bf16.msra.mxu0 0
      %1124 = vmatprep.subr.bf16.mxu0 0
      %1125 = vmatpush1.bf16.msra.mxu0 0
      %1126 = vmatprep.subr.bf16.mxu0 0
      %1127 = vmatpush1.bf16.msra.mxu0 %v1111
      %1128 = vmatprep.subr.bf16.mxu0 0
      %1129 = vmatpush1.bf16.msra.mxu0 %v1110
      %1130 = vmatprep.subr.bf16.mxu0 0
      %1131 = vmatpush2.bf16.msra.mxu0 0
      %1132 = vmatprep.subr.bf16.mxu0 0
      %1133 = vmatpush2.bf16.msra.mxu0 0
      %1134 = vmatprep.subr.bf16.mxu0 0
      %1135 = vmatpush2.bf16.msra.mxu0 0
      %1136 = vmatprep.subr.bf16.mxu0 0
      %1137 = vmatpush2.bf16.msra.mxu0 0
      %1138 = vmatprep.subr.bf16.mxu0 0
      %1139 = vmatpush2.bf16.msra.mxu0 0
      %1140 = vmatprep.subr.bf16.mxu0 0
      %1141 = vmatpush2.bf16.msra.mxu0 0
      %1142 = vmatprep.subr.bf16.mxu0 0
      %1143 = vmatpush2.bf16.msra.mxu0 0
      %1144 = vmatprep.subr.bf16.mxu0 0
      %1145 = vmatpush2.bf16.msra.mxu0 0
      %1146 = vmatprep.mubr.bf16.mxu0 0
      %1147 = vmatmul.mubr.bf16.gmra.mxu0 %v1060
      %v1148 = vpop.f32.mrf.mxu0
      %v1149 = vadd.f32 %v1034, %v1148
      %v1150 = vpop.f32.mrf.mxu0
      %v1151 = vpop.f32.mrf.mxu0
      %v1152 = vpop.f32.mrf.mxu0
      %1153 = vdwg.mxu0
      %v1158 = vunpack.c.l.b16 %v1011
      %v1159 = vunpack.c.l.b16 %v1012
      %v1160 = vunpack.c.l.b16 %v1013
      %v1161 = vunpack.c.l.b16 %v1014
      %v1162 = vpack.c.b16 %v1159, %v1158
      %v1163 = vpack.c.b16 %v1161, %v1160
      %1166 = vmatprep.subr.bf16.mxu0 0
      %1167 = vmatpush1.bf16.msra.mxu0 0
      %1168 = vmatprep.subr.bf16.mxu0 0
      %1169 = vmatpush1.bf16.msra.mxu0 0
      %1170 = vmatprep.subr.bf16.mxu0 0
      %1171 = vmatpush1.bf16.msra.mxu0 0
      %1172 = vmatprep.subr.bf16.mxu0 0
      %1173 = vmatpush1.bf16.msra.mxu0 0
      %1174 = vmatprep.subr.bf16.mxu0 0
      %1175 = vmatpush1.bf16.msra.mxu0 0
      %1176 = vmatprep.subr.bf16.mxu0 0
      %1177 = vmatpush1.bf16.msra.mxu0 0
      %1178 = vmatprep.subr.bf16.mxu0 0
      %1179 = vmatpush1.bf16.msra.mxu0 %v1163
      %1180 = vmatprep.subr.bf16.mxu0 0
      %1181 = vmatpush1.bf16.msra.mxu0 %v1162
      %1182 = vmatprep.subr.bf16.mxu0 0
      %1183 = vmatpush2.bf16.msra.mxu0 0
      %1184 = vmatprep.subr.bf16.mxu0 0
      %1185 = vmatpush2.bf16.msra.mxu0 0
      %1186 = vmatprep.subr.bf16.mxu0 0
      %1187 = vmatpush2.bf16.msra.mxu0 0
      %1188 = vmatprep.subr.bf16.mxu0 0
      %1189 = vmatpush2.bf16.msra.mxu0 0
      %1190 = vmatprep.subr.bf16.mxu0 0
      %1191 = vmatpush2.bf16.msra.mxu0 0
      %1192 = vmatprep.subr.bf16.mxu0 0
      %1193 = vmatpush2.bf16.msra.mxu0 0
      %1194 = vmatprep.subr.bf16.mxu0 0
      %1195 = vmatpush2.bf16.msra.mxu0 0
      %1196 = vmatprep.subr.bf16.mxu0 0
      %1197 = vmatpush2.bf16.msra.mxu0 0
      %1198 = vmatprep.mubr.bf16.mxu0 0
      %1199 = vmatmul.mubr.bf16.gmra.mxu0 %v1060
      %v1200 = vpop.f32.mrf.mxu0
      %v1201 = vadd.f32 %v1038, %v1200
      %v1202 = vpop.f32.mrf.mxu0
      %v1203 = vpop.f32.mrf.mxu0
      %v1204 = vpop.f32.mrf.mxu0
      %1205 = vdwg.mxu0
      %v1210 = vunpack.c.l.b16 %v1015
      %v1211 = vunpack.c.l.b16 %v1016
      %v1212 = vunpack.c.l.b16 %v1017
      %v1213 = vunpack.c.l.b16 %v1018
      %v1214 = vpack.c.b16 %v1211, %v1210
      %v1215 = vpack.c.b16 %v1213, %v1212
      %1218 = vmatprep.subr.bf16.mxu0 0
      %1219 = vmatpush1.bf16.msra.mxu0 0
      %1220 = vmatprep.subr.bf16.mxu0 0
      %1221 = vmatpush1.bf16.msra.mxu0 0
      %1222 = vmatprep.subr.bf16.mxu0 0
      %1223 = vmatpush1.bf16.msra.mxu0 0
      %1224 = vmatprep.subr.bf16.mxu0 0
      %1225 = vmatpush1.bf16.msra.mxu0 0
      %1226 = vmatprep.subr.bf16.mxu0 0
      %1227 = vmatpush1.bf16.msra.mxu0 0
      %1228 = vmatprep.subr.bf16.mxu0 0
      %1229 = vmatpush1.bf16.msra.mxu0 0
      %1230 = vmatprep.subr.bf16.mxu0 0
      %1231 = vmatpush1.bf16.msra.mxu0 %v1215
      %1232 = vmatprep.subr.bf16.mxu0 0
      %1233 = vmatpush1.bf16.msra.mxu0 %v1214
      %1234 = vmatprep.subr.bf16.mxu0 0
      %1235 = vmatpush2.bf16.msra.mxu0 0
      %1236 = vmatprep.subr.bf16.mxu0 0
      %1237 = vmatpush2.bf16.msra.mxu0 0
      %1238 = vmatprep.subr.bf16.mxu0 0
      %1239 = vmatpush2.bf16.msra.mxu0 0
      %1240 = vmatprep.subr.bf16.mxu0 0
      %1241 = vmatpush2.bf16.msra.mxu0 0
      %1242 = vmatprep.subr.bf16.mxu0 0
      %1243 = vmatpush2.bf16.msra.mxu0 0
      %1244 = vmatprep.subr.bf16.mxu0 0
      %1245 = vmatpush2.bf16.msra.mxu0 0
      %1246 = vmatprep.subr.bf16.mxu0 0
      %1247 = vmatpush2.bf16.msra.mxu0 0
      %1248 = vmatprep.subr.bf16.mxu0 0
      %1249 = vmatpush2.bf16.msra.mxu0 0
      %1250 = vmatprep.mubr.bf16.mxu0 0
      %1251 = vmatmul.mubr.bf16.gmra.mxu0 %v1060
      %v1252 = vpop.f32.mrf.mxu0
      %v1253 = vadd.f32 %v1042, %v1252
      %v1254 = vpop.f32.mrf.mxu0
      %v1255 = vpop.f32.mrf.mxu0
      %v1256 = vpop.f32.mrf.mxu0
      %1257 = vdwg.mxu0
      %v1258 = vld [vmem:[%s8] sm:$0xf]
      %v1259 = vld [vmem:[%s8 + $0x4] sm:$0xf]
      %v1260 = vld [vmem:[%s8 + $0x8] sm:$0xf]
      %v1261 = vld [vmem:[%s8 + $0xc] sm:$0xf]
      %v1262 = vld [vmem:[%s8 + $0x10] sm:$0xf]
      %v1263 = vld [vmem:[%s8 + $0x14] sm:$0xf]
      %v1264 = vld [vmem:[%s8 + $0x18] sm:$0xf]
      %v1265 = vld [vmem:[%s8 + $0x1c] sm:$0xf]
      %v1266 = vld [vmem:[%s8 + $0x20] sm:$0xf]
      %v1267 = vld [vmem:[%s8 + $0x24] sm:$0xf]
      %v1268 = vld [vmem:[%s8 + $0x28] sm:$0xf]
      %v1269 = vld [vmem:[%s8 + $0x2c] sm:$0xf]
      %v1270 = vld [vmem:[%s8 + $0x30] sm:$0xf]
      %v1271 = vld [vmem:[%s8 + $0x34] sm:$0xf]
      %v1272 = vld [vmem:[%s8 + $0x38] sm:$0xf]
      %v1273 = vld [vmem:[%s8 + $0x3c] sm:$0xf]
      %v1274 = vld [vmem:[%s11] sm:$0x1]
      %v1275 = vld [vmem:[%s11 + $0x1] sm:$0x1]
      %v1276 = vld [vmem:[%s11 + $0x2] sm:$0x1]
      %v1277 = vld [vmem:[%s11 + $0x3] sm:$0x1]
      %v1282 = vlaneseq
      %v1283 = vshrl.u32 %v1282, 7
      %v1284 = vsub.s32 0, %v1283
      %v1285 = vrot.slane %v1274, %v1284
      %v1286 = vlaneseq
      %v1287 = vshrl.u32 %v1286, 7
      %v1288 = vsub.s32 0, %v1287
      %v1289 = vrot.slane %v1275, %v1288
      %v1290 = vlaneseq
      %v1291 = vshrl.u32 %v1290, 7
      %v1292 = vsub.s32 0, %v1291
      %v1293 = vrot.slane %v1276, %v1292
      %v1294 = vlaneseq
      %v1295 = vshrl.u32 %v1294, 7
      %v1296 = vsub.s32 0, %v1295
      %v1297 = vrot.slane %v1277, %v1296
      %v1306 = vunpack.c.l.b16 %v1258
      %v1307 = vunpack.c.l.b16 %v1259
      %v1308 = vunpack.c.l.b16 %v1260
      %v1309 = vunpack.c.l.b16 %v1261
      %v1310 = vpack.c.b16 %v1307, %v1306
      %v1311 = vpack.c.b16 %v1309, %v1308
      %1314 = vmatprep.subr.bf16.mxu0 0
      %1315 = vmatpush1.bf16.msra.mxu0 0
      %1316 = vmatprep.subr.bf16.mxu0 0
      %1317 = vmatpush1.bf16.msra.mxu0 0
      %1318 = vmatprep.subr.bf16.mxu0 0
      %1319 = vmatpush1.bf16.msra.mxu0 0
      %1320 = vmatprep.subr.bf16.mxu0 0
      %1321 = vmatpush1.bf16.msra.mxu0 0
      %1322 = vmatprep.subr.bf16.mxu0 0
      %1323 = vmatpush1.bf16.msra.mxu0 0
      %1324 = vmatprep.subr.bf16.mxu0 0
      %1325 = vmatpush1.bf16.msra.mxu0 0
      %1326 = vmatprep.subr.bf16.mxu0 0
      %1327 = vmatpush1.bf16.msra.mxu0 %v1311
      %1328 = vmatprep.subr.bf16.mxu0 0
      %1329 = vmatpush1.bf16.msra.mxu0 %v1310
      %1330 = vmatprep.subr.bf16.mxu0 0
      %1331 = vmatpush2.bf16.msra.mxu0 0
      %1332 = vmatprep.subr.bf16.mxu0 0
      %1333 = vmatpush2.bf16.msra.mxu0 0
      %1334 = vmatprep.subr.bf16.mxu0 0
      %1335 = vmatpush2.bf16.msra.mxu0 0
      %1336 = vmatprep.subr.bf16.mxu0 0
      %1337 = vmatpush2.bf16.msra.mxu0 0
      %1338 = vmatprep.subr.bf16.mxu0 0
      %1339 = vmatpush2.bf16.msra.mxu0 0
      %1340 = vmatprep.subr.bf16.mxu0 0
      %1341 = vmatpush2.bf16.msra.mxu0 0
      %1342 = vmatprep.subr.bf16.mxu0 0
      %1343 = vmatpush2.bf16.msra.mxu0 0
      %1344 = vmatprep.subr.bf16.mxu0 0
      %1345 = vmatpush2.bf16.msra.mxu0 0
      %1346 = vmatprep.mubr.bf16.mxu0 0
      %1347 = vmatmul.mubr.bf16.gmra.mxu0 %v1060
      %v1348 = vpop.f32.mrf.mxu0
      %v1349 = vadd.f32 %v1285, %v1348
      %v1350 = vpop.f32.mrf.mxu0
      %v1351 = vpop.f32.mrf.mxu0
      %v1352 = vpop.f32.mrf.mxu0
      %1353 = vdwg.mxu0
      %v1358 = vunpack.c.l.b16 %v1262
      %v1359 = vunpack.c.l.b16 %v1263
      %v1360 = vunpack.c.l.b16 %v1264
      %v1361 = vunpack.c.l.b16 %v1265
      %v1362 = vpack.c.b16 %v1359, %v1358
      %v1363 = vpack.c.b16 %v1361, %v1360
      %1366 = vmatprep.subr.bf16.mxu0 0
      %1367 = vmatpush1.bf16.msra.mxu0 0
      %1368 = vmatprep.subr.bf16.mxu0 0
      %1369 = vmatpush1.bf16.msra.mxu0 0
      %1370 = vmatprep.subr.bf16.mxu0 0
      %1371 = vmatpush1.bf16.msra.mxu0 0
      %1372 = vmatprep.subr.bf16.mxu0 0
      %1373 = vmatpush1.bf16.msra.mxu0 0
      %1374 = vmatprep.subr.bf16.mxu0 0
      %1375 = vmatpush1.bf16.msra.mxu0 0
      %1376 = vmatprep.subr.bf16.mxu0 0
      %1377 = vmatpush1.bf16.msra.mxu0 0
      %1378 = vmatprep.subr.bf16.mxu0 0
      %1379 = vmatpush1.bf16.msra.mxu0 %v1363
      %1380 = vmatprep.subr.bf16.mxu0 0
      %1381 = vmatpush1.bf16.msra.mxu0 %v1362
      %1382 = vmatprep.subr.bf16.mxu0 0
      %1383 = vmatpush2.bf16.msra.mxu0 0
      %1384 = vmatprep.subr.bf16.mxu0 0
      %1385 = vmatpush2.bf16.msra.mxu0 0
      %1386 = vmatprep.subr.bf16.mxu0 0
      %1387 = vmatpush2.bf16.msra.mxu0 0
      %1388 = vmatprep.subr.bf16.mxu0 0
      %1389 = vmatpush2.bf16.msra.mxu0 0
      %1390 = vmatprep.subr.bf16.mxu0 0
      %1391 = vmatpush2.bf16.msra.mxu0 0
      %1392 = vmatprep.subr.bf16.mxu0 0
      %1393 = vmatpush2.bf16.msra.mxu0 0
      %1394 = vmatprep.subr.bf16.mxu0 0
      %1395 = vmatpush2.bf16.msra.mxu0 0
      %1396 = vmatprep.subr.bf16.mxu0 0
      %1397 = vmatpush2.bf16.msra.mxu0 0
      %1398 = vmatprep.mubr.bf16.mxu0 0
      %1399 = vmatmul.mubr.bf16.gmra.mxu0 %v1060
      %v1400 = vpop.f32.mrf.mxu0
      %v1401 = vadd.f32 %v1289, %v1400
      %v1402 = vpop.f32.mrf.mxu0
      %v1403 = vpop.f32.mrf.mxu0
      %v1404 = vpop.f32.mrf.mxu0
      %1405 = vdwg.mxu0
      %v1410 = vunpack.c.l.b16 %v1266
      %v1411 = vunpack.c.l.b16 %v1267
      %v1412 = vunpack.c.l.b16 %v1268
      %v1413 = vunpack.c.l.b16 %v1269
      %v1414 = vpack.c.b16 %v1411, %v1410
      %v1415 = vpack.c.b16 %v1413, %v1412
      %1418 = vmatprep.subr.bf16.mxu0 0
      %1419 = vmatpush1.bf16.msra.mxu0 0
      %1420 = vmatprep.subr.bf16.mxu0 0
      %1421 = vmatpush1.bf16.msra.mxu0 0
      %1422 = vmatprep.subr.bf16.mxu0 0
      %1423 = vmatpush1.bf16.msra.mxu0 0
      %1424 = vmatprep.subr.bf16.mxu0 0
      %1425 = vmatpush1.bf16.msra.mxu0 0
      %1426 = vmatprep.subr.bf16.mxu0 0
      %1427 = vmatpush1.bf16.msra.mxu0 0
      %1428 = vmatprep.subr.bf16.mxu0 0
      %1429 = vmatpush1.bf16.msra.mxu0 0
      %1430 = vmatprep.subr.bf16.mxu0 0
      %1431 = vmatpush1.bf16.msra.mxu0 %v1415
      %1432 = vmatprep.subr.bf16.mxu0 0
      %1433 = vmatpush1.bf16.msra.mxu0 %v1414
      %1434 = vmatprep.subr.bf16.mxu0 0
      %1435 = vmatpush2.bf16.msra.mxu0 0
      %1436 = vmatprep.subr.bf16.mxu0 0
      %1437 = vmatpush2.bf16.msra.mxu0 0
      %1438 = vmatprep.subr.bf16.mxu0 0
      %1439 = vmatpush2.bf16.msra.mxu0 0
      %1440 = vmatprep.subr.bf16.mxu0 0
      %1441 = vmatpush2.bf16.msra.mxu0 0
      %1442 = vmatprep.subr.bf16.mxu0 0
      %1443 = vmatpush2.bf16.msra.mxu0 0
      %1444 = vmatprep.subr.bf16.mxu0 0
      %1445 = vmatpush2.bf16.msra.mxu0 0
      %1446 = vmatprep.subr.bf16.mxu0 0
      %1447 = vmatpush2.bf16.msra.mxu0 0
      %1448 = vmatprep.subr.bf16.mxu0 0
      %1449 = vmatpush2.bf16.msra.mxu0 0
      %1450 = vmatprep.mubr.bf16.mxu0 0
      %1451 = vmatmul.mubr.bf16.gmra.mxu0 %v1060
      %v1452 = vpop.f32.mrf.mxu0
      %v1453 = vadd.f32 %v1293, %v1452
      %v1454 = vpop.f32.mrf.mxu0
      %v1455 = vpop.f32.mrf.mxu0
      %v1456 = vpop.f32.mrf.mxu0
      %1457 = vdwg.mxu0
      %v1462 = vunpack.c.l.b16 %v1270
      %v1463 = vunpack.c.l.b16 %v1271
      %v1464 = vunpack.c.l.b16 %v1272
      %v1465 = vunpack.c.l.b16 %v1273
      %v1466 = vpack.c.b16 %v1463, %v1462
      %v1467 = vpack.c.b16 %v1465, %v1464
      %1470 = vmatprep.subr.bf16.mxu0 0
      %1471 = vmatpush1.bf16.msra.mxu0 0
      %1472 = vmatprep.subr.bf16.mxu0 0
      %1473 = vmatpush1.bf16.msra.mxu0 0
      %1474 = vmatprep.subr.bf16.mxu0 0
      %1475 = vmatpush1.bf16.msra.mxu0 0
      %1476 = vmatprep.subr.bf16.mxu0 0
      %1477 = vmatpush1.bf16.msra.mxu0 0
      %1478 = vmatprep.subr.bf16.mxu0 0
      %1479 = vmatpush1.bf16.msra.mxu0 0
      %1480 = vmatprep.subr.bf16.mxu0 0
      %1481 = vmatpush1.bf16.msra.mxu0 0
      %1482 = vmatprep.subr.bf16.mxu0 0
      %1483 = vmatpush1.bf16.msra.mxu0 %v1467
      %1484 = vmatprep.subr.bf16.mxu0 0
      %1485 = vmatpush1.bf16.msra.mxu0 %v1466
      %1486 = vmatprep.subr.bf16.mxu0 0
      %1487 = vmatpush2.bf16.msra.mxu0 0
      %1488 = vmatprep.subr.bf16.mxu0 0
      %1489 = vmatpush2.bf16.msra.mxu0 0
      %1490 = vmatprep.subr.bf16.mxu0 0
      %1491 = vmatpush2.bf16.msra.mxu0 0
      %1492 = vmatprep.subr.bf16.mxu0 0
      %1493 = vmatpush2.bf16.msra.mxu0 0
      %1494 = vmatprep.subr.bf16.mxu0 0
      %1495 = vmatpush2.bf16.msra.mxu0 0
      %1496 = vmatprep.subr.bf16.mxu0 0
      %1497 = vmatpush2.bf16.msra.mxu0 0
      %1498 = vmatprep.subr.bf16.mxu0 0
      %1499 = vmatpush2.bf16.msra.mxu0 0
      %1500 = vmatprep.subr.bf16.mxu0 0
      %1501 = vmatpush2.bf16.msra.mxu0 0
      %1502 = vmatprep.mubr.bf16.mxu0 0
      %1503 = vmatmul.mubr.bf16.gmra.mxu0 %v1060
      %v1504 = vpop.f32.mrf.mxu0
      %v1505 = vadd.f32 %v1297, %v1504
      %v1506 = vpop.f32.mrf.mxu0
      %v1507 = vpop.f32.mrf.mxu0
      %v1508 = vpop.f32.mrf.mxu0
      %1509 = vdwg.mxu0
      %v1510 = vld [vmem:[%s9] sm:$0xf]
      %v1511 = vld [vmem:[%s9 + $0x4] sm:$0xf]
      %v1512 = vld [vmem:[%s9 + $0x8] sm:$0xf]
      %v1513 = vld [vmem:[%s9 + $0xc] sm:$0xf]
      %v1514 = vld [vmem:[%s9 + $0x10] sm:$0xf]
      %v1515 = vld [vmem:[%s9 + $0x14] sm:$0xf]
      %v1516 = vld [vmem:[%s9 + $0x18] sm:$0xf]
      %v1517 = vld [vmem:[%s9 + $0x1c] sm:$0xf]
      %v1518 = vld [vmem:[%s9 + $0x20] sm:$0xf]
      %v1519 = vld [vmem:[%s9 + $0x24] sm:$0xf]
      %v1520 = vld [vmem:[%s9 + $0x28] sm:$0xf]
      %v1521 = vld [vmem:[%s9 + $0x2c] sm:$0xf]
      %v1522 = vld [vmem:[%s9 + $0x30] sm:$0xf]
      %v1523 = vld [vmem:[%s9 + $0x34] sm:$0xf]
      %v1524 = vld [vmem:[%s9 + $0x38] sm:$0xf]
      %v1525 = vld [vmem:[%s9 + $0x3c] sm:$0xf]
      %v1526 = vld [vmem:[%s12] sm:$0x1]
      %v1527 = vld [vmem:[%s12 + $0x1] sm:$0x1]
      %v1528 = vld [vmem:[%s12 + $0x2] sm:$0x1]
      %v1529 = vld [vmem:[%s12 + $0x3] sm:$0x1]
      %v1534 = vlaneseq
      %v1535 = vshrl.u32 %v1534, 7
      %v1536 = vsub.s32 0, %v1535
      %v1537 = vrot.slane %v1526, %v1536
      %v1538 = vlaneseq
      %v1539 = vshrl.u32 %v1538, 7
      %v1540 = vsub.s32 0, %v1539
      %v1541 = vrot.slane %v1527, %v1540
      %v1542 = vlaneseq
      %v1543 = vshrl.u32 %v1542, 7
      %v1544 = vsub.s32 0, %v1543
      %v1545 = vrot.slane %v1528, %v1544
      %v1546 = vlaneseq
      %v1547 = vshrl.u32 %v1546, 7
      %v1548 = vsub.s32 0, %v1547
      %v1549 = vrot.slane %v1529, %v1548
      %v1558 = vunpack.c.l.b16 %v1510
      %v1559 = vunpack.c.l.b16 %v1511
      %v1560 = vunpack.c.l.b16 %v1512
      %v1561 = vunpack.c.l.b16 %v1513
      %v1562 = vpack.c.b16 %v1559, %v1558
      %v1563 = vpack.c.b16 %v1561, %v1560
      %1566 = vmatprep.subr.bf16.mxu0 0
      %1567 = vmatpush1.bf16.msra.mxu0 0
      %1568 = vmatprep.subr.bf16.mxu0 0
      %1569 = vmatpush1.bf16.msra.mxu0 0
      %1570 = vmatprep.subr.bf16.mxu0 0
      %1571 = vmatpush1.bf16.msra.mxu0 0
      %1572 = vmatprep.subr.bf16.mxu0 0
      %1573 = vmatpush1.bf16.msra.mxu0 0
      %1574 = vmatprep.subr.bf16.mxu0 0
      %1575 = vmatpush1.bf16.msra.mxu0 0
      %1576 = vmatprep.subr.bf16.mxu0 0
      %1577 = vmatpush1.bf16.msra.mxu0 0
      %1578 = vmatprep.subr.bf16.mxu0 0
      %1579 = vmatpush1.bf16.msra.mxu0 %v1563
      %1580 = vmatprep.subr.bf16.mxu0 0
      %1581 = vmatpush1.bf16.msra.mxu0 %v1562
      %1582 = vmatprep.subr.bf16.mxu0 0
      %1583 = vmatpush2.bf16.msra.mxu0 0
      %1584 = vmatprep.subr.bf16.mxu0 0
      %1585 = vmatpush2.bf16.msra.mxu0 0
      %1586 = vmatprep.subr.bf16.mxu0 0
      %1587 = vmatpush2.bf16.msra.mxu0 0
      %1588 = vmatprep.subr.bf16.mxu0 0
      %1589 = vmatpush2.bf16.msra.mxu0 0
      %1590 = vmatprep.subr.bf16.mxu0 0
      %1591 = vmatpush2.bf16.msra.mxu0 0
      %1592 = vmatprep.subr.bf16.mxu0 0
      %1593 = vmatpush2.bf16.msra.mxu0 0
      %1594 = vmatprep.subr.bf16.mxu0 0
      %1595 = vmatpush2.bf16.msra.mxu0 0
      %1596 = vmatprep.subr.bf16.mxu0 0
      %1597 = vmatpush2.bf16.msra.mxu0 0
      %1598 = vmatprep.mubr.bf16.mxu0 0
      %1599 = vmatmul.mubr.bf16.gmra.mxu0 %v1060
      %v1600 = vpop.f32.mrf.mxu0
      %v1601 = vadd.f32 %v1537, %v1600
      %v1602 = vpop.f32.mrf.mxu0
      %v1603 = vpop.f32.mrf.mxu0
      %v1604 = vpop.f32.mrf.mxu0
      %1605 = vdwg.mxu0
      %v1610 = vunpack.c.l.b16 %v1514
      %v1611 = vunpack.c.l.b16 %v1515
      %v1612 = vunpack.c.l.b16 %v1516
      %v1613 = vunpack.c.l.b16 %v1517
      %v1614 = vpack.c.b16 %v1611, %v1610
      %v1615 = vpack.c.b16 %v1613, %v1612
      %1618 = vmatprep.subr.bf16.mxu0 0
      %1619 = vmatpush1.bf16.msra.mxu0 0
      %1620 = vmatprep.subr.bf16.mxu0 0
      %1621 = vmatpush1.bf16.msra.mxu0 0
      %1622 = vmatprep.subr.bf16.mxu0 0
      %1623 = vmatpush1.bf16.msra.mxu0 0
      %1624 = vmatprep.subr.bf16.mxu0 0
      %1625 = vmatpush1.bf16.msra.mxu0 0
      %1626 = vmatprep.subr.bf16.mxu0 0
      %1627 = vmatpush1.bf16.msra.mxu0 0
      %1628 = vmatprep.subr.bf16.mxu0 0
      %1629 = vmatpush1.bf16.msra.mxu0 0
      %1630 = vmatprep.subr.bf16.mxu0 0
      %1631 = vmatpush1.bf16.msra.mxu0 %v1615
      %1632 = vmatprep.subr.bf16.mxu0 0
      %1633 = vmatpush1.bf16.msra.mxu0 %v1614
      %1634 = vmatprep.subr.bf16.mxu0 0
      %1635 = vmatpush2.bf16.msra.mxu0 0
      %1636 = vmatprep.subr.bf16.mxu0 0
      %1637 = vmatpush2.bf16.msra.mxu0 0
      %1638 = vmatprep.subr.bf16.mxu0 0
      %1639 = vmatpush2.bf16.msra.mxu0 0
      %1640 = vmatprep.subr.bf16.mxu0 0
      %1641 = vmatpush2.bf16.msra.mxu0 0
      %1642 = vmatprep.subr.bf16.mxu0 0
      %1643 = vmatpush2.bf16.msra.mxu0 0
      %1644 = vmatprep.subr.bf16.mxu0 0
      %1645 = vmatpush2.bf16.msra.mxu0 0
      %1646 = vmatprep.subr.bf16.mxu0 0
      %1647 = vmatpush2.bf16.msra.mxu0 0
      %1648 = vmatprep.subr.bf16.mxu0 0
      %1649 = vmatpush2.bf16.msra.mxu0 0
      %1650 = vmatprep.mubr.bf16.mxu0 0
      %1651 = vmatmul.mubr.bf16.gmra.mxu0 %v1060
      %v1652 = vpop.f32.mrf.mxu0
      %v1653 = vadd.f32 %v1541, %v1652
      %v1654 = vpop.f32.mrf.mxu0
      %v1655 = vpop.f32.mrf.mxu0
      %v1656 = vpop.f32.mrf.mxu0
      %1657 = vdwg.mxu0
      %v1662 = vunpack.c.l.b16 %v1518
      %v1663 = vunpack.c.l.b16 %v1519
      %v1664 = vunpack.c.l.b16 %v1520
      %v1665 = vunpack.c.l.b16 %v1521
      %v1666 = vpack.c.b16 %v1663, %v1662
      %v1667 = vpack.c.b16 %v1665, %v1664
      %1670 = vmatprep.subr.bf16.mxu0 0
      %1671 = vmatpush1.bf16.msra.mxu0 0
      %1672 = vmatprep.subr.bf16.mxu0 0
      %1673 = vmatpush1.bf16.msra.mxu0 0
      %1674 = vmatprep.subr.bf16.mxu0 0
      %1675 = vmatpush1.bf16.msra.mxu0 0
      %1676 = vmatprep.subr.bf16.mxu0 0
      %1677 = vmatpush1.bf16.msra.mxu0 0
      %1678 = vmatprep.subr.bf16.mxu0 0
      %1679 = vmatpush1.bf16.msra.mxu0 0
      %1680 = vmatprep.subr.bf16.mxu0 0
      %1681 = vmatpush1.bf16.msra.mxu0 0
      %1682 = vmatprep.subr.bf16.mxu0 0
      %1683 = vmatpush1.bf16.msra.mxu0 %v1667
      %1684 = vmatprep.subr.bf16.mxu0 0
      %1685 = vmatpush1.bf16.msra.mxu0 %v1666
      %1686 = vmatprep.subr.bf16.mxu0 0
      %1687 = vmatpush2.bf16.msra.mxu0 0
      %1688 = vmatprep.subr.bf16.mxu0 0
      %1689 = vmatpush2.bf16.msra.mxu0 0
      %1690 = vmatprep.subr.bf16.mxu0 0
      %1691 = vmatpush2.bf16.msra.mxu0 0
      %1692 = vmatprep.subr.bf16.mxu0 0
      %1693 = vmatpush2.bf16.msra.mxu0 0
      %1694 = vmatprep.subr.bf16.mxu0 0
      %1695 = vmatpush2.bf16.msra.mxu0 0
      %1696 = vmatprep.subr.bf16.mxu0 0
      %1697 = vmatpush2.bf16.msra.mxu0 0
      %1698 = vmatprep.subr.bf16.mxu0 0
      %1699 = vmatpush2.bf16.msra.mxu0 0
      %1700 = vmatprep.subr.bf16.mxu0 0
      %1701 = vmatpush2.bf16.msra.mxu0 0
      %1702 = vmatprep.mubr.bf16.mxu0 0
      %1703 = vmatmul.mubr.bf16.gmra.mxu0 %v1060
      %v1704 = vpop.f32.mrf.mxu0
      %v1705 = vadd.f32 %v1545, %v1704
      %v1706 = vpop.f32.mrf.mxu0
      %v1707 = vpop.f32.mrf.mxu0
      %v1708 = vpop.f32.mrf.mxu0
      %1709 = vdwg.mxu0
      %v1714 = vunpack.c.l.b16 %v1522
      %v1715 = vunpack.c.l.b16 %v1523
      %v1716 = vunpack.c.l.b16 %v1524
      %v1717 = vunpack.c.l.b16 %v1525
      %v1718 = vpack.c.b16 %v1715, %v1714
      %v1719 = vpack.c.b16 %v1717, %v1716
      %1722 = vmatprep.subr.bf16.mxu0 0
      %1723 = vmatpush1.bf16.msra.mxu0 0
      %1724 = vmatprep.subr.bf16.mxu0 0
      %1725 = vmatpush1.bf16.msra.mxu0 0
      %1726 = vmatprep.subr.bf16.mxu0 0
      %1727 = vmatpush1.bf16.msra.mxu0 0
      %1728 = vmatprep.subr.bf16.mxu0 0
      %1729 = vmatpush1.bf16.msra.mxu0 0
      %1730 = vmatprep.subr.bf16.mxu0 0
      %1731 = vmatpush1.bf16.msra.mxu0 0
      %1732 = vmatprep.subr.bf16.mxu0 0
      %1733 = vmatpush1.bf16.msra.mxu0 0
      %1734 = vmatprep.subr.bf16.mxu0 0
      %1735 = vmatpush1.bf16.msra.mxu0 %v1719
      %1736 = vmatprep.subr.bf16.mxu0 0
      %1737 = vmatpush1.bf16.msra.mxu0 %v1718
      %1738 = vmatprep.subr.bf16.mxu0 0
      %1739 = vmatpush2.bf16.msra.mxu0 0
      %1740 = vmatprep.subr.bf16.mxu0 0
      %1741 = vmatpush2.bf16.msra.mxu0 0
      %1742 = vmatprep.subr.bf16.mxu0 0
      %1743 = vmatpush2.bf16.msra.mxu0 0
      %1744 = vmatprep.subr.bf16.mxu0 0
      %1745 = vmatpush2.bf16.msra.mxu0 0
      %1746 = vmatprep.subr.bf16.mxu0 0
      %1747 = vmatpush2.bf16.msra.mxu0 0
      %1748 = vmatprep.subr.bf16.mxu0 0
      %1749 = vmatpush2.bf16.msra.mxu0 0
      %1750 = vmatprep.subr.bf16.mxu0 0
      %1751 = vmatpush2.bf16.msra.mxu0 0
      %1752 = vmatprep.subr.bf16.mxu0 0
      %1753 = vmatpush2.bf16.msra.mxu0 0
      %1754 = vmatprep.mubr.bf16.mxu0 0
      %1755 = vmatmul.mubr.bf16.gmra.mxu0 %v1060
      %v1756 = vpop.f32.mrf.mxu0
      %v1757 = vadd.f32 %v1549, %v1756
      %v1758 = vpop.f32.mrf.mxu0
      %v1759 = vpop.f32.mrf.mxu0
      %v1760 = vpop.f32.mrf.mxu0
      %1761 = vdwg.mxu0
      %v1762 = vpack.c.bf16 %v1097, %v1097
      %v1763 = vpack.c.bf16 %v1149, %v1149
      %v1764 = vpack.c.bf16 %v1201, %v1201
      %v1765 = vpack.c.bf16 %v1253, %v1253
      %v1766 = vpack.c.bf16 %v1349, %v1349
      %v1767 = vpack.c.bf16 %v1401, %v1401
      %v1768 = vpack.c.bf16 %v1453, %v1453
      %v1769 = vpack.c.bf16 %v1505, %v1505
      %vm1770 = vcmask 64512
      %v1772 = vsel %vm1770, %v1762, 0
      %v1775 = vsel %vm1770, %v1766, 0
      %1777 = vmatprep.subr.bf16.mxu0 0
      %1778 = vmatpush1.bf16.xpose.msra.mxu0 0
      %1779 = vmatprep.subr.bf16.mxu0 0
      %1780 = vmatpush1.bf16.xpose.msra.mxu0 0
      %1781 = vmatprep.subr.bf16.mxu0 0
      %1782 = vmatpush1.bf16.xpose.msra.mxu0 0
      %1783 = vmatprep.subr.bf16.mxu0 0
      %1784 = vmatpush1.bf16.xpose.msra.mxu0 0
      %1785 = vmatprep.subr.bf16.mxu0 0
      %1786 = vmatpush1.bf16.xpose.msra.mxu0 0
      %1787 = vmatprep.subr.bf16.mxu0 0
      %1788 = vmatpush1.bf16.xpose.msra.mxu0 0
      %1789 = vmatprep.subr.bf16.mxu0 0
      %1790 = vmatpush1.bf16.xpose.msra.mxu0 0
      %1791 = vmatprep.subr.bf16.mxu0 0
      %1792 = vmatpush1.bf16.xpose.msra.mxu0 %v1775
      %1793 = vmatprep.subr.bf16.mxu0 0
      %1794 = vmatpush2.bf16.xpose.msra.mxu0 0
      %1795 = vmatprep.subr.bf16.mxu0 0
      %1796 = vmatpush2.bf16.xpose.msra.mxu0 0
      %1797 = vmatprep.subr.bf16.mxu0 0
      %1798 = vmatpush2.bf16.xpose.msra.mxu0 0
      %1799 = vmatprep.subr.bf16.mxu0 0
      %1800 = vmatpush2.bf16.xpose.msra.mxu0 0
      %1801 = vmatprep.subr.bf16.mxu0 0
      %1802 = vmatpush2.bf16.xpose.msra.mxu0 0
      %1803 = vmatprep.subr.bf16.mxu0 0
      %1804 = vmatpush2.bf16.xpose.msra.mxu0 0
      %1805 = vmatprep.subr.bf16.mxu0 0
      %1806 = vmatpush2.bf16.xpose.msra.mxu0 0
      %1807 = vmatprep.subr.bf16.mxu0 0
      %1808 = vmatpush2.bf16.xpose.msra.mxu0 0
      %1809 = vmatprep.mubr.bf16.mxu0 0
      %1810 = vmatmul.mubr.bf16.gmra.mxu0 %v1772
      %v1811 = vpop.f32.mrf.mxu0
      %v1812 = vadd.f32 0.0, %v1811
      %v1813 = vpop.f32.mrf.mxu0
      %v1814 = vpop.f32.mrf.mxu0
      %v1815 = vpop.f32.mrf.mxu0
      %1816 = vdwg.mxu0
      %v1818 = vsel %vm1770, %v1763, 0
      %v1821 = vsel %vm1770, %v1767, 0
      %1823 = vmatprep.subr.bf16.mxu0 0
      %1824 = vmatpush1.bf16.xpose.msra.mxu0 0
      %1825 = vmatprep.subr.bf16.mxu0 0
      %1826 = vmatpush1.bf16.xpose.msra.mxu0 0
      %1827 = vmatprep.subr.bf16.mxu0 0
      %1828 = vmatpush1.bf16.xpose.msra.mxu0 0
      %1829 = vmatprep.subr.bf16.mxu0 0
      %1830 = vmatpush1.bf16.xpose.msra.mxu0 0
      %1831 = vmatprep.subr.bf16.mxu0 0
      %1832 = vmatpush1.bf16.xpose.msra.mxu0 0
      %1833 = vmatprep.subr.bf16.mxu0 0
      %1834 = vmatpush1.bf16.xpose.msra.mxu0 0
      %1835 = vmatprep.subr.bf16.mxu0 0
      %1836 = vmatpush1.bf16.xpose.msra.mxu0 0
      %1837 = vmatprep.subr.bf16.mxu0 0
      %1838 = vmatpush1.bf16.xpose.msra.mxu0 %v1821
      %1839 = vmatprep.subr.bf16.mxu0 0
      %1840 = vmatpush2.bf16.xpose.msra.mxu0 0
      %1841 = vmatprep.subr.bf16.mxu0 0
      %1842 = vmatpush2.bf16.xpose.msra.mxu0 0
      %1843 = vmatprep.subr.bf16.mxu0 0
      %1844 = vmatpush2.bf16.xpose.msra.mxu0 0
      %1845 = vmatprep.subr.bf16.mxu0 0
      %1846 = vmatpush2.bf16.xpose.msra.mxu0 0
      %1847 = vmatprep.subr.bf16.mxu0 0
      %1848 = vmatpush2.bf16.xpose.msra.mxu0 0
      %1849 = vmatprep.subr.bf16.mxu0 0
      %1850 = vmatpush2.bf16.xpose.msra.mxu0 0
      %1851 = vmatprep.subr.bf16.mxu0 0
      %1852 = vmatpush2.bf16.xpose.msra.mxu0 0
      %1853 = vmatprep.subr.bf16.mxu0 0
      %1854 = vmatpush2.bf16.xpose.msra.mxu0 0
      %1855 = vmatprep.mubr.bf16.mxu0 0
      %1856 = vmatmul.mubr.bf16.gmra.mxu0 %v1818
      %v1857 = vpop.f32.mrf.mxu0
      %v1858 = vadd.f32 0.0, %v1857
      %v1859 = vpop.f32.mrf.mxu0
      %v1860 = vpop.f32.mrf.mxu0
      %v1861 = vpop.f32.mrf.mxu0
      %1862 = vdwg.mxu0
      %v1864 = vsel %vm1770, %v1764, 0
      %v1867 = vsel %vm1770, %v1768, 0
      %1869 = vmatprep.subr.bf16.mxu0 0
      %1870 = vmatpush1.bf16.xpose.msra.mxu0 0
      %1871 = vmatprep.subr.bf16.mxu0 0
      %1872 = vmatpush1.bf16.xpose.msra.mxu0 0
      %1873 = vmatprep.subr.bf16.mxu0 0
      %1874 = vmatpush1.bf16.xpose.msra.mxu0 0
      %1875 = vmatprep.subr.bf16.mxu0 0
      %1876 = vmatpush1.bf16.xpose.msra.mxu0 0
      %1877 = vmatprep.subr.bf16.mxu0 0
      %1878 = vmatpush1.bf16.xpose.msra.mxu0 0
      %1879 = vmatprep.subr.bf16.mxu0 0
      %1880 = vmatpush1.bf16.xpose.msra.mxu0 0
      %1881 = vmatprep.subr.bf16.mxu0 0
      %1882 = vmatpush1.bf16.xpose.msra.mxu0 0
      %1883 = vmatprep.subr.bf16.mxu0 0
      %1884 = vmatpush1.bf16.xpose.msra.mxu0 %v1867
      %1885 = vmatprep.subr.bf16.mxu0 0
      %1886 = vmatpush2.bf16.xpose.msra.mxu0 0
      %1887 = vmatprep.subr.bf16.mxu0 0
      %1888 = vmatpush2.bf16.xpose.msra.mxu0 0
      %1889 = vmatprep.subr.bf16.mxu0 0
      %1890 = vmatpush2.bf16.xpose.msra.mxu0 0
      %1891 = vmatprep.subr.bf16.mxu0 0
      %1892 = vmatpush2.bf16.xpose.msra.mxu0 0
      %1893 = vmatprep.subr.bf16.mxu0 0
      %1894 = vmatpush2.bf16.xpose.msra.mxu0 0
      %1895 = vmatprep.subr.bf16.mxu0 0
      %1896 = vmatpush2.bf16.xpose.msra.mxu0 0
      %1897 = vmatprep.subr.bf16.mxu0 0
      %1898 = vmatpush2.bf16.xpose.msra.mxu0 0
      %1899 = vmatprep.subr.bf16.mxu0 0
      %1900 = vmatpush2.bf16.xpose.msra.mxu0 0
      %1901 = vmatprep.mubr.bf16.mxu0 0
      %1902 = vmatmul.mubr.bf16.gmra.mxu0 %v1864
      %v1903 = vpop.f32.mrf.mxu0
      %v1904 = vadd.f32 0.0, %v1903
      %v1905 = vpop.f32.mrf.mxu0
      %v1906 = vpop.f32.mrf.mxu0
      %v1907 = vpop.f32.mrf.mxu0
      %1908 = vdwg.mxu0
      %v1910 = vsel %vm1770, %v1765, 0
      %v1913 = vsel %vm1770, %v1769, 0
      %1915 = vmatprep.subr.bf16.mxu0 0
      %1916 = vmatpush1.bf16.xpose.msra.mxu0 0
      %1917 = vmatprep.subr.bf16.mxu0 0
      %1918 = vmatpush1.bf16.xpose.msra.mxu0 0
      %1919 = vmatprep.subr.bf16.mxu0 0
      %1920 = vmatpush1.bf16.xpose.msra.mxu0 0
      %1921 = vmatprep.subr.bf16.mxu0 0
      %1922 = vmatpush1.bf16.xpose.msra.mxu0 0
      %1923 = vmatprep.subr.bf16.mxu0 0
      %1924 = vmatpush1.bf16.xpose.msra.mxu0 0
      %1925 = vmatprep.subr.bf16.mxu0 0
      %1926 = vmatpush1.bf16.xpose.msra.mxu0 0
      %1927 = vmatprep.subr.bf16.mxu0 0
      %1928 = vmatpush1.bf16.xpose.msra.mxu0 0
      %1929 = vmatprep.subr.bf16.mxu0 0
      %1930 = vmatpush1.bf16.xpose.msra.mxu0 %v1913
      %1931 = vmatprep.subr.bf16.mxu0 0
      %1932 = vmatpush2.bf16.xpose.msra.mxu0 0
      %1933 = vmatprep.subr.bf16.mxu0 0
      %1934 = vmatpush2.bf16.xpose.msra.mxu0 0
      %1935 = vmatprep.subr.bf16.mxu0 0
      %1936 = vmatpush2.bf16.xpose.msra.mxu0 0
      %1937 = vmatprep.subr.bf16.mxu0 0
      %1938 = vmatpush2.bf16.xpose.msra.mxu0 0
      %1939 = vmatprep.subr.bf16.mxu0 0
      %1940 = vmatpush2.bf16.xpose.msra.mxu0 0
      %1941 = vmatprep.subr.bf16.mxu0 0
      %1942 = vmatpush2.bf16.xpose.msra.mxu0 0
      %1943 = vmatprep.subr.bf16.mxu0 0
      %1944 = vmatpush2.bf16.xpose.msra.mxu0 0
      %1945 = vmatprep.subr.bf16.mxu0 0
      %1946 = vmatpush2.bf16.xpose.msra.mxu0 0
      %1947 = vmatprep.mubr.bf16.mxu0 0
      %1948 = vmatmul.mubr.bf16.gmra.mxu0 %v1910
      %v1949 = vpop.f32.mrf.mxu0
      %v1950 = vadd.f32 0.0, %v1949
      %v1951 = vpop.f32.mrf.mxu0
      %v1952 = vpop.f32.mrf.mxu0
      %v1953 = vpop.f32.mrf.mxu0
      %1954 = vdwg.mxu0
      %v1955 = vmul.f32 %v1812, 0.35355338
      %v1956 = vmul.f32 %v1858, 0.35355338
      %v1957 = vmul.f32 %v1904, 0.35355338
      %v1958 = vmul.f32 %v1950, 0.35355338
      %v1959 = vadd.f32 %v1955, %v1001
      %v1960 = vadd.f32 %v1956, %v1001
      %v1961 = vadd.f32 %v1957, %v1001
      %v1962 = vadd.f32 %v1958, %v1001
      %v1963 = vsel %vm1770, %v1959, -inf
      %1964 = vmax.xlane.f32.xlu0 %v1963
      %v1965 = vpop.xlane.xlu0 %1964
      %v1966 = vsel %vm1770, %v1960, -inf
      %1967 = vmax.xlane.f32.xlu0 %v1966
      %v1968 = vpop.xlane.xlu0 %1967
      %v1969 = vsel %vm1770, %v1961, -inf
      %1970 = vmax.xlane.f32.xlu0 %v1969
      %v1971 = vpop.xlane.xlu0 %1970
      %v1972 = vsel %vm1770, %v1962, -inf
      %1973 = vmax.xlane.f32.xlu0 %v1972
      %v1974 = vpop.xlane.xlu0 %1973
      %v1975 = vsub.f32 %v1959, %v1965
      %v1976 = vsub.f32 %v1960, %v1968
      %v1977 = vsub.f32 %v1961, %v1971
      %v1978 = vsub.f32 %v1962, %v1974
      %v1979 = vmul.f32 %v1975, 1.442695
      %v1980 = vpow.pop %v1979
      %v1981 = vmul.f32 %v1976, 1.442695
      %v1982 = vpow.pop %v1981
      %v1983 = vmul.f32 %v1977, 1.442695
      %v1984 = vpow.pop %v1983
      %v1985 = vmul.f32 %v1978, 1.442695
      %v1986 = vpow.pop %v1985
      %v1987 = vsel %vm1770, %v1980, 0.0
      %1988 = vadd.xlane.f32.xlu0 %v1987
      %v1989 = vpop.xlane.xlu0 %1988
      %v1990 = vsel %vm1770, %v1982, 0.0
      %1991 = vadd.xlane.f32.xlu0 %v1990
      %v1992 = vpop.xlane.xlu0 %1991
      %v1993 = vsel %vm1770, %v1984, 0.0
      %1994 = vadd.xlane.f32.xlu0 %v1993
      %v1995 = vpop.xlane.xlu0 %1994
      %v1996 = vsel %vm1770, %v1986, 0.0
      %1997 = vadd.xlane.f32.xlu0 %v1996
      %v1998 = vpop.xlane.xlu0 %1997
      %v1999 = vrcp.pop %v1989
      %v2000 = vrcp.pop %v1992
      %v2001 = vrcp.pop %v1995
      %v2002 = vrcp.pop %v1998
      %v2003 = vmul.f32 %v1980, %v1999
      %v2004 = vmul.f32 %v1982, %v2000
      %v2005 = vmul.f32 %v1984, %v2001
      %v2006 = vmul.f32 %v1986, %v2002
      %v2007 = vpack.c.bf16 %v2003, %v2003
      %v2008 = vpack.c.bf16 %v2004, %v2004
      %v2009 = vpack.c.bf16 %v2005, %v2005
      %v2010 = vpack.c.bf16 %v2006, %v2006
      %v2011 = vpack.c.bf16 %v1601, %v1601
      %v2012 = vpack.c.bf16 %v1653, %v1653
      %v2013 = vpack.c.bf16 %v1705, %v1705
      %v2014 = vpack.c.bf16 %v1757, %v1757
      %v2016 = vsel %vm1770, %v2007, 0
      %vm2018 = vcmask 1043456
      %v2020 = vsel %vm2018, %v2011, 0
      %2022 = vmatprep.subr.bf16.mxu0 0
      %2023 = vmatpush1.bf16.msra.mxu0 0
      %2024 = vmatprep.subr.bf16.mxu0 0
      %2025 = vmatpush1.bf16.msra.mxu0 0
      %2026 = vmatprep.subr.bf16.mxu0 0
      %2027 = vmatpush1.bf16.msra.mxu0 0
      %2028 = vmatprep.subr.bf16.mxu0 0
      %2029 = vmatpush1.bf16.msra.mxu0 0
      %2030 = vmatprep.subr.bf16.mxu0 0
      %2031 = vmatpush1.bf16.msra.mxu0 0
      %2032 = vmatprep.subr.bf16.mxu0 0
      %2033 = vmatpush1.bf16.msra.mxu0 0
      %2034 = vmatprep.subr.bf16.mxu0 0
      %2035 = vmatpush1.bf16.msra.mxu0 0
      %2036 = vmatprep.subr.bf16.mxu0 0
      %2037 = vmatpush1.bf16.msra.mxu0 %v2020
      %2038 = vmatprep.subr.bf16.mxu0 0
      %2039 = vmatpush2.bf16.msra.mxu0 0
      %2040 = vmatprep.subr.bf16.mxu0 0
      %2041 = vmatpush2.bf16.msra.mxu0 0
      %2042 = vmatprep.subr.bf16.mxu0 0
      %2043 = vmatpush2.bf16.msra.mxu0 0
      %2044 = vmatprep.subr.bf16.mxu0 0
      %2045 = vmatpush2.bf16.msra.mxu0 0
      %2046 = vmatprep.subr.bf16.mxu0 0
      %2047 = vmatpush2.bf16.msra.mxu0 0
      %2048 = vmatprep.subr.bf16.mxu0 0
      %2049 = vmatpush2.bf16.msra.mxu0 0
      %2050 = vmatprep.subr.bf16.mxu0 0
      %2051 = vmatpush2.bf16.msra.mxu0 0
      %2052 = vmatprep.subr.bf16.mxu0 0
      %2053 = vmatpush2.bf16.msra.mxu0 0
      %2054 = vmatprep.mubr.bf16.mxu0 0
      %2055 = vmatmul.mubr.bf16.gmra.mxu0 %v2016
      %v2056 = vpop.f32.mrf.mxu0
      %v2057 = vadd.f32 0.0, %v2056
      %v2058 = vpop.f32.mrf.mxu0
      %v2059 = vpop.f32.mrf.mxu0
      %v2060 = vpop.f32.mrf.mxu0
      %2061 = vdwg.mxu0
      %v2063 = vsel %vm1770, %v2008, 0
      %v2066 = vsel %vm2018, %v2012, 0
      %2068 = vmatprep.subr.bf16.mxu0 0
      %2069 = vmatpush1.bf16.msra.mxu0 0
      %2070 = vmatprep.subr.bf16.mxu0 0
      %2071 = vmatpush1.bf16.msra.mxu0 0
      %2072 = vmatprep.subr.bf16.mxu0 0
      %2073 = vmatpush1.bf16.msra.mxu0 0
      %2074 = vmatprep.subr.bf16.mxu0 0
      %2075 = vmatpush1.bf16.msra.mxu0 0
      %2076 = vmatprep.subr.bf16.mxu0 0
      %2077 = vmatpush1.bf16.msra.mxu0 0
      %2078 = vmatprep.subr.bf16.mxu0 0
      %2079 = vmatpush1.bf16.msra.mxu0 0
      %2080 = vmatprep.subr.bf16.mxu0 0
      %2081 = vmatpush1.bf16.msra.mxu0 0
      %2082 = vmatprep.subr.bf16.mxu0 0
      %2083 = vmatpush1.bf16.msra.mxu0 %v2066
      %2084 = vmatprep.subr.bf16.mxu0 0
      %2085 = vmatpush2.bf16.msra.mxu0 0
      %2086 = vmatprep.subr.bf16.mxu0 0
      %2087 = vmatpush2.bf16.msra.mxu0 0
      %2088 = vmatprep.subr.bf16.mxu0 0
      %2089 = vmatpush2.bf16.msra.mxu0 0
      %2090 = vmatprep.subr.bf16.mxu0 0
      %2091 = vmatpush2.bf16.msra.mxu0 0
      %2092 = vmatprep.subr.bf16.mxu0 0
      %2093 = vmatpush2.bf16.msra.mxu0 0
      %2094 = vmatprep.subr.bf16.mxu0 0
      %2095 = vmatpush2.bf16.msra.mxu0 0
      %2096 = vmatprep.subr.bf16.mxu0 0
      %2097 = vmatpush2.bf16.msra.mxu0 0
      %2098 = vmatprep.subr.bf16.mxu0 0
      %2099 = vmatpush2.bf16.msra.mxu0 0
      %2100 = vmatprep.mubr.bf16.mxu0 0
      %2101 = vmatmul.mubr.bf16.gmra.mxu0 %v2063
      %v2102 = vpop.f32.mrf.mxu0
      %v2103 = vadd.f32 0.0, %v2102
      %v2104 = vpop.f32.mrf.mxu0
      %v2105 = vpop.f32.mrf.mxu0
      %v2106 = vpop.f32.mrf.mxu0
      %2107 = vdwg.mxu0
      %v2109 = vsel %vm1770, %v2009, 0
      %v2112 = vsel %vm2018, %v2013, 0
      %2114 = vmatprep.subr.bf16.mxu0 0
      %2115 = vmatpush1.bf16.msra.mxu0 0
      %2116 = vmatprep.subr.bf16.mxu0 0
      %2117 = vmatpush1.bf16.msra.mxu0 0
      %2118 = vmatprep.subr.bf16.mxu0 0
      %2119 = vmatpush1.bf16.msra.mxu0 0
      %2120 = vmatprep.subr.bf16.mxu0 0
      %2121 = vmatpush1.bf16.msra.mxu0 0
      %2122 = vmatprep.subr.bf16.mxu0 0
      %2123 = vmatpush1.bf16.msra.mxu0 0
      %2124 = vmatprep.subr.bf16.mxu0 0
      %2125 = vmatpush1.bf16.msra.mxu0 0
      %2126 = vmatprep.subr.bf16.mxu0 0
      %2127 = vmatpush1.bf16.msra.mxu0 0
      %2128 = vmatprep.subr.bf16.mxu0 0
      %2129 = vmatpush1.bf16.msra.mxu0 %v2112
      %2130 = vmatprep.subr.bf16.mxu0 0
      %2131 = vmatpush2.bf16.msra.mxu0 0
      %2132 = vmatprep.subr.bf16.mxu0 0
      %2133 = vmatpush2.bf16.msra.mxu0 0
      %2134 = vmatprep.subr.bf16.mxu0 0
      %2135 = vmatpush2.bf16.msra.mxu0 0
      %2136 = vmatprep.subr.bf16.mxu0 0
      %2137 = vmatpush2.bf16.msra.mxu0 0
      %2138 = vmatprep.subr.bf16.mxu0 0
      %2139 = vmatpush2.bf16.msra.mxu0 0
      %2140 = vmatprep.subr.bf16.mxu0 0
      %2141 = vmatpush2.bf16.msra.mxu0 0
      %2142 = vmatprep.subr.bf16.mxu0 0
      %2143 = vmatpush2.bf16.msra.mxu0 0
      %2144 = vmatprep.subr.bf16.mxu0 0
      %2145 = vmatpush2.bf16.msra.mxu0 0
      %2146 = vmatprep.mubr.bf16.mxu0 0
      %2147 = vmatmul.mubr.bf16.gmra.mxu0 %v2109
      %v2148 = vpop.f32.mrf.mxu0
      %v2149 = vadd.f32 0.0, %v2148
      %v2150 = vpop.f32.mrf.mxu0
      %v2151 = vpop.f32.mrf.mxu0
      %v2152 = vpop.f32.mrf.mxu0
      %2153 = vdwg.mxu0
      %v2155 = vsel %vm1770, %v2010, 0
      %v2158 = vsel %vm2018, %v2014, 0
      %2160 = vmatprep.subr.bf16.mxu0 0
      %2161 = vmatpush1.bf16.msra.mxu0 0
      %2162 = vmatprep.subr.bf16.mxu0 0
      %2163 = vmatpush1.bf16.msra.mxu0 0
      %2164 = vmatprep.subr.bf16.mxu0 0
      %2165 = vmatpush1.bf16.msra.mxu0 0
      %2166 = vmatprep.subr.bf16.mxu0 0
      %2167 = vmatpush1.bf16.msra.mxu0 0
      %2168 = vmatprep.subr.bf16.mxu0 0
      %2169 = vmatpush1.bf16.msra.mxu0 0
      %2170 = vmatprep.subr.bf16.mxu0 0
      %2171 = vmatpush1.bf16.msra.mxu0 0
      %2172 = vmatprep.subr.bf16.mxu0 0
      %2173 = vmatpush1.bf16.msra.mxu0 0
      %2174 = vmatprep.subr.bf16.mxu0 0
      %2175 = vmatpush1.bf16.msra.mxu0 %v2158
      %2176 = vmatprep.subr.bf16.mxu0 0
      %2177 = vmatpush2.bf16.msra.mxu0 0
      %2178 = vmatprep.subr.bf16.mxu0 0
      %2179 = vmatpush2.bf16.msra.mxu0 0
      %2180 = vmatprep.subr.bf16.mxu0 0
      %2181 = vmatpush2.bf16.msra.mxu0 0
      %2182 = vmatprep.subr.bf16.mxu0 0
      %2183 = vmatpush2.bf16.msra.mxu0 0
      %2184 = vmatprep.subr.bf16.mxu0 0
      %2185 = vmatpush2.bf16.msra.mxu0 0
      %2186 = vmatprep.subr.bf16.mxu0 0
      %2187 = vmatpush2.bf16.msra.mxu0 0
      %2188 = vmatprep.subr.bf16.mxu0 0
      %2189 = vmatpush2.bf16.msra.mxu0 0
      %2190 = vmatprep.subr.bf16.mxu0 0
      %2191 = vmatpush2.bf16.msra.mxu0 0
      %2192 = vmatprep.mubr.bf16.mxu0 0
      %2193 = vmatmul.mubr.bf16.gmra.mxu0 %v2155
      %v2194 = vpop.f32.mrf.mxu0
      %v2195 = vadd.f32 0.0, %v2194
      %v2196 = vpop.f32.mrf.mxu0
      %v2197 = vpop.f32.mrf.mxu0
      %v2198 = vpop.f32.mrf.mxu0
      %2199 = vdwg.mxu0
      %v2200 = vpack.c.bf16 %v2057, %v2057
      %v2201 = vpack.c.bf16 %v2103, %v2103
      %v2202 = vpack.c.bf16 %v2149, %v2149
      %v2203 = vpack.c.bf16 %v2195, %v2195
      %v2204 = vld [vmem:[%s13] sm:$0xf]
      %v2205 = vld [vmem:[%s13 + $0x4] sm:$0xf]
      %v2206 = vld [vmem:[%s13 + $0x8] sm:$0xf]
      %v2207 = vld [vmem:[%s13 + $0xc] sm:$0xf]
      %v2209 = vsel %vm1770, %v2200, 0
      %v2212 = vsel %vm2018, %v2204, 0
      %2214 = vmatprep.subr.bf16.mxu0 0
      %2215 = vmatpush1.bf16.msra.mxu0 0
      %2216 = vmatprep.subr.bf16.mxu0 0
      %2217 = vmatpush1.bf16.msra.mxu0 0
      %2218 = vmatprep.subr.bf16.mxu0 0
      %2219 = vmatpush1.bf16.msra.mxu0 0
      %2220 = vmatprep.subr.bf16.mxu0 0
      %2221 = vmatpush1.bf16.msra.mxu0 0
      %2222 = vmatprep.subr.bf16.mxu0 0
      %2223 = vmatpush1.bf16.msra.mxu0 0
      %2224 = vmatprep.subr.bf16.mxu0 0
      %2225 = vmatpush1.bf16.msra.mxu0 0
      %2226 = vmatprep.subr.bf16.mxu0 0
      %2227 = vmatpush1.bf16.msra.mxu0 0
      %2228 = vmatprep.subr.bf16.mxu0 0
      %2229 = vmatpush1.bf16.msra.mxu0 %v2212
      %2230 = vmatprep.subr.bf16.mxu0 0
      %2231 = vmatpush2.bf16.msra.mxu0 0
      %2232 = vmatprep.subr.bf16.mxu0 0
      %2233 = vmatpush2.bf16.msra.mxu0 0
      %2234 = vmatprep.subr.bf16.mxu0 0
      %2235 = vmatpush2.bf16.msra.mxu0 0
      %2236 = vmatprep.subr.bf16.mxu0 0
      %2237 = vmatpush2.bf16.msra.mxu0 0
      %2238 = vmatprep.subr.bf16.mxu0 0
      %2239 = vmatpush2.bf16.msra.mxu0 0
      %2240 = vmatprep.subr.bf16.mxu0 0
      %2241 = vmatpush2.bf16.msra.mxu0 0
      %2242 = vmatprep.subr.bf16.mxu0 0
      %2243 = vmatpush2.bf16.msra.mxu0 0
      %2244 = vmatprep.subr.bf16.mxu0 0
      %2245 = vmatpush2.bf16.msra.mxu0 0
      %2246 = vmatprep.mubr.bf16.mxu0 0
      %2247 = vmatmul.mubr.bf16.gmra.mxu0 %v2209
      %v2248 = vpop.f32.mrf.mxu0
      %v2249 = vadd.f32 0.0, %v2248
      %v2250 = vpop.f32.mrf.mxu0
      %v2251 = vpop.f32.mrf.mxu0
      %v2252 = vpop.f32.mrf.mxu0
      %2253 = vdwg.mxu0
      %v2255 = vsel %vm1770, %v2201, 0
      %v2258 = vsel %vm2018, %v2205, 0
      %2260 = vmatprep.subr.bf16.mxu0 0
      %2261 = vmatpush1.bf16.msra.mxu0 0
      %2262 = vmatprep.subr.bf16.mxu0 0
      %2263 = vmatpush1.bf16.msra.mxu0 0
      %2264 = vmatprep.subr.bf16.mxu0 0
      %2265 = vmatpush1.bf16.msra.mxu0 0
      %2266 = vmatprep.subr.bf16.mxu0 0
      %2267 = vmatpush1.bf16.msra.mxu0 0
      %2268 = vmatprep.subr.bf16.mxu0 0
      %2269 = vmatpush1.bf16.msra.mxu0 0
      %2270 = vmatprep.subr.bf16.mxu0 0
      %2271 = vmatpush1.bf16.msra.mxu0 0
      %2272 = vmatprep.subr.bf16.mxu0 0
      %2273 = vmatpush1.bf16.msra.mxu0 0
      %2274 = vmatprep.subr.bf16.mxu0 0
      %2275 = vmatpush1.bf16.msra.mxu0 %v2258
      %2276 = vmatprep.subr.bf16.mxu0 0
      %2277 = vmatpush2.bf16.msra.mxu0 0
      %2278 = vmatprep.subr.bf16.mxu0 0
      %2279 = vmatpush2.bf16.msra.mxu0 0
      %2280 = vmatprep.subr.bf16.mxu0 0
      %2281 = vmatpush2.bf16.msra.mxu0 0
      %2282 = vmatprep.subr.bf16.mxu0 0
      %2283 = vmatpush2.bf16.msra.mxu0 0
      %2284 = vmatprep.subr.bf16.mxu0 0
      %2285 = vmatpush2.bf16.msra.mxu0 0
      %2286 = vmatprep.subr.bf16.mxu0 0
      %2287 = vmatpush2.bf16.msra.mxu0 0
      %2288 = vmatprep.subr.bf16.mxu0 0
      %2289 = vmatpush2.bf16.msra.mxu0 0
      %2290 = vmatprep.subr.bf16.mxu0 0
      %2291 = vmatpush2.bf16.msra.mxu0 0
      %2292 = vmatprep.mubr.bf16.mxu0 0
      %2293 = vmatmul.mubr.bf16.gmra.mxu0 %v2255
      %v2294 = vpop.f32.mrf.mxu0
      %v2295 = vadd.f32 0.0, %v2294
      %v2296 = vpop.f32.mrf.mxu0
      %v2297 = vpop.f32.mrf.mxu0
      %v2298 = vpop.f32.mrf.mxu0
      %2299 = vdwg.mxu0
      %v2301 = vsel %vm1770, %v2202, 0
      %v2304 = vsel %vm2018, %v2206, 0
      %2306 = vmatprep.subr.bf16.mxu0 0
      %2307 = vmatpush1.bf16.msra.mxu0 0
      %2308 = vmatprep.subr.bf16.mxu0 0
      %2309 = vmatpush1.bf16.msra.mxu0 0
      %2310 = vmatprep.subr.bf16.mxu0 0
      %2311 = vmatpush1.bf16.msra.mxu0 0
      %2312 = vmatprep.subr.bf16.mxu0 0
      %2313 = vmatpush1.bf16.msra.mxu0 0
      %2314 = vmatprep.subr.bf16.mxu0 0
      %2315 = vmatpush1.bf16.msra.mxu0 0
      %2316 = vmatprep.subr.bf16.mxu0 0
      %2317 = vmatpush1.bf16.msra.mxu0 0
      %2318 = vmatprep.subr.bf16.mxu0 0
      %2319 = vmatpush1.bf16.msra.mxu0 0
      %2320 = vmatprep.subr.bf16.mxu0 0
      %2321 = vmatpush1.bf16.msra.mxu0 %v2304
      %2322 = vmatprep.subr.bf16.mxu0 0
      %2323 = vmatpush2.bf16.msra.mxu0 0
      %2324 = vmatprep.subr.bf16.mxu0 0
      %2325 = vmatpush2.bf16.msra.mxu0 0
      %2326 = vmatprep.subr.bf16.mxu0 0
      %2327 = vmatpush2.bf16.msra.mxu0 0
      %2328 = vmatprep.subr.bf16.mxu0 0
      %2329 = vmatpush2.bf16.msra.mxu0 0
      %2330 = vmatprep.subr.bf16.mxu0 0
      %2331 = vmatpush2.bf16.msra.mxu0 0
      %2332 = vmatprep.subr.bf16.mxu0 0
      %2333 = vmatpush2.bf16.msra.mxu0 0
      %2334 = vmatprep.subr.bf16.mxu0 0
      %2335 = vmatpush2.bf16.msra.mxu0 0
      %2336 = vmatprep.subr.bf16.mxu0 0
      %2337 = vmatpush2.bf16.msra.mxu0 0
      %2338 = vmatprep.mubr.bf16.mxu0 0
      %2339 = vmatmul.mubr.bf16.gmra.mxu0 %v2301
      %v2340 = vpop.f32.mrf.mxu0
      %v2341 = vadd.f32 0.0, %v2340
      %v2342 = vpop.f32.mrf.mxu0
      %v2343 = vpop.f32.mrf.mxu0
      %v2344 = vpop.f32.mrf.mxu0
      %2345 = vdwg.mxu0
      %v2347 = vsel %vm1770, %v2203, 0
      %v2350 = vsel %vm2018, %v2207, 0
      %2352 = vmatprep.subr.bf16.mxu0 0
      %2353 = vmatpush1.bf16.msra.mxu0 0
      %2354 = vmatprep.subr.bf16.mxu0 0
      %2355 = vmatpush1.bf16.msra.mxu0 0
      %2356 = vmatprep.subr.bf16.mxu0 0
      %2357 = vmatpush1.bf16.msra.mxu0 0
      %2358 = vmatprep.subr.bf16.mxu0 0
      %2359 = vmatpush1.bf16.msra.mxu0 0
      %2360 = vmatprep.subr.bf16.mxu0 0
      %2361 = vmatpush1.bf16.msra.mxu0 0
      %2362 = vmatprep.subr.bf16.mxu0 0
      %2363 = vmatpush1.bf16.msra.mxu0 0
      %2364 = vmatprep.subr.bf16.mxu0 0
      %2365 = vmatpush1.bf16.msra.mxu0 0
      %2366 = vmatprep.subr.bf16.mxu0 0
      %2367 = vmatpush1.bf16.msra.mxu0 %v2350
      %2368 = vmatprep.subr.bf16.mxu0 0
      %2369 = vmatpush2.bf16.msra.mxu0 0
      %2370 = vmatprep.subr.bf16.mxu0 0
      %2371 = vmatpush2.bf16.msra.mxu0 0
      %2372 = vmatprep.subr.bf16.mxu0 0
      %2373 = vmatpush2.bf16.msra.mxu0 0
      %2374 = vmatprep.subr.bf16.mxu0 0
      %2375 = vmatpush2.bf16.msra.mxu0 0
      %2376 = vmatprep.subr.bf16.mxu0 0
      %2377 = vmatpush2.bf16.msra.mxu0 0
      %2378 = vmatprep.subr.bf16.mxu0 0
      %2379 = vmatpush2.bf16.msra.mxu0 0
      %2380 = vmatprep.subr.bf16.mxu0 0
      %2381 = vmatpush2.bf16.msra.mxu0 0
      %2382 = vmatprep.subr.bf16.mxu0 0
      %2383 = vmatpush2.bf16.msra.mxu0 0
      %2384 = vmatprep.mubr.bf16.mxu0 0
      %2385 = vmatmul.mubr.bf16.gmra.mxu0 %v2347
      %v2386 = vpop.f32.mrf.mxu0
      %v2387 = vadd.f32 0.0, %v2386
      %v2388 = vpop.f32.mrf.mxu0
      %v2389 = vpop.f32.mrf.mxu0
      %v2390 = vpop.f32.mrf.mxu0
      %2391 = vdwg.mxu0
      %v2392 = vsel %vm963, %v2249, 0.0
      %v2393 = vsel %vm963, %v2295, 0.0
      %v2394 = vadd.f32 %v2392, %v2393
      %v2395 = vsel %vm963, %v2341, 0.0
      %v2396 = vadd.f32 %v2394, %v2395
      %v2397 = vsel %vm963, %v2387, 0.0
      %v2398 = vadd.f32 %v2396, %v2397
      %v2399 = vld [vmem:[%s14] sm:$0x1]
      %v2401 = vlaneseq
      %v2402 = vshrl.u32 %v2401, 7
      %v2403 = vsub.s32 0, %v2402
      %v2404 = vrot.slane %v2399, %v2403
      %v2406 = vadd.f32 %v2398, %v2404
      %v2407 = vadd.f32 %v991, %v2406
      %v2408 = vld [vmem:[%s15] sm:$0x1]
      %v2409 = vld [vmem:[%s16] sm:$0x1]
      %v2410 = vsel %vm963, %v2407, 0.0
      %2411 = vadd.xlane.f32.xlu0 %v2410
      %v2412 = vpop.xlane.xlu0 %2411
      %v2413 = vmul.f32 %v2412, %v967
      %v2414 = vsub.f32 %v2407, %v2413
      %v2415 = vmul.f32 %v2414, %v2414
      %v2416 = vsel %vm963, %v2415, 0.0
      %2417 = vadd.xlane.f32.xlu0 %v2416
      %v2418 = vpop.xlane.xlu0 %2417
      %v2419 = vmul.f32 %v2418, %v967
      %v2420 = vadd.f32 %v2419, 1e-12
      %v2421 = vrsqrt.pop %v2420
      %v2422 = vmul.f32 %v2414, %v2421
      %v2424 = vlaneseq
      %v2425 = vshrl.u32 %v2424, 7
      %v2426 = vsub.s32 0, %v2425
      %v2427 = vrot.slane %v2408, %v2426
      %v2429 = vmul.f32 %v2422, %v2427
      %v2431 = vlaneseq
      %v2432 = vshrl.u32 %v2431, 7
      %v2433 = vsub.s32 0, %v2432
      %v2434 = vrot.slane %v2409, %v2433
      %v2436 = vadd.f32 %v2429, %v2434
      %v2437 = vpack.c.bf16 %v2436, %v2436
      %v2438 = vld [vmem:[%s17] sm:$0xf]
      %v2439 = vld [vmem:[%s17 + $0x4] sm:$0xf]
      %v2440 = vld [vmem:[%s17 + $0x8] sm:$0xf]
      %v2441 = vld [vmem:[%s17 + $0xc] sm:$0xf]
      %v2442 = vld [vmem:[%s18] sm:$0x1]
      %v2444 = vlaneseq
      %v2445 = vshrl.u32 %v2444, 7
      %v2446 = vsub.s32 0, %v2445
      %v2447 = vrot.slane %v2442, %v2446
      %v2453 = vunpack.c.l.b16 %v2438
      %v2454 = vunpack.c.l.b16 %v2439
      %v2455 = vunpack.c.l.b16 %v2440
      %v2456 = vunpack.c.l.b16 %v2441
      %v2457 = vpack.c.b16 %v2454, %v2453
      %v2458 = vpack.c.b16 %v2456, %v2455
      %v2462 = vsel %vm963, %v2437, 0
      %2464 = vmatprep.subr.bf16.mxu0 0
      %2465 = vmatpush1.bf16.msra.mxu0 0
      %2466 = vmatprep.subr.bf16.mxu0 0
      %2467 = vmatpush1.bf16.msra.mxu0 0
      %2468 = vmatprep.subr.bf16.mxu0 0
      %2469 = vmatpush1.bf16.msra.mxu0 0
      %2470 = vmatprep.subr.bf16.mxu0 0
      %2471 = vmatpush1.bf16.msra.mxu0 0
      %2472 = vmatprep.subr.bf16.mxu0 0
      %2473 = vmatpush1.bf16.msra.mxu0 0
      %2474 = vmatprep.subr.bf16.mxu0 0
      %2475 = vmatpush1.bf16.msra.mxu0 0
      %2476 = vmatprep.subr.bf16.mxu0 0
      %2477 = vmatpush1.bf16.msra.mxu0 %v2458
      %2478 = vmatprep.subr.bf16.mxu0 0
      %2479 = vmatpush1.bf16.msra.mxu0 %v2457
      %2480 = vmatprep.subr.bf16.mxu0 0
      %2481 = vmatpush2.bf16.msra.mxu0 0
      %2482 = vmatprep.subr.bf16.mxu0 0
      %2483 = vmatpush2.bf16.msra.mxu0 0
      %2484 = vmatprep.subr.bf16.mxu0 0
      %2485 = vmatpush2.bf16.msra.mxu0 0
      %2486 = vmatprep.subr.bf16.mxu0 0
      %2487 = vmatpush2.bf16.msra.mxu0 0
      %2488 = vmatprep.subr.bf16.mxu0 0
      %2489 = vmatpush2.bf16.msra.mxu0 0
      %2490 = vmatprep.subr.bf16.mxu0 0
      %2491 = vmatpush2.bf16.msra.mxu0 0
      %2492 = vmatprep.subr.bf16.mxu0 0
      %2493 = vmatpush2.bf16.msra.mxu0 0
      %2494 = vmatprep.subr.bf16.mxu0 0
      %2495 = vmatpush2.bf16.msra.mxu0 0
      %2496 = vmatprep.mubr.bf16.mxu0 0
      %2497 = vmatmul.mubr.bf16.gmra.mxu0 %v2462
      %v2498 = vpop.f32.mrf.mxu0
      %v2499 = vadd.f32 %v2447, %v2498
      %v2500 = vpop.f32.mrf.mxu0
      %v2501 = vpop.f32.mrf.mxu0
      %v2502 = vpop.f32.mrf.mxu0
      %2503 = vdwg.mxu0
      %v2504 = vmul.f32 %v2499, %v2499
      %v2505 = vmul.f32 %v2499, %v2504
      %v2506 = vmul.f32 %v2505, 0.044715
      %v2507 = vadd.f32 %v2499, %v2506
      %v2508 = vmul.f32 %v2507, 0.7978846
      %v2509 = vtanh.pop %v2508
      %v2510 = vadd.f32 %v2509, 1.0
      %v2511 = vmul.f32 %v2510, 0.5
      %v2512 = vmul.f32 %v2499, %v2511
      %v2513 = vpack.c.bf16 %v2512, %v2512
      %v2514 = vld [vmem:[%s19] sm:$0xf]
      %v2515 = vld [vmem:[%s19 + $0x4] sm:$0xf]
      %v2516 = vld [vmem:[%s19 + $0x8] sm:$0xf]
      %v2517 = vld [vmem:[%s19 + $0xc] sm:$0xf]
      %v2518 = vld [vmem:[%s19 + $0x10] sm:$0xf]
      %v2519 = vld [vmem:[%s19 + $0x14] sm:$0xf]
      %v2520 = vld [vmem:[%s19 + $0x18] sm:$0xf]
      %v2521 = vld [vmem:[%s19 + $0x1c] sm:$0xf]
      %v2522 = vld [vmem:[%s20] sm:$0x1]
      %v2524 = vlaneseq
      %v2525 = vshrl.u32 %v2524, 7
      %v2526 = vsub.s32 0, %v2525
      %v2527 = vrot.slane %v2522, %v2526
      %v2537 = vunpack.c.l.b16 %v2514
      %v2538 = vunpack.c.l.b16 %v2515
      %v2539 = vunpack.c.l.b16 %v2516
      %v2540 = vunpack.c.l.b16 %v2517
      %v2541 = vunpack.c.l.b16 %v2518
      %v2542 = vunpack.c.l.b16 %v2519
      %v2543 = vunpack.c.l.b16 %v2520
      %v2544 = vunpack.c.l.b16 %v2521
      %v2545 = vpack.c.b16 %v2538, %v2537
      %v2546 = vpack.c.b16 %v2540, %v2539
      %v2547 = vpack.c.b16 %v2542, %v2541
      %v2548 = vpack.c.b16 %v2544, %v2543
      %vm2553 = vcmask 523264
      %v2555 = vsel %vm2553, %v2513, 0
      %2557 = vmatprep.subr.bf16.mxu0 0
      %2558 = vmatpush1.bf16.msra.mxu0 0
      %2559 = vmatprep.subr.bf16.mxu0 0
      %2560 = vmatpush1.bf16.msra.mxu0 0
      %2561 = vmatprep.subr.bf16.mxu0 0
      %2562 = vmatpush1.bf16.msra.mxu0 0
      %2563 = vmatprep.subr.bf16.mxu0 0
      %2564 = vmatpush1.bf16.msra.mxu0 0
      %2565 = vmatprep.subr.bf16.mxu0 0
      %2566 = vmatpush1.bf16.msra.mxu0 %v2548
      %2567 = vmatprep.subr.bf16.mxu0 0
      %2568 = vmatpush1.bf16.msra.mxu0 %v2547
      %2569 = vmatprep.subr.bf16.mxu0 0
      %2570 = vmatpush1.bf16.msra.mxu0 %v2546
      %2571 = vmatprep.subr.bf16.mxu0 0
      %2572 = vmatpush1.bf16.msra.mxu0 %v2545
      %2573 = vmatprep.subr.bf16.mxu0 0
      %2574 = vmatpush2.bf16.msra.mxu0 0
      %2575 = vmatprep.subr.bf16.mxu0 0
      %2576 = vmatpush2.bf16.msra.mxu0 0
      %2577 = vmatprep.subr.bf16.mxu0 0
      %2578 = vmatpush2.bf16.msra.mxu0 0
      %2579 = vmatprep.subr.bf16.mxu0 0
      %2580 = vmatpush2.bf16.msra.mxu0 0
      %2581 = vmatprep.subr.bf16.mxu0 0
      %2582 = vmatpush2.bf16.msra.mxu0 0
      %2583 = vmatprep.subr.bf16.mxu0 0
      %2584 = vmatpush2.bf16.msra.mxu0 0
      %2585 = vmatprep.subr.bf16.mxu0 0
      %2586 = vmatpush2.bf16.msra.mxu0 0
      %2587 = vmatprep.subr.bf16.mxu0 0
      %2588 = vmatpush2.bf16.msra.mxu0 0
      %2589 = vmatprep.mubr.bf16.mxu0 0
      %2590 = vmatmul.mubr.bf16.gmra.mxu0 %v2555
      %v2591 = vpop.f32.mrf.mxu0
      %v2592 = vadd.f32 %v2527, %v2591
      %v2593 = vpop.f32.mrf.mxu0
      %v2594 = vpop.f32.mrf.mxu0
      %v2595 = vpop.f32.mrf.mxu0
      %2596 = vdwg.mxu0
      %v2597 = vadd.f32 %v2436, %v2592
      %v2598 = vld [vmem:[%s21] sm:$0x1]
      %v2599 = vld [vmem:[%s22] sm:$0x1]
      %v2600 = vsel %vm963, %v2597, 0.0
      %2601 = vadd.xlane.f32.xlu0 %v2600
      %v2602 = vpop.xlane.xlu0 %2601
      %v2603 = vmul.f32 %v2602, %v967
      %v2604 = vsub.f32 %v2597, %v2603
      %v2605 = vmul.f32 %v2604, %v2604
      %v2606 = vsel %vm963, %v2605, 0.0
      %2607 = vadd.xlane.f32.xlu0 %v2606
      %v2608 = vpop.xlane.xlu0 %2607
      %v2609 = vmul.f32 %v2608, %v967
      %v2610 = vadd.f32 %v2609, 1e-12
      %v2611 = vrsqrt.pop %v2610
      %v2612 = vmul.f32 %v2604, %v2611
      %v2614 = vlaneseq
      %v2615 = vshrl.u32 %v2614, 7
      %v2616 = vsub.s32 0, %v2615
      %v2617 = vrot.slane %v2598, %v2616
      %v2619 = vmul.f32 %v2612, %v2617
      %v2621 = vlaneseq
      %v2622 = vshrl.u32 %v2621, 7
      %v2623 = vsub.s32 0, %v2622
      %v2624 = vrot.slane %v2599, %v2623
      %v2626 = vadd.f32 %v2619, %v2624
      %v2627 = vpack.c.bf16 %v2626, %v2626
      %s2628 = scalar_lea.vmem %s7, 64
      %v2629 = vld [vmem:[%s2628] sm:$0xf]
      %v2630 = vld [vmem:[%s2628 + $0x4] sm:$0xf]
      %v2631 = vld [vmem:[%s2628 + $0x8] sm:$0xf]
      %v2632 = vld [vmem:[%s2628 + $0xc] sm:$0xf]
      %v2633 = vld [vmem:[%s2628 + $0x10] sm:$0xf]
      %v2634 = vld [vmem:[%s2628 + $0x14] sm:$0xf]
      %v2635 = vld [vmem:[%s2628 + $0x18] sm:$0xf]
      %v2636 = vld [vmem:[%s2628 + $0x1c] sm:$0xf]
      %v2637 = vld [vmem:[%s2628 + $0x20] sm:$0xf]
      %v2638 = vld [vmem:[%s2628 + $0x24] sm:$0xf]
      %v2639 = vld [vmem:[%s2628 + $0x28] sm:$0xf]
      %v2640 = vld [vmem:[%s2628 + $0x2c] sm:$0xf]
      %v2641 = vld [vmem:[%s2628 + $0x30] sm:$0xf]
      %v2642 = vld [vmem:[%s2628 + $0x34] sm:$0xf]
      %v2643 = vld [vmem:[%s2628 + $0x38] sm:$0xf]
      %v2644 = vld [vmem:[%s2628 + $0x3c] sm:$0xf]
      %s2645 = scalar_lea.vmem %s10, 4
      %v2646 = vld [vmem:[%s2645] sm:$0x1]
      %v2647 = vld [vmem:[%s2645 + $0x1] sm:$0x1]
      %v2648 = vld [vmem:[%s2645 + $0x2] sm:$0x1]
      %v2649 = vld [vmem:[%s2645 + $0x3] sm:$0x1]
      %v2654 = vlaneseq
      %v2655 = vshrl.u32 %v2654, 7
      %v2656 = vsub.s32 0, %v2655
      %v2657 = vrot.slane %v2646, %v2656
      %v2658 = vlaneseq
      %v2659 = vshrl.u32 %v2658, 7
      %v2660 = vsub.s32 0, %v2659
      %v2661 = vrot.slane %v2647, %v2660
      %v2662 = vlaneseq
      %v2663 = vshrl.u32 %v2662, 7
      %v2664 = vsub.s32 0, %v2663
      %v2665 = vrot.slane %v2648, %v2664
      %v2666 = vlaneseq
      %v2667 = vshrl.u32 %v2666, 7
      %v2668 = vsub.s32 0, %v2667
      %v2669 = vrot.slane %v2649, %v2668
      %v2678 = vunpack.c.l.b16 %v2629
      %v2679 = vunpack.c.l.b16 %v2630
      %v2680 = vunpack.c.l.b16 %v2631
      %v2681 = vunpack.c.l.b16 %v2632
      %v2682 = vpack.c.b16 %v2679, %v2678
      %v2683 = vpack.c.b16 %v2681, %v2680
      %v2687 = vsel %vm963, %v2627, 0
      %2689 = vmatprep.subr.bf16.mxu0 0
      %2690 = vmatpush1.bf16.msra.mxu0 0
      %2691 = vmatprep.subr.bf16.mxu0 0
      %2692 = vmatpush1.bf16.msra.mxu0 0
      %2693 = vmatprep.subr.bf16.mxu0 0
      %2694 = vmatpush1.bf16.msra.mxu0 0
      %2695 = vmatprep.subr.bf16.mxu0 0
      %2696 = vmatpush1.bf16.msra.mxu0 0
      %2697 = vmatprep.subr.bf16.mxu0 0
      %2698 = vmatpush1.bf16.msra.mxu0 0
      %2699 = vmatprep.subr.bf16.mxu0 0
      %2700 = vmatpush1.bf16.msra.mxu0 0
      %2701 = vmatprep.subr.bf16.mxu0 0
      %2702 = vmatpush1.bf16.msra.mxu0 %v2683
      %2703 = vmatprep.subr.bf16.mxu0 0
      %2704 = vmatpush1.bf16.msra.mxu0 %v2682
      %2705 = vmatprep.subr.bf16.mxu0 0
      %2706 = vmatpush2.bf16.msra.mxu0 0
      %2707 = vmatprep.subr.bf16.mxu0 0
      %2708 = vmatpush2.bf16.msra.mxu0 0
      %2709 = vmatprep.subr.bf16.mxu0 0
      %2710 = vmatpush2.bf16.msra.mxu0 0
      %2711 = vmatprep.subr.bf16.mxu0 0
      %2712 = vmatpush2.bf16.msra.mxu0 0
      %2713 = vmatprep.subr.bf16.mxu0 0
      %2714 = vmatpush2.bf16.msra.mxu0 0
      %2715 = vmatprep.subr.bf16.mxu0 0
      %2716 = vmatpush2.bf16.msra.mxu0 0
      %2717 = vmatprep.subr.bf16.mxu0 0
      %2718 = vmatpush2.bf16.msra.mxu0 0
      %2719 = vmatprep.subr.bf16.mxu0 0
      %2720 = vmatpush2.bf16.msra.mxu0 0
      %2721 = vmatprep.mubr.bf16.mxu0 0
      %2722 = vmatmul.mubr.bf16.gmra.mxu0 %v2687
      %v2723 = vpop.f32.mrf.mxu0
      %v2724 = vadd.f32 %v2657, %v2723
      %v2725 = vpop.f32.mrf.mxu0
      %v2726 = vpop.f32.mrf.mxu0
      %v2727 = vpop.f32.mrf.mxu0
      %2728 = vdwg.mxu0
      %v2733 = vunpack.c.l.b16 %v2633
      %v2734 = vunpack.c.l.b16 %v2634
      %v2735 = vunpack.c.l.b16 %v2635
      %v2736 = vunpack.c.l.b16 %v2636
      %v2737 = vpack.c.b16 %v2734, %v2733
      %v2738 = vpack.c.b16 %v2736, %v2735
      %2741 = vmatprep.subr.bf16.mxu0 0
      %2742 = vmatpush1.bf16.msra.mxu0 0
      %2743 = vmatprep.subr.bf16.mxu0 0
      %2744 = vmatpush1.bf16.msra.mxu0 0
      %2745 = vmatprep.subr.bf16.mxu0 0
      %2746 = vmatpush1.bf16.msra.mxu0 0
      %2747 = vmatprep.subr.bf16.mxu0 0
      %2748 = vmatpush1.bf16.msra.mxu0 0
      %2749 = vmatprep.subr.bf16.mxu0 0
      %2750 = vmatpush1.bf16.msra.mxu0 0
      %2751 = vmatprep.subr.bf16.mxu0 0
      %2752 = vmatpush1.bf16.msra.mxu0 0
      %2753 = vmatprep.subr.bf16.mxu0 0
      %2754 = vmatpush1.bf16.msra.mxu0 %v2738
      %2755 = vmatprep.subr.bf16.mxu0 0
      %2756 = vmatpush1.bf16.msra.mxu0 %v2737
      %2757 = vmatprep.subr.bf16.mxu0 0
      %2758 = vmatpush2.bf16.msra.mxu0 0
      %2759 = vmatprep.subr.bf16.mxu0 0
      %2760 = vmatpush2.bf16.msra.mxu0 0
      %2761 = vmatprep.subr.bf16.mxu0 0
      %2762 = vmatpush2.bf16.msra.mxu0 0
      %2763 = vmatprep.subr.bf16.mxu0 0
      %2764 = vmatpush2.bf16.msra.mxu0 0
      %2765 = vmatprep.subr.bf16.mxu0 0
      %2766 = vmatpush2.bf16.msra.mxu0 0
      %2767 = vmatprep.subr.bf16.mxu0 0
      %2768 = vmatpush2.bf16.msra.mxu0 0
      %2769 = vmatprep.subr.bf16.mxu0 0
      %2770 = vmatpush2.bf16.msra.mxu0 0
      %2771 = vmatprep.subr.bf16.mxu0 0
      %2772 = vmatpush2.bf16.msra.mxu0 0
      %2773 = vmatprep.mubr.bf16.mxu0 0
      %2774 = vmatmul.mubr.bf16.gmra.mxu0 %v2687
      %v2775 = vpop.f32.mrf.mxu0
      %v2776 = vadd.f32 %v2661, %v2775
      %v2777 = vpop.f32.mrf.mxu0
      %v2778 = vpop.f32.mrf.mxu0
      %v2779 = vpop.f32.mrf.mxu0
      %2780 = vdwg.mxu0
      %v2785 = vunpack.c.l.b16 %v2637
      %v2786 = vunpack.c.l.b16 %v2638
      %v2787 = vunpack.c.l.b16 %v2639
      %v2788 = vunpack.c.l.b16 %v2640
      %v2789 = vpack.c.b16 %v2786, %v2785
      %v2790 = vpack.c.b16 %v2788, %v2787
      %2793 = vmatprep.subr.bf16.mxu0 0
      %2794 = vmatpush1.bf16.msra.mxu0 0
      %2795 = vmatprep.subr.bf16.mxu0 0
      %2796 = vmatpush1.bf16.msra.mxu0 0
      %2797 = vmatprep.subr.bf16.mxu0 0
      %2798 = vmatpush1.bf16.msra.mxu0 0
      %2799 = vmatprep.subr.bf16.mxu0 0
      %2800 = vmatpush1.bf16.msra.mxu0 0
      %2801 = vmatprep.subr.bf16.mxu0 0
      %2802 = vmatpush1.bf16.msra.mxu0 0
      %2803 = vmatprep.subr.bf16.mxu0 0
      %2804 = vmatpush1.bf16.msra.mxu0 0
      %2805 = vmatprep.subr.bf16.mxu0 0
      %2806 = vmatpush1.bf16.msra.mxu0 %v2790
      %2807 = vmatprep.subr.bf16.mxu0 0
      %2808 = vmatpush1.bf16.msra.mxu0 %v2789
      %2809 = vmatprep.subr.bf16.mxu0 0
      %2810 = vmatpush2.bf16.msra.mxu0 0
      %2811 = vmatprep.subr.bf16.mxu0 0
      %2812 = vmatpush2.bf16.msra.mxu0 0
      %2813 = vmatprep.subr.bf16.mxu0 0
      %2814 = vmatpush2.bf16.msra.mxu0 0
      %2815 = vmatprep.subr.bf16.mxu0 0
      %2816 = vmatpush2.bf16.msra.mxu0 0
      %2817 = vmatprep.subr.bf16.mxu0 0
      %2818 = vmatpush2.bf16.msra.mxu0 0
      %2819 = vmatprep.subr.bf16.mxu0 0
      %2820 = vmatpush2.bf16.msra.mxu0 0
      %2821 = vmatprep.subr.bf16.mxu0 0
      %2822 = vmatpush2.bf16.msra.mxu0 0
      %2823 = vmatprep.subr.bf16.mxu0 0
      %2824 = vmatpush2.bf16.msra.mxu0 0
      %2825 = vmatprep.mubr.bf16.mxu0 0
      %2826 = vmatmul.mubr.bf16.gmra.mxu0 %v2687
      %v2827 = vpop.f32.mrf.mxu0
      %v2828 = vadd.f32 %v2665, %v2827
      %v2829 = vpop.f32.mrf.mxu0
      %v2830 = vpop.f32.mrf.mxu0
      %v2831 = vpop.f32.mrf.mxu0
      %2832 = vdwg.mxu0
      %v2837 = vunpack.c.l.b16 %v2641
      %v2838 = vunpack.c.l.b16 %v2642
      %v2839 = vunpack.c.l.b16 %v2643
      %v2840 = vunpack.c.l.b16 %v2644
      %v2841 = vpack.c.b16 %v2838, %v2837
      %v2842 = vpack.c.b16 %v2840, %v2839
      %2845 = vmatprep.subr.bf16.mxu0 0
      %2846 = vmatpush1.bf16.msra.mxu0 0
      %2847 = vmatprep.subr.bf16.mxu0 0
      %2848 = vmatpush1.bf16.msra.mxu0 0
      %2849 = vmatprep.subr.bf16.mxu0 0
      %2850 = vmatpush1.bf16.msra.mxu0 0
      %2851 = vmatprep.subr.bf16.mxu0 0
      %2852 = vmatpush1.bf16.msra.mxu0 0
      %2853 = vmatprep.subr.bf16.mxu0 0
      %2854 = vmatpush1.bf16.msra.mxu0 0
      %2855 = vmatprep.subr.bf16.mxu0 0
      %2856 = vmatpush1.bf16.msra.mxu0 0
      %2857 = vmatprep.subr.bf16.mxu0 0
      %2858 = vmatpush1.bf16.msra.mxu0 %v2842
      %2859 = vmatprep.subr.bf16.mxu0 0
      %2860 = vmatpush1.bf16.msra.mxu0 %v2841
      %2861 = vmatprep.subr.bf16.mxu0 0
      %2862 = vmatpush2.bf16.msra.mxu0 0
      %2863 = vmatprep.subr.bf16.mxu0 0
      %2864 = vmatpush2.bf16.msra.mxu0 0
      %2865 = vmatprep.subr.bf16.mxu0 0
      %2866 = vmatpush2.bf16.msra.mxu0 0
      %2867 = vmatprep.subr.bf16.mxu0 0
      %2868 = vmatpush2.bf16.msra.mxu0 0
      %2869 = vmatprep.subr.bf16.mxu0 0
      %2870 = vmatpush2.bf16.msra.mxu0 0
      %2871 = vmatprep.subr.bf16.mxu0 0
      %2872 = vmatpush2.bf16.msra.mxu0 0
      %2873 = vmatprep.subr.bf16.mxu0 0
      %2874 = vmatpush2.bf16.msra.mxu0 0
      %2875 = vmatprep.subr.bf16.mxu0 0
      %2876 = vmatpush2.bf16.msra.mxu0 0
      %2877 = vmatprep.mubr.bf16.mxu0 0
      %2878 = vmatmul.mubr.bf16.gmra.mxu0 %v2687
      %v2879 = vpop.f32.mrf.mxu0
      %v2880 = vadd.f32 %v2669, %v2879
      %v2881 = vpop.f32.mrf.mxu0
      %v2882 = vpop.f32.mrf.mxu0
      %v2883 = vpop.f32.mrf.mxu0
      %2884 = vdwg.mxu0
      %s2885 = scalar_lea.vmem %s8, 64
      %v2886 = vld [vmem:[%s2885] sm:$0xf]
      %v2887 = vld [vmem:[%s2885 + $0x4] sm:$0xf]
      %v2888 = vld [vmem:[%s2885 + $0x8] sm:$0xf]
      %v2889 = vld [vmem:[%s2885 + $0xc] sm:$0xf]
      %v2890 = vld [vmem:[%s2885 + $0x10] sm:$0xf]
      %v2891 = vld [vmem:[%s2885 + $0x14] sm:$0xf]
      %v2892 = vld [vmem:[%s2885 + $0x18] sm:$0xf]
      %v2893 = vld [vmem:[%s2885 + $0x1c] sm:$0xf]
      %v2894 = vld [vmem:[%s2885 + $0x20] sm:$0xf]
      %v2895 = vld [vmem:[%s2885 + $0x24] sm:$0xf]
      %v2896 = vld [vmem:[%s2885 + $0x28] sm:$0xf]
      %v2897 = vld [vmem:[%s2885 + $0x2c] sm:$0xf]
      %v2898 = vld [vmem:[%s2885 + $0x30] sm:$0xf]
      %v2899 = vld [vmem:[%s2885 + $0x34] sm:$0xf]
      %v2900 = vld [vmem:[%s2885 + $0x38] sm:$0xf]
      %v2901 = vld [vmem:[%s2885 + $0x3c] sm:$0xf]
      %s2902 = scalar_lea.vmem %s11, 4
      %v2903 = vld [vmem:[%s2902] sm:$0x1]
      %v2904 = vld [vmem:[%s2902 + $0x1] sm:$0x1]
      %v2905 = vld [vmem:[%s2902 + $0x2] sm:$0x1]
      %v2906 = vld [vmem:[%s2902 + $0x3] sm:$0x1]
      %v2911 = vlaneseq
      %v2912 = vshrl.u32 %v2911, 7
      %v2913 = vsub.s32 0, %v2912
      %v2914 = vrot.slane %v2903, %v2913
      %v2915 = vlaneseq
      %v2916 = vshrl.u32 %v2915, 7
      %v2917 = vsub.s32 0, %v2916
      %v2918 = vrot.slane %v2904, %v2917
      %v2919 = vlaneseq
      %v2920 = vshrl.u32 %v2919, 7
      %v2921 = vsub.s32 0, %v2920
      %v2922 = vrot.slane %v2905, %v2921
      %v2923 = vlaneseq
      %v2924 = vshrl.u32 %v2923, 7
      %v2925 = vsub.s32 0, %v2924
      %v2926 = vrot.slane %v2906, %v2925
      %v2935 = vunpack.c.l.b16 %v2886
      %v2936 = vunpack.c.l.b16 %v2887
      %v2937 = vunpack.c.l.b16 %v2888
      %v2938 = vunpack.c.l.b16 %v2889
      %v2939 = vpack.c.b16 %v2936, %v2935
      %v2940 = vpack.c.b16 %v2938, %v2937
      %2943 = vmatprep.subr.bf16.mxu0 0
      %2944 = vmatpush1.bf16.msra.mxu0 0
      %2945 = vmatprep.subr.bf16.mxu0 0
      %2946 = vmatpush1.bf16.msra.mxu0 0
      %2947 = vmatprep.subr.bf16.mxu0 0
      %2948 = vmatpush1.bf16.msra.mxu0 0
      %2949 = vmatprep.subr.bf16.mxu0 0
      %2950 = vmatpush1.bf16.msra.mxu0 0
      %2951 = vmatprep.subr.bf16.mxu0 0
      %2952 = vmatpush1.bf16.msra.mxu0 0
      %2953 = vmatprep.subr.bf16.mxu0 0
      %2954 = vmatpush1.bf16.msra.mxu0 0
      %2955 = vmatprep.subr.bf16.mxu0 0
      %2956 = vmatpush1.bf16.msra.mxu0 %v2940
      %2957 = vmatprep.subr.bf16.mxu0 0
      %2958 = vmatpush1.bf16.msra.mxu0 %v2939
      %2959 = vmatprep.subr.bf16.mxu0 0
      %2960 = vmatpush2.bf16.msra.mxu0 0
      %2961 = vmatprep.subr.bf16.mxu0 0
      %2962 = vmatpush2.bf16.msra.mxu0 0
      %2963 = vmatprep.subr.bf16.mxu0 0
      %2964 = vmatpush2.bf16.msra.mxu0 0
      %2965 = vmatprep.subr.bf16.mxu0 0
      %2966 = vmatpush2.bf16.msra.mxu0 0
      %2967 = vmatprep.subr.bf16.mxu0 0
      %2968 = vmatpush2.bf16.msra.mxu0 0
      %2969 = vmatprep.subr.bf16.mxu0 0
      %2970 = vmatpush2.bf16.msra.mxu0 0
      %2971 = vmatprep.subr.bf16.mxu0 0
      %2972 = vmatpush2.bf16.msra.mxu0 0
      %2973 = vmatprep.subr.bf16.mxu0 0
      %2974 = vmatpush2.bf16.msra.mxu0 0
      %2975 = vmatprep.mubr.bf16.mxu0 0
      %2976 = vmatmul.mubr.bf16.gmra.mxu0 %v2687
      %v2977 = vpop.f32.mrf.mxu0
      %v2978 = vadd.f32 %v2914, %v2977
      %v2979 = vpop.f32.mrf.mxu0
      %v2980 = vpop.f32.mrf.mxu0
      %v2981 = vpop.f32.mrf.mxu0
      %2982 = vdwg.mxu0
      %v2987 = vunpack.c.l.b16 %v2890
      %v2988 = vunpack.c.l.b16 %v2891
      %v2989 = vunpack.c.l.b16 %v2892
      %v2990 = vunpack.c.l.b16 %v2893
      %v2991 = vpack.c.b16 %v2988, %v2987
      %v2992 = vpack.c.b16 %v2990, %v2989
      %2995 = vmatprep.subr.bf16.mxu0 0
      %2996 = vmatpush1.bf16.msra.mxu0 0
      %2997 = vmatprep.subr.bf16.mxu0 0
      %2998 = vmatpush1.bf16.msra.mxu0 0
      %2999 = vmatprep.subr.bf16.mxu0 0
      %3000 = vmatpush1.bf16.msra.mxu0 0
      %3001 = vmatprep.subr.bf16.mxu0 0
      %3002 = vmatpush1.bf16.msra.mxu0 0
      %3003 = vmatprep.subr.bf16.mxu0 0
      %3004 = vmatpush1.bf16.msra.mxu0 0
      %3005 = vmatprep.subr.bf16.mxu0 0
      %3006 = vmatpush1.bf16.msra.mxu0 0
      %3007 = vmatprep.subr.bf16.mxu0 0
      %3008 = vmatpush1.bf16.msra.mxu0 %v2992
      %3009 = vmatprep.subr.bf16.mxu0 0
      %3010 = vmatpush1.bf16.msra.mxu0 %v2991
      %3011 = vmatprep.subr.bf16.mxu0 0
      %3012 = vmatpush2.bf16.msra.mxu0 0
      %3013 = vmatprep.subr.bf16.mxu0 0
      %3014 = vmatpush2.bf16.msra.mxu0 0
      %3015 = vmatprep.subr.bf16.mxu0 0
      %3016 = vmatpush2.bf16.msra.mxu0 0
      %3017 = vmatprep.subr.bf16.mxu0 0
      %3018 = vmatpush2.bf16.msra.mxu0 0
      %3019 = vmatprep.subr.bf16.mxu0 0
      %3020 = vmatpush2.bf16.msra.mxu0 0
      %3021 = vmatprep.subr.bf16.mxu0 0
      %3022 = vmatpush2.bf16.msra.mxu0 0
      %3023 = vmatprep.subr.bf16.mxu0 0
      %3024 = vmatpush2.bf16.msra.mxu0 0
      %3025 = vmatprep.subr.bf16.mxu0 0
      %3026 = vmatpush2.bf16.msra.mxu0 0
      %3027 = vmatprep.mubr.bf16.mxu0 0
      %3028 = vmatmul.mubr.bf16.gmra.mxu0 %v2687
      %v3029 = vpop.f32.mrf.mxu0
      %v3030 = vadd.f32 %v2918, %v3029
      %v3031 = vpop.f32.mrf.mxu0
      %v3032 = vpop.f32.mrf.mxu0
      %v3033 = vpop.f32.mrf.mxu0
      %3034 = vdwg.mxu0
      %v3039 = vunpack.c.l.b16 %v2894
      %v3040 = vunpack.c.l.b16 %v2895
      %v3041 = vunpack.c.l.b16 %v2896
      %v3042 = vunpack.c.l.b16 %v2897
      %v3043 = vpack.c.b16 %v3040, %v3039
      %v3044 = vpack.c.b16 %v3042, %v3041
      %3047 = vmatprep.subr.bf16.mxu0 0
      %3048 = vmatpush1.bf16.msra.mxu0 0
      %3049 = vmatprep.subr.bf16.mxu0 0
      %3050 = vmatpush1.bf16.msra.mxu0 0
      %3051 = vmatprep.subr.bf16.mxu0 0
      %3052 = vmatpush1.bf16.msra.mxu0 0
      %3053 = vmatprep.subr.bf16.mxu0 0
      %3054 = vmatpush1.bf16.msra.mxu0 0
      %3055 = vmatprep.subr.bf16.mxu0 0
      %3056 = vmatpush1.bf16.msra.mxu0 0
      %3057 = vmatprep.subr.bf16.mxu0 0
      %3058 = vmatpush1.bf16.msra.mxu0 0
      %3059 = vmatprep.subr.bf16.mxu0 0
      %3060 = vmatpush1.bf16.msra.mxu0 %v3044
      %3061 = vmatprep.subr.bf16.mxu0 0
      %3062 = vmatpush1.bf16.msra.mxu0 %v3043
      %3063 = vmatprep.subr.bf16.mxu0 0
      %3064 = vmatpush2.bf16.msra.mxu0 0
      %3065 = vmatprep.subr.bf16.mxu0 0
      %3066 = vmatpush2.bf16.msra.mxu0 0
      %3067 = vmatprep.subr.bf16.mxu0 0
      %3068 = vmatpush2.bf16.msra.mxu0 0
      %3069 = vmatprep.subr.bf16.mxu0 0
      %3070 = vmatpush2.bf16.msra.mxu0 0
      %3071 = vmatprep.subr.bf16.mxu0 0
      %3072 = vmatpush2.bf16.msra.mxu0 0
      %3073 = vmatprep.subr.bf16.mxu0 0
      %3074 = vmatpush2.bf16.msra.mxu0 0
      %3075 = vmatprep.subr.bf16.mxu0 0
      %3076 = vmatpush2.bf16.msra.mxu0 0
      %3077 = vmatprep.subr.bf16.mxu0 0
      %3078 = vmatpush2.bf16.msra.mxu0 0
      %3079 = vmatprep.mubr.bf16.mxu0 0
      %3080 = vmatmul.mubr.bf16.gmra.mxu0 %v2687
      %v3081 = vpop.f32.mrf.mxu0
      %v3082 = vadd.f32 %v2922, %v3081
      %v3083 = vpop.f32.mrf.mxu0
      %v3084 = vpop.f32.mrf.mxu0
      %v3085 = vpop.f32.mrf.mxu0
      %3086 = vdwg.mxu0
      %v3091 = vunpack.c.l.b16 %v2898
      %v3092 = vunpack.c.l.b16 %v2899
      %v3093 = vunpack.c.l.b16 %v2900
      %v3094 = vunpack.c.l.b16 %v2901
      %v3095 = vpack.c.b16 %v3092, %v3091
      %v3096 = vpack.c.b16 %v3094, %v3093
      %3099 = vmatprep.subr.bf16.mxu0 0
      %3100 = vmatpush1.bf16.msra.mxu0 0
      %3101 = vmatprep.subr.bf16.mxu0 0
      %3102 = vmatpush1.bf16.msra.mxu0 0
      %3103 = vmatprep.subr.bf16.mxu0 0
      %3104 = vmatpush1.bf16.msra.mxu0 0
      %3105 = vmatprep.subr.bf16.mxu0 0
      %3106 = vmatpush1.bf16.msra.mxu0 0
      %3107 = vmatprep.subr.bf16.mxu0 0
      %3108 = vmatpush1.bf16.msra.mxu0 0
      %3109 = vmatprep.subr.bf16.mxu0 0
      %3110 = vmatpush1.bf16.msra.mxu0 0
      %3111 = vmatprep.subr.bf16.mxu0 0
      %3112 = vmatpush1.bf16.msra.mxu0 %v3096
      %3113 = vmatprep.subr.bf16.mxu0 0
      %3114 = vmatpush1.bf16.msra.mxu0 %v3095
      %3115 = vmatprep.subr.bf16.mxu0 0
      %3116 = vmatpush2.bf16.msra.mxu0 0
      %3117 = vmatprep.subr.bf16.mxu0 0
      %3118 = vmatpush2.bf16.msra.mxu0 0
      %3119 = vmatprep.subr.bf16.mxu0 0
      %3120 = vmatpush2.bf16.msra.mxu0 0
      %3121 = vmatprep.subr.bf16.mxu0 0
      %3122 = vmatpush2.bf16.msra.mxu0 0
      %3123 = vmatprep.subr.bf16.mxu0 0
      %3124 = vmatpush2.bf16.msra.mxu0 0
      %3125 = vmatprep.subr.bf16.mxu0 0
      %3126 = vmatpush2.bf16.msra.mxu0 0
      %3127 = vmatprep.subr.bf16.mxu0 0
      %3128 = vmatpush2.bf16.msra.mxu0 0
      %3129 = vmatprep.subr.bf16.mxu0 0
      %3130 = vmatpush2.bf16.msra.mxu0 0
      %3131 = vmatprep.mubr.bf16.mxu0 0
      %3132 = vmatmul.mubr.bf16.gmra.mxu0 %v2687
      %v3133 = vpop.f32.mrf.mxu0
      %v3134 = vadd.f32 %v2926, %v3133
      %v3135 = vpop.f32.mrf.mxu0
      %v3136 = vpop.f32.mrf.mxu0
      %v3137 = vpop.f32.mrf.mxu0
      %3138 = vdwg.mxu0
      %s3139 = scalar_lea.vmem %s9, 64
      %v3140 = vld [vmem:[%s3139] sm:$0xf]
      %v3141 = vld [vmem:[%s3139 + $0x4] sm:$0xf]
      %v3142 = vld [vmem:[%s3139 + $0x8] sm:$0xf]
      %v3143 = vld [vmem:[%s3139 + $0xc] sm:$0xf]
      %v3144 = vld [vmem:[%s3139 + $0x10] sm:$0xf]
      %v3145 = vld [vmem:[%s3139 + $0x14] sm:$0xf]
      %v3146 = vld [vmem:[%s3139 + $0x18] sm:$0xf]
      %v3147 = vld [vmem:[%s3139 + $0x1c] sm:$0xf]
      %v3148 = vld [vmem:[%s3139 + $0x20] sm:$0xf]
      %v3149 = vld [vmem:[%s3139 + $0x24] sm:$0xf]
      %v3150 = vld [vmem:[%s3139 + $0x28] sm:$0xf]
      %v3151 = vld [vmem:[%s3139 + $0x2c] sm:$0xf]
      %v3152 = vld [vmem:[%s3139 + $0x30] sm:$0xf]
      %v3153 = vld [vmem:[%s3139 + $0x34] sm:$0xf]
      %v3154 = vld [vmem:[%s3139 + $0x38] sm:$0xf]
      %v3155 = vld [vmem:[%s3139 + $0x3c] sm:$0xf]
      %s3156 = scalar_lea.vmem %s12, 4
      %v3157 = vld [vmem:[%s3156] sm:$0x1]
      %v3158 = vld [vmem:[%s3156 + $0x1] sm:$0x1]
      %v3159 = vld [vmem:[%s3156 + $0x2] sm:$0x1]
      %v3160 = vld [vmem:[%s3156 + $0x3] sm:$0x1]
      %v3165 = vlaneseq
      %v3166 = vshrl.u32 %v3165, 7
      %v3167 = vsub.s32 0, %v3166
      %v3168 = vrot.slane %v3157, %v3167
      %v3169 = vlaneseq
      %v3170 = vshrl.u32 %v3169, 7
      %v3171 = vsub.s32 0, %v3170
      %v3172 = vrot.slane %v3158, %v3171
      %v3173 = vlaneseq
      %v3174 = vshrl.u32 %v3173, 7
      %v3175 = vsub.s32 0, %v3174
      %v3176 = vrot.slane %v3159, %v3175
      %v3177 = vlaneseq
      %v3178 = vshrl.u32 %v3177, 7
      %v3179 = vsub.s32 0, %v3178
      %v3180 = vrot.slane %v3160, %v3179
      %v3189 = vunpack.c.l.b16 %v3140
      %v3190 = vunpack.c.l.b16 %v3141
      %v3191 = vunpack.c.l.b16 %v3142
      %v3192 = vunpack.c.l.b16 %v3143
      %v3193 = vpack.c.b16 %v3190, %v3189
      %v3194 = vpack.c.b16 %v3192, %v3191
      %3197 = vmatprep.subr.bf16.mxu0 0
      %3198 = vmatpush1.bf16.msra.mxu0 0
      %3199 = vmatprep.subr.bf16.mxu0 0
      %3200 = vmatpush1.bf16.msra.mxu0 0
      %3201 = vmatprep.subr.bf16.mxu0 0
      %3202 = vmatpush1.bf16.msra.mxu0 0
      %3203 = vmatprep.subr.bf16.mxu0 0
      %3204 = vmatpush1.bf16.msra.mxu0 0
      %3205 = vmatprep.subr.bf16.mxu0 0
      %3206 = vmatpush1.bf16.msra.mxu0 0
      %3207 = vmatprep.subr.bf16.mxu0 0
      %3208 = vmatpush1.bf16.msra.mxu0 0
      %3209 = vmatprep.subr.bf16.mxu0 0
      %3210 = vmatpush1.bf16.msra.mxu0 %v3194
      %3211 = vmatprep.subr.bf16.mxu0 0
      %3212 = vmatpush1.bf16.msra.mxu0 %v3193
      %3213 = vmatprep.subr.bf16.mxu0 0
      %3214 = vmatpush2.bf16.msra.mxu0 0
      %3215 = vmatprep.subr.bf16.mxu0 0
      %3216 = vmatpush2.bf16.msra.mxu0 0
      %3217 = vmatprep.subr.bf16.mxu0 0
      %3218 = vmatpush2.bf16.msra.mxu0 0
      %3219 = vmatprep.subr.bf16.mxu0 0
      %3220 = vmatpush2.bf16.msra.mxu0 0
      %3221 = vmatprep.subr.bf16.mxu0 0
      %3222 = vmatpush2.bf16.msra.mxu0 0
      %3223 = vmatprep.subr.bf16.mxu0 0
      %3224 = vmatpush2.bf16.msra.mxu0 0
      %3225 = vmatprep.subr.bf16.mxu0 0
      %3226 = vmatpush2.bf16.msra.mxu0 0
      %3227 = vmatprep.subr.bf16.mxu0 0
      %3228 = vmatpush2.bf16.msra.mxu0 0
      %3229 = vmatprep.mubr.bf16.mxu0 0
      %3230 = vmatmul.mubr.bf16.gmra.mxu0 %v2687
      %v3231 = vpop.f32.mrf.mxu0
      %v3232 = vadd.f32 %v3168, %v3231
      %v3233 = vpop.f32.mrf.mxu0
      %v3234 = vpop.f32.mrf.mxu0
      %v3235 = vpop.f32.mrf.mxu0
      %3236 = vdwg.mxu0
      %v3241 = vunpack.c.l.b16 %v3144
      %v3242 = vunpack.c.l.b16 %v3145
      %v3243 = vunpack.c.l.b16 %v3146
      %v3244 = vunpack.c.l.b16 %v3147
      %v3245 = vpack.c.b16 %v3242, %v3241
      %v3246 = vpack.c.b16 %v3244, %v3243
      %3249 = vmatprep.subr.bf16.mxu0 0
      %3250 = vmatpush1.bf16.msra.mxu0 0
      %3251 = vmatprep.subr.bf16.mxu0 0
      %3252 = vmatpush1.bf16.msra.mxu0 0
      %3253 = vmatprep.subr.bf16.mxu0 0
      %3254 = vmatpush1.bf16.msra.mxu0 0
      %3255 = vmatprep.subr.bf16.mxu0 0
      %3256 = vmatpush1.bf16.msra.mxu0 0
      %3257 = vmatprep.subr.bf16.mxu0 0
      %3258 = vmatpush1.bf16.msra.mxu0 0
      %3259 = vmatprep.subr.bf16.mxu0 0
      %3260 = vmatpush1.bf16.msra.mxu0 0
      %3261 = vmatprep.subr.bf16.mxu0 0
      %3262 = vmatpush1.bf16.msra.mxu0 %v3246
      %3263 = vmatprep.subr.bf16.mxu0 0
      %3264 = vmatpush1.bf16.msra.mxu0 %v3245
      %3265 = vmatprep.subr.bf16.mxu0 0
      %3266 = vmatpush2.bf16.msra.mxu0 0
      %3267 = vmatprep.subr.bf16.mxu0 0
      %3268 = vmatpush2.bf16.msra.mxu0 0
      %3269 = vmatprep.subr.bf16.mxu0 0
      %3270 = vmatpush2.bf16.msra.mxu0 0
      %3271 = vmatprep.subr.bf16.mxu0 0
      %3272 = vmatpush2.bf16.msra.mxu0 0
      %3273 = vmatprep.subr.bf16.mxu0 0
      %3274 = vmatpush2.bf16.msra.mxu0 0
      %3275 = vmatprep.subr.bf16.mxu0 0
      %3276 = vmatpush2.bf16.msra.mxu0 0
      %3277 = vmatprep.subr.bf16.mxu0 0
      %3278 = vmatpush2.bf16.msra.mxu0 0
      %3279 = vmatprep.subr.bf16.mxu0 0
      %3280 = vmatpush2.bf16.msra.mxu0 0
      %3281 = vmatprep.mubr.bf16.mxu0 0
      %3282 = vmatmul.mubr.bf16.gmra.mxu0 %v2687
      %v3283 = vpop.f32.mrf.mxu0
      %v3284 = vadd.f32 %v3172, %v3283
      %v3285 = vpop.f32.mrf.mxu0
      %v3286 = vpop.f32.mrf.mxu0
      %v3287 = vpop.f32.mrf.mxu0
      %3288 = vdwg.mxu0
      %v3293 = vunpack.c.l.b16 %v3148
      %v3294 = vunpack.c.l.b16 %v3149
      %v3295 = vunpack.c.l.b16 %v3150
      %v3296 = vunpack.c.l.b16 %v3151
      %v3297 = vpack.c.b16 %v3294, %v3293
      %v3298 = vpack.c.b16 %v3296, %v3295
      %3301 = vmatprep.subr.bf16.mxu0 0
      %3302 = vmatpush1.bf16.msra.mxu0 0
      %3303 = vmatprep.subr.bf16.mxu0 0
      %3304 = vmatpush1.bf16.msra.mxu0 0
      %3305 = vmatprep.subr.bf16.mxu0 0
      %3306 = vmatpush1.bf16.msra.mxu0 0
      %3307 = vmatprep.subr.bf16.mxu0 0
      %3308 = vmatpush1.bf16.msra.mxu0 0
      %3309 = vmatprep.subr.bf16.mxu0 0
      %3310 = vmatpush1.bf16.msra.mxu0 0
      %3311 = vmatprep.subr.bf16.mxu0 0
      %3312 = vmatpush1.bf16.msra.mxu0 0
      %3313 = vmatprep.subr.bf16.mxu0 0
      %3314 = vmatpush1.bf16.msra.mxu0 %v3298
      %3315 = vmatprep.subr.bf16.mxu0 0
      %3316 = vmatpush1.bf16.msra.mxu0 %v3297
      %3317 = vmatprep.subr.bf16.mxu0 0
      %3318 = vmatpush2.bf16.msra.mxu0 0
      %3319 = vmatprep.subr.bf16.mxu0 0
      %3320 = vmatpush2.bf16.msra.mxu0 0
      %3321 = vmatprep.subr.bf16.mxu0 0
      %3322 = vmatpush2.bf16.msra.mxu0 0
      %3323 = vmatprep.subr.bf16.mxu0 0
      %3324 = vmatpush2.bf16.msra.mxu0 0
      %3325 = vmatprep.subr.bf16.mxu0 0
      %3326 = vmatpush2.bf16.msra.mxu0 0
      %3327 = vmatprep.subr.bf16.mxu0 0
      %3328 = vmatpush2.bf16.msra.mxu0 0
      %3329 = vmatprep.subr.bf16.mxu0 0
      %3330 = vmatpush2.bf16.msra.mxu0 0
      %3331 = vmatprep.subr.bf16.mxu0 0
      %3332 = vmatpush2.bf16.msra.mxu0 0
      %3333 = vmatprep.mubr.bf16.mxu0 0
      %3334 = vmatmul.mubr.bf16.gmra.mxu0 %v2687
      %v3335 = vpop.f32.mrf.mxu0
      %v3336 = vadd.f32 %v3176, %v3335
      %v3337 = vpop.f32.mrf.mxu0
      %v3338 = vpop.f32.mrf.mxu0
      %v3339 = vpop.f32.mrf.mxu0
      %3340 = vdwg.mxu0
      %v3345 = vunpack.c.l.b16 %v3152
      %v3346 = vunpack.c.l.b16 %v3153
      %v3347 = vunpack.c.l.b16 %v3154
      %v3348 = vunpack.c.l.b16 %v3155
      %v3349 = vpack.c.b16 %v3346, %v3345
      %v3350 = vpack.c.b16 %v3348, %v3347
      %3353 = vmatprep.subr.bf16.mxu0 0
      %3354 = vmatpush1.bf16.msra.mxu0 0
      %3355 = vmatprep.subr.bf16.mxu0 0
      %3356 = vmatpush1.bf16.msra.mxu0 0
      %3357 = vmatprep.subr.bf16.mxu0 0
      %3358 = vmatpush1.bf16.msra.mxu0 0
      %3359 = vmatprep.subr.bf16.mxu0 0
      %3360 = vmatpush1.bf16.msra.mxu0 0
      %3361 = vmatprep.subr.bf16.mxu0 0
      %3362 = vmatpush1.bf16.msra.mxu0 0
      %3363 = vmatprep.subr.bf16.mxu0 0
      %3364 = vmatpush1.bf16.msra.mxu0 0
      %3365 = vmatprep.subr.bf16.mxu0 0
      %3366 = vmatpush1.bf16.msra.mxu0 %v3350
      %3367 = vmatprep.subr.bf16.mxu0 0
      %3368 = vmatpush1.bf16.msra.mxu0 %v3349
      %3369 = vmatprep.subr.bf16.mxu0 0
      %3370 = vmatpush2.bf16.msra.mxu0 0
      %3371 = vmatprep.subr.bf16.mxu0 0
      %3372 = vmatpush2.bf16.msra.mxu0 0
      %3373 = vmatprep.subr.bf16.mxu0 0
      %3374 = vmatpush2.bf16.msra.mxu0 0
      %3375 = vmatprep.subr.bf16.mxu0 0
      %3376 = vmatpush2.bf16.msra.mxu0 0
      %3377 = vmatprep.subr.bf16.mxu0 0
      %3378 = vmatpush2.bf16.msra.mxu0 0
      %3379 = vmatprep.subr.bf16.mxu0 0
      %3380 = vmatpush2.bf16.msra.mxu0 0
      %3381 = vmatprep.subr.bf16.mxu0 0
      %3382 = vmatpush2.bf16.msra.mxu0 0
      %3383 = vmatprep.subr.bf16.mxu0 0
      %3384 = vmatpush2.bf16.msra.mxu0 0
      %3385 = vmatprep.mubr.bf16.mxu0 0
      %3386 = vmatmul.mubr.bf16.gmra.mxu0 %v2687
      %v3387 = vpop.f32.mrf.mxu0
      %v3388 = vadd.f32 %v3180, %v3387
      %v3389 = vpop.f32.mrf.mxu0
      %v3390 = vpop.f32.mrf.mxu0
      %v3391 = vpop.f32.mrf.mxu0
      %3392 = vdwg.mxu0
      %v3393 = vpack.c.bf16 %v2724, %v2724
      %v3394 = vpack.c.bf16 %v2776, %v2776
      %v3395 = vpack.c.bf16 %v2828, %v2828
      %v3396 = vpack.c.bf16 %v2880, %v2880
      %v3397 = vpack.c.bf16 %v2978, %v2978
      %v3398 = vpack.c.bf16 %v3030, %v3030
      %v3399 = vpack.c.bf16 %v3082, %v3082
      %v3400 = vpack.c.bf16 %v3134, %v3134
      %v3402 = vsel %vm1770, %v3393, 0
      %v3405 = vsel %vm1770, %v3397, 0
      %3407 = vmatprep.subr.bf16.mxu0 0
      %3408 = vmatpush1.bf16.xpose.msra.mxu0 0
      %3409 = vmatprep.subr.bf16.mxu0 0
      %3410 = vmatpush1.bf16.xpose.msra.mxu0 0
      %3411 = vmatprep.subr.bf16.mxu0 0
      %3412 = vmatpush1.bf16.xpose.msra.mxu0 0
      %3413 = vmatprep.subr.bf16.mxu0 0
      %3414 = vmatpush1.bf16.xpose.msra.mxu0 0
      %3415 = vmatprep.subr.bf16.mxu0 0
      %3416 = vmatpush1.bf16.xpose.msra.mxu0 0
      %3417 = vmatprep.subr.bf16.mxu0 0
      %3418 = vmatpush1.bf16.xpose.msra.mxu0 0
      %3419 = vmatprep.subr.bf16.mxu0 0
      %3420 = vmatpush1.bf16.xpose.msra.mxu0 0
      %3421 = vmatprep.subr.bf16.mxu0 0
      %3422 = vmatpush1.bf16.xpose.msra.mxu0 %v3405
      %3423 = vmatprep.subr.bf16.mxu0 0
      %3424 = vmatpush2.bf16.xpose.msra.mxu0 0
      %3425 = vmatprep.subr.bf16.mxu0 0
      %3426 = vmatpush2.bf16.xpose.msra.mxu0 0
      %3427 = vmatprep.subr.bf16.mxu0 0
      %3428 = vmatpush2.bf16.xpose.msra.mxu0 0
      %3429 = vmatprep.subr.bf16.mxu0 0
      %3430 = vmatpush2.bf16.xpose.msra.mxu0 0
      %3431 = vmatprep.subr.bf16.mxu0 0
      %3432 = vmatpush2.bf16.xpose.msra.mxu0 0
      %3433 = vmatprep.subr.bf16.mxu0 0
      %3434 = vmatpush2.bf16.xpose.msra.mxu0 0
      %3435 = vmatprep.subr.bf16.mxu0 0
      %3436 = vmatpush2.bf16.xpose.msra.mxu0 0
      %3437 = vmatprep.subr.bf16.mxu0 0
      %3438 = vmatpush2.bf16.xpose.msra.mxu0 0
      %3439 = vmatprep.mubr.bf16.mxu0 0
      %3440 = vmatmul.mubr.bf16.gmra.mxu0 %v3402
      %v3441 = vpop.f32.mrf.mxu0
      %v3442 = vadd.f32 0.0, %v3441
      %v3443 = vpop.f32.mrf.mxu0
      %v3444 = vpop.f32.mrf.mxu0
      %v3445 = vpop.f32.mrf.mxu0
      %3446 = vdwg.mxu0
      %v3448 = vsel %vm1770, %v3394, 0
      %v3451 = vsel %vm1770, %v3398, 0
      %3453 = vmatprep.subr.bf16.mxu0 0
      %3454 = vmatpush1.bf16.xpose.msra.mxu0 0
      %3455 = vmatprep.subr.bf16.mxu0 0
      %3456 = vmatpush1.bf16.xpose.msra.mxu0 0
      %3457 = vmatprep.subr.bf16.mxu0 0
      %3458 = vmatpush1.bf16.xpose.msra.mxu0 0
      %3459 = vmatprep.subr.bf16.mxu0 0
      %3460 = vmatpush1.bf16.xpose.msra.mxu0 0
      %3461 = vmatprep.subr.bf16.mxu0 0
      %3462 = vmatpush1.bf16.xpose.msra.mxu0 0
      %3463 = vmatprep.subr.bf16.mxu0 0
      %3464 = vmatpush1.bf16.xpose.msra.mxu0 0
      %3465 = vmatprep.subr.bf16.mxu0 0
      %3466 = vmatpush1.bf16.xpose.msra.mxu0 0
      %3467 = vmatprep.subr.bf16.mxu0 0
      %3468 = vmatpush1.bf16.xpose.msra.mxu0 %v3451
      %3469 = vmatprep.subr.bf16.mxu0 0
      %3470 = vmatpush2.bf16.xpose.msra.mxu0 0
      %3471 = vmatprep.subr.bf16.mxu0 0
      %3472 = vmatpush2.bf16.xpose.msra.mxu0 0
      %3473 = vmatprep.subr.bf16.mxu0 0
      %3474 = vmatpush2.bf16.xpose.msra.mxu0 0
      %3475 = vmatprep.subr.bf16.mxu0 0
      %3476 = vmatpush2.bf16.xpose.msra.mxu0 0
      %3477 = vmatprep.subr.bf16.mxu0 0
      %3478 = vmatpush2.bf16.xpose.msra.mxu0 0
      %3479 = vmatprep.subr.bf16.mxu0 0
      %3480 = vmatpush2.bf16.xpose.msra.mxu0 0
      %3481 = vmatprep.subr.bf16.mxu0 0
      %3482 = vmatpush2.bf16.xpose.msra.mxu0 0
      %3483 = vmatprep.subr.bf16.mxu0 0
      %3484 = vmatpush2.bf16.xpose.msra.mxu0 0
      %3485 = vmatprep.mubr.bf16.mxu0 0
      %3486 = vmatmul.mubr.bf16.gmra.mxu0 %v3448
      %v3487 = vpop.f32.mrf.mxu0
      %v3488 = vadd.f32 0.0, %v3487
      %v3489 = vpop.f32.mrf.mxu0
      %v3490 = vpop.f32.mrf.mxu0
      %v3491 = vpop.f32.mrf.mxu0
      %3492 = vdwg.mxu0
      %v3494 = vsel %vm1770, %v3395, 0
      %v3497 = vsel %vm1770, %v3399, 0
      %3499 = vmatprep.subr.bf16.mxu0 0
      %3500 = vmatpush1.bf16.xpose.msra.mxu0 0
      %3501 = vmatprep.subr.bf16.mxu0 0
      %3502 = vmatpush1.bf16.xpose.msra.mxu0 0
      %3503 = vmatprep.subr.bf16.mxu0 0
      %3504 = vmatpush1.bf16.xpose.msra.mxu0 0
      %3505 = vmatprep.subr.bf16.mxu0 0
      %3506 = vmatpush1.bf16.xpose.msra.mxu0 0
      %3507 = vmatprep.subr.bf16.mxu0 0
      %3508 = vmatpush1.bf16.xpose.msra.mxu0 0
      %3509 = vmatprep.subr.bf16.mxu0 0
      %3510 = vmatpush1.bf16.xpose.msra.mxu0 0
      %3511 = vmatprep.subr.bf16.mxu0 0
      %3512 = vmatpush1.bf16.xpose.msra.mxu0 0
      %3513 = vmatprep.subr.bf16.mxu0 0
      %3514 = vmatpush1.bf16.xpose.msra.mxu0 %v3497
      %3515 = vmatprep.subr.bf16.mxu0 0
      %3516 = vmatpush2.bf16.xpose.msra.mxu0 0
      %3517 = vmatprep.subr.bf16.mxu0 0
      %3518 = vmatpush2.bf16.xpose.msra.mxu0 0
      %3519 = vmatprep.subr.bf16.mxu0 0
      %3520 = vmatpush2.bf16.xpose.msra.mxu0 0
      %3521 = vmatprep.subr.bf16.mxu0 0
      %3522 = vmatpush2.bf16.xpose.msra.mxu0 0
      %3523 = vmatprep.subr.bf16.mxu0 0
      %3524 = vmatpush2.bf16.xpose.msra.mxu0 0
      %3525 = vmatprep.subr.bf16.mxu0 0
      %3526 = vmatpush2.bf16.xpose.msra.mxu0 0
      %3527 = vmatprep.subr.bf16.mxu0 0
      %3528 = vmatpush2.bf16.xpose.msra.mxu0 0
      %3529 = vmatprep.subr.bf16.mxu0 0
      %3530 = vmatpush2.bf16.xpose.msra.mxu0 0
      %3531 = vmatprep.mubr.bf16.mxu0 0
      %3532 = vmatmul.mubr.bf16.gmra.mxu0 %v3494
      %v3533 = vpop.f32.mrf.mxu0
      %v3534 = vadd.f32 0.0, %v3533
      %v3535 = vpop.f32.mrf.mxu0
      %v3536 = vpop.f32.mrf.mxu0
      %v3537 = vpop.f32.mrf.mxu0
      %3538 = vdwg.mxu0
      %v3540 = vsel %vm1770, %v3396, 0
      %v3543 = vsel %vm1770, %v3400, 0
      %3545 = vmatprep.subr.bf16.mxu0 0
      %3546 = vmatpush1.bf16.xpose.msra.mxu0 0
      %3547 = vmatprep.subr.bf16.mxu0 0
      %3548 = vmatpush1.bf16.xpose.msra.mxu0 0
      %3549 = vmatprep.subr.bf16.mxu0 0
      %3550 = vmatpush1.bf16.xpose.msra.mxu0 0
      %3551 = vmatprep.subr.bf16.mxu0 0
      %3552 = vmatpush1.bf16.xpose.msra.mxu0 0
      %3553 = vmatprep.subr.bf16.mxu0 0
      %3554 = vmatpush1.bf16.xpose.msra.mxu0 0
      %3555 = vmatprep.subr.bf16.mxu0 0
      %3556 = vmatpush1.bf16.xpose.msra.mxu0 0
      %3557 = vmatprep.subr.bf16.mxu0 0
      %3558 = vmatpush1.bf16.xpose.msra.mxu0 0
      %3559 = vmatprep.subr.bf16.mxu0 0
      %3560 = vmatpush1.bf16.xpose.msra.mxu0 %v3543
      %3561 = vmatprep.subr.bf16.mxu0 0
      %3562 = vmatpush2.bf16.xpose.msra.mxu0 0
      %3563 = vmatprep.subr.bf16.mxu0 0
      %3564 = vmatpush2.bf16.xpose.msra.mxu0 0
      %3565 = vmatprep.subr.bf16.mxu0 0
      %3566 = vmatpush2.bf16.xpose.msra.mxu0 0
      %3567 = vmatprep.subr.bf16.mxu0 0
      %3568 = vmatpush2.bf16.xpose.msra.mxu0 0
      %3569 = vmatprep.subr.bf16.mxu0 0
      %3570 = vmatpush2.bf16.xpose.msra.mxu0 0
      %3571 = vmatprep.subr.bf16.mxu0 0
      %3572 = vmatpush2.bf16.xpose.msra.mxu0 0
      %3573 = vmatprep.subr.bf16.mxu0 0
      %3574 = vmatpush2.bf16.xpose.msra.mxu0 0
      %3575 = vmatprep.subr.bf16.mxu0 0
      %3576 = vmatpush2.bf16.xpose.msra.mxu0 0
      %3577 = vmatprep.mubr.bf16.mxu0 0
      %3578 = vmatmul.mubr.bf16.gmra.mxu0 %v3540
      %v3579 = vpop.f32.mrf.mxu0
      %v3580 = vadd.f32 0.0, %v3579
      %v3581 = vpop.f32.mrf.mxu0
      %v3582 = vpop.f32.mrf.mxu0
      %v3583 = vpop.f32.mrf.mxu0
      %3584 = vdwg.mxu0
      %v3585 = vmul.f32 %v3442, 0.35355338
      %v3586 = vmul.f32 %v3488, 0.35355338
      %v3587 = vmul.f32 %v3534, 0.35355338
      %v3588 = vmul.f32 %v3580, 0.35355338
      %v3589 = vadd.f32 %v3585, %v1001
      %v3590 = vadd.f32 %v3586, %v1001
      %v3591 = vadd.f32 %v3587, %v1001
      %v3592 = vadd.f32 %v3588, %v1001
      %v3593 = vsel %vm1770, %v3589, -inf
      %3594 = vmax.xlane.f32.xlu0 %v3593
      %v3595 = vpop.xlane.xlu0 %3594
      %v3596 = vsel %vm1770, %v3590, -inf
      %3597 = vmax.xlane.f32.xlu0 %v3596
      %v3598 = vpop.xlane.xlu0 %3597
      %v3599 = vsel %vm1770, %v3591, -inf
      %3600 = vmax.xlane.f32.xlu0 %v3599
      %v3601 = vpop.xlane.xlu0 %3600
      %v3602 = vsel %vm1770, %v3592, -inf
      %3603 = vmax.xlane.f32.xlu0 %v3602
      %v3604 = vpop.xlane.xlu0 %3603
      %v3605 = vsub.f32 %v3589, %v3595
      %v3606 = vsub.f32 %v3590, %v3598
      %v3607 = vsub.f32 %v3591, %v3601
      %v3608 = vsub.f32 %v3592, %v3604
      %v3609 = vmul.f32 %v3605, 1.442695
      %v3610 = vpow.pop %v3609
      %v3611 = vmul.f32 %v3606, 1.442695
      %v3612 = vpow.pop %v3611
      %v3613 = vmul.f32 %v3607, 1.442695
      %v3614 = vpow.pop %v3613
      %v3615 = vmul.f32 %v3608, 1.442695
      %v3616 = vpow.pop %v3615
      %v3617 = vsel %vm1770, %v3610, 0.0
      %3618 = vadd.xlane.f32.xlu0 %v3617
      %v3619 = vpop.xlane.xlu0 %3618
      %v3620 = vsel %vm1770, %v3612, 0.0
      %3621 = vadd.xlane.f32.xlu0 %v3620
      %v3622 = vpop.xlane.xlu0 %3621
      %v3623 = vsel %vm1770, %v3614, 0.0
      %3624 = vadd.xlane.f32.xlu0 %v3623
      %v3625 = vpop.xlane.xlu0 %3624
      %v3626 = vsel %vm1770, %v3616, 0.0
      %3627 = vadd.xlane.f32.xlu0 %v3626
      %v3628 = vpop.xlane.xlu0 %3627
      %v3629 = vrcp.pop %v3619
      %v3630 = vrcp.pop %v3622
      %v3631 = vrcp.pop %v3625
      %v3632 = vrcp.pop %v3628
      %v3633 = vmul.f32 %v3610, %v3629
      %v3634 = vmul.f32 %v3612, %v3630
      %v3635 = vmul.f32 %v3614, %v3631
      %v3636 = vmul.f32 %v3616, %v3632
      %v3637 = vpack.c.bf16 %v3633, %v3633
      %v3638 = vpack.c.bf16 %v3634, %v3634
      %v3639 = vpack.c.bf16 %v3635, %v3635
      %v3640 = vpack.c.bf16 %v3636, %v3636
      %v3641 = vpack.c.bf16 %v3232, %v3232
      %v3642 = vpack.c.bf16 %v3284, %v3284
      %v3643 = vpack.c.bf16 %v3336, %v3336
      %v3644 = vpack.c.bf16 %v3388, %v3388
      %v3646 = vsel %vm1770, %v3637, 0
      %v3649 = vsel %vm2018, %v3641, 0
      %3651 = vmatprep.subr.bf16.mxu0 0
      %3652 = vmatpush1.bf16.msra.mxu0 0
      %3653 = vmatprep.subr.bf16.mxu0 0
      %3654 = vmatpush1.bf16.msra.mxu0 0
      %3655 = vmatprep.subr.bf16.mxu0 0
      %3656 = vmatpush1.bf16.msra.mxu0 0
      %3657 = vmatprep.subr.bf16.mxu0 0
      %3658 = vmatpush1.bf16.msra.mxu0 0
      %3659 = vmatprep.subr.bf16.mxu0 0
      %3660 = vmatpush1.bf16.msra.mxu0 0
      %3661 = vmatprep.subr.bf16.mxu0 0
      %3662 = vmatpush1.bf16.msra.mxu0 0
      %3663 = vmatprep.subr.bf16.mxu0 0
      %3664 = vmatpush1.bf16.msra.mxu0 0
      %3665 = vmatprep.subr.bf16.mxu0 0
      %3666 = vmatpush1.bf16.msra.mxu0 %v3649
      %3667 = vmatprep.subr.bf16.mxu0 0
      %3668 = vmatpush2.bf16.msra.mxu0 0
      %3669 = vmatprep.subr.bf16.mxu0 0
      %3670 = vmatpush2.bf16.msra.mxu0 0
      %3671 = vmatprep.subr.bf16.mxu0 0
      %3672 = vmatpush2.bf16.msra.mxu0 0
      %3673 = vmatprep.subr.bf16.mxu0 0
      %3674 = vmatpush2.bf16.msra.mxu0 0
      %3675 = vmatprep.subr.bf16.mxu0 0
      %3676 = vmatpush2.bf16.msra.mxu0 0
      %3677 = vmatprep.subr.bf16.mxu0 0
      %3678 = vmatpush2.bf16.msra.mxu0 0
      %3679 = vmatprep.subr.bf16.mxu0 0
      %3680 = vmatpush2.bf16.msra.mxu0 0
      %3681 = vmatprep.subr.bf16.mxu0 0
      %3682 = vmatpush2.bf16.msra.mxu0 0
      %3683 = vmatprep.mubr.bf16.mxu0 0
      %3684 = vmatmul.mubr.bf16.gmra.mxu0 %v3646
      %v3685 = vpop.f32.mrf.mxu0
      %v3686 = vadd.f32 0.0, %v3685
      %v3687 = vpop.f32.mrf.mxu0
      %v3688 = vpop.f32.mrf.mxu0
      %v3689 = vpop.f32.mrf.mxu0
      %3690 = vdwg.mxu0
      %v3692 = vsel %vm1770, %v3638, 0
      %v3695 = vsel %vm2018, %v3642, 0
      %3697 = vmatprep.subr.bf16.mxu0 0
      %3698 = vmatpush1.bf16.msra.mxu0 0
      %3699 = vmatprep.subr.bf16.mxu0 0
      %3700 = vmatpush1.bf16.msra.mxu0 0
      %3701 = vmatprep.subr.bf16.mxu0 0
      %3702 = vmatpush1.bf16.msra.mxu0 0
      %3703 = vmatprep.subr.bf16.mxu0 0
      %3704 = vmatpush1.bf16.msra.mxu0 0
      %3705 = vmatprep.subr.bf16.mxu0 0
      %3706 = vmatpush1.bf16.msra.mxu0 0
      %3707 = vmatprep.subr.bf16.mxu0 0
      %3708 = vmatpush1.bf16.msra.mxu0 0
      %3709 = vmatprep.subr.bf16.mxu0 0
      %3710 = vmatpush1.bf16.msra.mxu0 0
      %3711 = vmatprep.subr.bf16.mxu0 0
      %3712 = vmatpush1.bf16.msra.mxu0 %v3695
      %3713 = vmatprep.subr.bf16.mxu0 0
      %3714 = vmatpush2.bf16.msra.mxu0 0
      %3715 = vmatprep.subr.bf16.mxu0 0
      %3716 = vmatpush2.bf16.msra.mxu0 0
      %3717 = vmatprep.subr.bf16.mxu0 0
      %3718 = vmatpush2.bf16.msra.mxu0 0
      %3719 = vmatprep.subr.bf16.mxu0 0
      %3720 = vmatpush2.bf16.msra.mxu0 0
      %3721 = vmatprep.subr.bf16.mxu0 0
      %3722 = vmatpush2.bf16.msra.mxu0 0
      %3723 = vmatprep.subr.bf16.mxu0 0
      %3724 = vmatpush2.bf16.msra.mxu0 0
      %3725 = vmatprep.subr.bf16.mxu0 0
      %3726 = vmatpush2.bf16.msra.mxu0 0
      %3727 = vmatprep.subr.bf16.mxu0 0
      %3728 = vmatpush2.bf16.msra.mxu0 0
      %3729 = vmatprep.mubr.bf16.mxu0 0
      %3730 = vmatmul.mubr.bf16.gmra.mxu0 %v3692
      %v3731 = vpop.f32.mrf.mxu0
      %v3732 = vadd.f32 0.0, %v3731
      %v3733 = vpop.f32.mrf.mxu0
      %v3734 = vpop.f32.mrf.mxu0
      %v3735 = vpop.f32.mrf.mxu0
      %3736 = vdwg.mxu0
      %v3738 = vsel %vm1770, %v3639, 0
      %v3741 = vsel %vm2018, %v3643, 0
      %3743 = vmatprep.subr.bf16.mxu0 0
      %3744 = vmatpush1.bf16.msra.mxu0 0
      %3745 = vmatprep.subr.bf16.mxu0 0
      %3746 = vmatpush1.bf16.msra.mxu0 0
      %3747 = vmatprep.subr.bf16.mxu0 0
      %3748 = vmatpush1.bf16.msra.mxu0 0
      %3749 = vmatprep.subr.bf16.mxu0 0
      %3750 = vmatpush1.bf16.msra.mxu0 0
      %3751 = vmatprep.subr.bf16.mxu0 0
      %3752 = vmatpush1.bf16.msra.mxu0 0
      %3753 = vmatprep.subr.bf16.mxu0 0
      %3754 = vmatpush1.bf16.msra.mxu0 0
      %3755 = vmatprep.subr.bf16.mxu0 0
      %3756 = vmatpush1.bf16.msra.mxu0 0
      %3757 = vmatprep.subr.bf16.mxu0 0
      %3758 = vmatpush1.bf16.msra.mxu0 %v3741
      %3759 = vmatprep.subr.bf16.mxu0 0
      %3760 = vmatpush2.bf16.msra.mxu0 0
      %3761 = vmatprep.subr.bf16.mxu0 0
      %3762 = vmatpush2.bf16.msra.mxu0 0
      %3763 = vmatprep.subr.bf16.mxu0 0
      %3764 = vmatpush2.bf16.msra.mxu0 0
      %3765 = vmatprep.subr.bf16.mxu0 0
      %3766 = vmatpush2.bf16.msra.mxu0 0
      %3767 = vmatprep.subr.bf16.mxu0 0
      %3768 = vmatpush2.bf16.msra.mxu0 0
      %3769 = vmatprep.subr.bf16.mxu0 0
      %3770 = vmatpush2.bf16.msra.mxu0 0
      %3771 = vmatprep.subr.bf16.mxu0 0
      %3772 = vmatpush2.bf16.msra.mxu0 0
      %3773 = vmatprep.subr.bf16.mxu0 0
      %3774 = vmatpush2.bf16.msra.mxu0 0
      %3775 = vmatprep.mubr.bf16.mxu0 0
      %3776 = vmatmul.mubr.bf16.gmra.mxu0 %v3738
      %v3777 = vpop.f32.mrf.mxu0
      %v3778 = vadd.f32 0.0, %v3777
      %v3779 = vpop.f32.mrf.mxu0
      %v3780 = vpop.f32.mrf.mxu0
      %v3781 = vpop.f32.mrf.mxu0
      %3782 = vdwg.mxu0
      %v3784 = vsel %vm1770, %v3640, 0
      %v3787 = vsel %vm2018, %v3644, 0
      %3789 = vmatprep.subr.bf16.mxu0 0
      %3790 = vmatpush1.bf16.msra.mxu0 0
      %3791 = vmatprep.subr.bf16.mxu0 0
      %3792 = vmatpush1.bf16.msra.mxu0 0
      %3793 = vmatprep.subr.bf16.mxu0 0
      %3794 = vmatpush1.bf16.msra.mxu0 0
      %3795 = vmatprep.subr.bf16.mxu0 0
      %3796 = vmatpush1.bf16.msra.mxu0 0
      %3797 = vmatprep.subr.bf16.mxu0 0
      %3798 = vmatpush1.bf16.msra.mxu0 0
      %3799 = vmatprep.subr.bf16.mxu0 0
      %3800 = vmatpush1.bf16.msra.mxu0 0
      %3801 = vmatprep.subr.bf16.mxu0 0
      %3802 = vmatpush1.bf16.msra.mxu0 0
      %3803 = vmatprep.subr.bf16.mxu0 0
      %3804 = vmatpush1.bf16.msra.mxu0 %v3787
      %3805 = vmatprep.subr.bf16.mxu0 0
      %3806 = vmatpush2.bf16.msra.mxu0 0
      %3807 = vmatprep.subr.bf16.mxu0 0
      %3808 = vmatpush2.bf16.msra.mxu0 0
      %3809 = vmatprep.subr.bf16.mxu0 0
      %3810 = vmatpush2.bf16.msra.mxu0 0
      %3811 = vmatprep.subr.bf16.mxu0 0
      %3812 = vmatpush2.bf16.msra.mxu0 0
      %3813 = vmatprep.subr.bf16.mxu0 0
      %3814 = vmatpush2.bf16.msra.mxu0 0
      %3815 = vmatprep.subr.bf16.mxu0 0
      %3816 = vmatpush2.bf16.msra.mxu0 0
      %3817 = vmatprep.subr.bf16.mxu0 0
      %3818 = vmatpush2.bf16.msra.mxu0 0
      %3819 = vmatprep.subr.bf16.mxu0 0
      %3820 = vmatpush2.bf16.msra.mxu0 0
      %3821 = vmatprep.mubr.bf16.mxu0 0
      %3822 = vmatmul.mubr.bf16.gmra.mxu0 %v3784
      %v3823 = vpop.f32.mrf.mxu0
      %v3824 = vadd.f32 0.0, %v3823
      %v3825 = vpop.f32.mrf.mxu0
      %v3826 = vpop.f32.mrf.mxu0
      %v3827 = vpop.f32.mrf.mxu0
      %3828 = vdwg.mxu0
      %v3829 = vpack.c.bf16 %v3686, %v3686
      %v3830 = vpack.c.bf16 %v3732, %v3732
      %v3831 = vpack.c.bf16 %v3778, %v3778
      %v3832 = vpack.c.bf16 %v3824, %v3824
      %s3833 = scalar_lea.vmem %s13, 16
      %v3834 = vld [vmem:[%s3833] sm:$0xf]
      %v3835 = vld [vmem:[%s3833 + $0x4] sm:$0xf]
      %v3836 = vld [vmem:[%s3833 + $0x8] sm:$0xf]
      %v3837 = vld [vmem:[%s3833 + $0xc] sm:$0xf]
      %v3839 = vsel %vm1770, %v3829, 0
      %v3842 = vsel %vm2018, %v3834, 0
      %3844 = vmatprep.subr.bf16.mxu0 0
      %3845 = vmatpush1.bf16.msra.mxu0 0
      %3846 = vmatprep.subr.bf16.mxu0 0
      %3847 = vmatpush1.bf16.msra.mxu0 0
      %3848 = vmatprep.subr.bf16.mxu0 0
      %3849 = vmatpush1.bf16.msra.mxu0 0
      %3850 = vmatprep.subr.bf16.mxu0 0
      %3851 = vmatpush1.bf16.msra.mxu0 0
      %3852 = vmatprep.subr.bf16.mxu0 0
      %3853 = vmatpush1.bf16.msra.mxu0 0
      %3854 = vmatprep.subr.bf16.mxu0 0
      %3855 = vmatpush1.bf16.msra.mxu0 0
      %3856 = vmatprep.subr.bf16.mxu0 0
      %3857 = vmatpush1.bf16.msra.mxu0 0
      %3858 = vmatprep.subr.bf16.mxu0 0
      %3859 = vmatpush1.bf16.msra.mxu0 %v3842
      %3860 = vmatprep.subr.bf16.mxu0 0
      %3861 = vmatpush2.bf16.msra.mxu0 0
      %3862 = vmatprep.subr.bf16.mxu0 0
      %3863 = vmatpush2.bf16.msra.mxu0 0
      %3864 = vmatprep.subr.bf16.mxu0 0
      %3865 = vmatpush2.bf16.msra.mxu0 0
      %3866 = vmatprep.subr.bf16.mxu0 0
      %3867 = vmatpush2.bf16.msra.mxu0 0
      %3868 = vmatprep.subr.bf16.mxu0 0
      %3869 = vmatpush2.bf16.msra.mxu0 0
      %3870 = vmatprep.subr.bf16.mxu0 0
      %3871 = vmatpush2.bf16.msra.mxu0 0
      %3872 = vmatprep.subr.bf16.mxu0 0
      %3873 = vmatpush2.bf16.msra.mxu0 0
      %3874 = vmatprep.subr.bf16.mxu0 0
      %3875 = vmatpush2.bf16.msra.mxu0 0
      %3876 = vmatprep.mubr.bf16.mxu0 0
      %3877 = vmatmul.mubr.bf16.gmra.mxu0 %v3839
      %v3878 = vpop.f32.mrf.mxu0
      %v3879 = vadd.f32 0.0, %v3878
      %v3880 = vpop.f32.mrf.mxu0
      %v3881 = vpop.f32.mrf.mxu0
      %v3882 = vpop.f32.mrf.mxu0
      %3883 = vdwg.mxu0
      %v3885 = vsel %vm1770, %v3830, 0
      %v3888 = vsel %vm2018, %v3835, 0
      %3890 = vmatprep.subr.bf16.mxu0 0
      %3891 = vmatpush1.bf16.msra.mxu0 0
      %3892 = vmatprep.subr.bf16.mxu0 0
      %3893 = vmatpush1.bf16.msra.mxu0 0
      %3894 = vmatprep.subr.bf16.mxu0 0
      %3895 = vmatpush1.bf16.msra.mxu0 0
      %3896 = vmatprep.subr.bf16.mxu0 0
      %3897 = vmatpush1.bf16.msra.mxu0 0
      %3898 = vmatprep.subr.bf16.mxu0 0
      %3899 = vmatpush1.bf16.msra.mxu0 0
      %3900 = vmatprep.subr.bf16.mxu0 0
      %3901 = vmatpush1.bf16.msra.mxu0 0
      %3902 = vmatprep.subr.bf16.mxu0 0
      %3903 = vmatpush1.bf16.msra.mxu0 0
      %3904 = vmatprep.subr.bf16.mxu0 0
      %3905 = vmatpush1.bf16.msra.mxu0 %v3888
      %3906 = vmatprep.subr.bf16.mxu0 0
      %3907 = vmatpush2.bf16.msra.mxu0 0
      %3908 = vmatprep.subr.bf16.mxu0 0
      %3909 = vmatpush2.bf16.msra.mxu0 0
      %3910 = vmatprep.subr.bf16.mxu0 0
      %3911 = vmatpush2.bf16.msra.mxu0 0
      %3912 = vmatprep.subr.bf16.mxu0 0
      %3913 = vmatpush2.bf16.msra.mxu0 0
      %3914 = vmatprep.subr.bf16.mxu0 0
      %3915 = vmatpush2.bf16.msra.mxu0 0
      %3916 = vmatprep.subr.bf16.mxu0 0
      %3917 = vmatpush2.bf16.msra.mxu0 0
      %3918 = vmatprep.subr.bf16.mxu0 0
      %3919 = vmatpush2.bf16.msra.mxu0 0
      %3920 = vmatprep.subr.bf16.mxu0 0
      %3921 = vmatpush2.bf16.msra.mxu0 0
      %3922 = vmatprep.mubr.bf16.mxu0 0
      %3923 = vmatmul.mubr.bf16.gmra.mxu0 %v3885
      %v3924 = vpop.f32.mrf.mxu0
      %v3925 = vadd.f32 0.0, %v3924
      %v3926 = vpop.f32.mrf.mxu0
      %v3927 = vpop.f32.mrf.mxu0
      %v3928 = vpop.f32.mrf.mxu0
      %3929 = vdwg.mxu0
      %v3931 = vsel %vm1770, %v3831, 0
      %v3934 = vsel %vm2018, %v3836, 0
      %3936 = vmatprep.subr.bf16.mxu0 0
      %3937 = vmatpush1.bf16.msra.mxu0 0
      %3938 = vmatprep.subr.bf16.mxu0 0
      %3939 = vmatpush1.bf16.msra.mxu0 0
      %3940 = vmatprep.subr.bf16.mxu0 0
      %3941 = vmatpush1.bf16.msra.mxu0 0
      %3942 = vmatprep.subr.bf16.mxu0 0
      %3943 = vmatpush1.bf16.msra.mxu0 0
      %3944 = vmatprep.subr.bf16.mxu0 0
      %3945 = vmatpush1.bf16.msra.mxu0 0
      %3946 = vmatprep.subr.bf16.mxu0 0
      %3947 = vmatpush1.bf16.msra.mxu0 0
      %3948 = vmatprep.subr.bf16.mxu0 0
      %3949 = vmatpush1.bf16.msra.mxu0 0
      %3950 = vmatprep.subr.bf16.mxu0 0
      %3951 = vmatpush1.bf16.msra.mxu0 %v3934
      %3952 = vmatprep.subr.bf16.mxu0 0
      %3953 = vmatpush2.bf16.msra.mxu0 0
      %3954 = vmatprep.subr.bf16.mxu0 0
      %3955 = vmatpush2.bf16.msra.mxu0 0
      %3956 = vmatprep.subr.bf16.mxu0 0
      %3957 = vmatpush2.bf16.msra.mxu0 0
      %3958 = vmatprep.subr.bf16.mxu0 0
      %3959 = vmatpush2.bf16.msra.mxu0 0
      %3960 = vmatprep.subr.bf16.mxu0 0
      %3961 = vmatpush2.bf16.msra.mxu0 0
      %3962 = vmatprep.subr.bf16.mxu0 0
      %3963 = vmatpush2.bf16.msra.mxu0 0
      %3964 = vmatprep.subr.bf16.mxu0 0
      %3965 = vmatpush2.bf16.msra.mxu0 0
      %3966 = vmatprep.subr.bf16.mxu0 0
      %3967 = vmatpush2.bf16.msra.mxu0 0
      %3968 = vmatprep.mubr.bf16.mxu0 0
      %3969 = vmatmul.mubr.bf16.gmra.mxu0 %v3931
      %v3970 = vpop.f32.mrf.mxu0
      %v3971 = vadd.f32 0.0, %v3970
      %v3972 = vpop.f32.mrf.mxu0
      %v3973 = vpop.f32.mrf.mxu0
      %v3974 = vpop.f32.mrf.mxu0
      %3975 = vdwg.mxu0
      %v3977 = vsel %vm1770, %v3832, 0
      %v3980 = vsel %vm2018, %v3837, 0
      %3982 = vmatprep.subr.bf16.mxu0 0
      %3983 = vmatpush1.bf16.msra.mxu0 0
      %3984 = vmatprep.subr.bf16.mxu0 0
      %3985 = vmatpush1.bf16.msra.mxu0 0
      %3986 = vmatprep.subr.bf16.mxu0 0
      %3987 = vmatpush1.bf16.msra.mxu0 0
      %3988 = vmatprep.subr.bf16.mxu0 0
      %3989 = vmatpush1.bf16.msra.mxu0 0
      %3990 = vmatprep.subr.bf16.mxu0 0
      %3991 = vmatpush1.bf16.msra.mxu0 0
      %3992 = vmatprep.subr.bf16.mxu0 0
      %3993 = vmatpush1.bf16.msra.mxu0 0
      %3994 = vmatprep.subr.bf16.mxu0 0
      %3995 = vmatpush1.bf16.msra.mxu0 0
      %3996 = vmatprep.subr.bf16.mxu0 0
      %3997 = vmatpush1.bf16.msra.mxu0 %v3980
      %3998 = vmatprep.subr.bf16.mxu0 0
      %3999 = vmatpush2.bf16.msra.mxu0 0
      %4000 = vmatprep.subr.bf16.mxu0 0
      %4001 = vmatpush2.bf16.msra.mxu0 0
      %4002 = vmatprep.subr.bf16.mxu0 0
      %4003 = vmatpush2.bf16.msra.mxu0 0
      %4004 = vmatprep.subr.bf16.mxu0 0
      %4005 = vmatpush2.bf16.msra.mxu0 0
      %4006 = vmatprep.subr.bf16.mxu0 0
      %4007 = vmatpush2.bf16.msra.mxu0 0
      %4008 = vmatprep.subr.bf16.mxu0 0
      %4009 = vmatpush2.bf16.msra.mxu0 0
      %4010 = vmatprep.subr.bf16.mxu0 0
      %4011 = vmatpush2.bf16.msra.mxu0 0
      %4012 = vmatprep.subr.bf16.mxu0 0
      %4013 = vmatpush2.bf16.msra.mxu0 0
      %4014 = vmatprep.mubr.bf16.mxu0 0
      %4015 = vmatmul.mubr.bf16.gmra.mxu0 %v3977
      %v4016 = vpop.f32.mrf.mxu0
      %v4017 = vadd.f32 0.0, %v4016
      %v4018 = vpop.f32.mrf.mxu0
      %v4019 = vpop.f32.mrf.mxu0
      %v4020 = vpop.f32.mrf.mxu0
      %4021 = vdwg.mxu0
      %v4022 = vsel %vm963, %v3879, 0.0
      %v4023 = vsel %vm963, %v3925, 0.0
      %v4024 = vadd.f32 %v4022, %v4023
      %v4025 = vsel %vm963, %v3971, 0.0
      %v4026 = vadd.f32 %v4024, %v4025
      %v4027 = vsel %vm963, %v4017, 0.0
      %v4028 = vadd.f32 %v4026, %v4027
      %s4029 = scalar_lea.vmem %s14, 1
      %v4030 = vld [vmem:[%s4029] sm:$0x1]
      %v4032 = vlaneseq
      %v4033 = vshrl.u32 %v4032, 7
      %v4034 = vsub.s32 0, %v4033
      %v4035 = vrot.slane %v4030, %v4034
      %v4037 = vadd.f32 %v4028, %v4035
      %v4038 = vadd.f32 %v2626, %v4037
      %s4039 = scalar_lea.vmem %s15, 1
      %v4040 = vld [vmem:[%s4039] sm:$0x1]
      %s4041 = scalar_lea.vmem %s16, 1
      %v4042 = vld [vmem:[%s4041] sm:$0x1]
      %v4043 = vsel %vm963, %v4038, 0.0
      %4044 = vadd.xlane.f32.xlu0 %v4043
      %v4045 = vpop.xlane.xlu0 %4044
      %v4046 = vmul.f32 %v4045, %v967
      %v4047 = vsub.f32 %v4038, %v4046
      %v4048 = vmul.f32 %v4047, %v4047
      %v4049 = vsel %vm963, %v4048, 0.0
      %4050 = vadd.xlane.f32.xlu0 %v4049
      %v4051 = vpop.xlane.xlu0 %4050
      %v4052 = vmul.f32 %v4051, %v967
      %v4053 = vadd.f32 %v4052, 1e-12
      %v4054 = vrsqrt.pop %v4053
      %v4055 = vmul.f32 %v4047, %v4054
      %v4057 = vlaneseq
      %v4058 = vshrl.u32 %v4057, 7
      %v4059 = vsub.s32 0, %v4058
      %v4060 = vrot.slane %v4040, %v4059
      %v4062 = vmul.f32 %v4055, %v4060
      %v4064 = vlaneseq
      %v4065 = vshrl.u32 %v4064, 7
      %v4066 = vsub.s32 0, %v4065
      %v4067 = vrot.slane %v4042, %v4066
      %v4069 = vadd.f32 %v4062, %v4067
      %v4070 = vpack.c.bf16 %v4069, %v4069
      %s4071 = scalar_lea.vmem %s17, 16
      %v4072 = vld [vmem:[%s4071] sm:$0xf]
      %v4073 = vld [vmem:[%s4071 + $0x4] sm:$0xf]
      %v4074 = vld [vmem:[%s4071 + $0x8] sm:$0xf]
      %v4075 = vld [vmem:[%s4071 + $0xc] sm:$0xf]
      %s4076 = scalar_lea.vmem %s18, 1
      %v4077 = vld [vmem:[%s4076] sm:$0x1]
      %v4079 = vlaneseq
      %v4080 = vshrl.u32 %v4079, 7
      %v4081 = vsub.s32 0, %v4080
      %v4082 = vrot.slane %v4077, %v4081
      %v4088 = vunpack.c.l.b16 %v4072
      %v4089 = vunpack.c.l.b16 %v4073
      %v4090 = vunpack.c.l.b16 %v4074
      %v4091 = vunpack.c.l.b16 %v4075
      %v4092 = vpack.c.b16 %v4089, %v4088
      %v4093 = vpack.c.b16 %v4091, %v4090
      %v4097 = vsel %vm963, %v4070, 0
      %4099 = vmatprep.subr.bf16.mxu0 0
      %4100 = vmatpush1.bf16.msra.mxu0 0
      %4101 = vmatprep.subr.bf16.mxu0 0
      %4102 = vmatpush1.bf16.msra.mxu0 0
      %4103 = vmatprep.subr.bf16.mxu0 0
      %4104 = vmatpush1.bf16.msra.mxu0 0
      %4105 = vmatprep.subr.bf16.mxu0 0
      %4106 = vmatpush1.bf16.msra.mxu0 0
      %4107 = vmatprep.subr.bf16.mxu0 0
      %4108 = vmatpush1.bf16.msra.mxu0 0
      %4109 = vmatprep.subr.bf16.mxu0 0
      %4110 = vmatpush1.bf16.msra.mxu0 0
      %4111 = vmatprep.subr.bf16.mxu0 0
      %4112 = vmatpush1.bf16.msra.mxu0 %v4093
      %4113 = vmatprep.subr.bf16.mxu0 0
      %4114 = vmatpush1.bf16.msra.mxu0 %v4092
      %4115 = vmatprep.subr.bf16.mxu0 0
      %4116 = vmatpush2.bf16.msra.mxu0 0
      %4117 = vmatprep.subr.bf16.mxu0 0
      %4118 = vmatpush2.bf16.msra.mxu0 0
      %4119 = vmatprep.subr.bf16.mxu0 0
      %4120 = vmatpush2.bf16.msra.mxu0 0
      %4121 = vmatprep.subr.bf16.mxu0 0
      %4122 = vmatpush2.bf16.msra.mxu0 0
      %4123 = vmatprep.subr.bf16.mxu0 0
      %4124 = vmatpush2.bf16.msra.mxu0 0
      %4125 = vmatprep.subr.bf16.mxu0 0
      %4126 = vmatpush2.bf16.msra.mxu0 0
      %4127 = vmatprep.subr.bf16.mxu0 0
      %4128 = vmatpush2.bf16.msra.mxu0 0
      %4129 = vmatprep.subr.bf16.mxu0 0
      %4130 = vmatpush2.bf16.msra.mxu0 0
      %4131 = vmatprep.mubr.bf16.mxu0 0
      %4132 = vmatmul.mubr.bf16.gmra.mxu0 %v4097
      %v4133 = vpop.f32.mrf.mxu0
      %v4134 = vadd.f32 %v4082, %v4133
      %v4135 = vpop.f32.mrf.mxu0
      %v4136 = vpop.f32.mrf.mxu0
      %v4137 = vpop.f32.mrf.mxu0
      %4138 = vdwg.mxu0
      %v4139 = vmul.f32 %v4134, %v4134
      %v4140 = vmul.f32 %v4134, %v4139
      %v4141 = vmul.f32 %v4140, 0.044715
      %v4142 = vadd.f32 %v4134, %v4141
      %v4143 = vmul.f32 %v4142, 0.7978846
      %v4144 = vtanh.pop %v4143
      %v4145 = vadd.f32 %v4144, 1.0
      %v4146 = vmul.f32 %v4145, 0.5
      %v4147 = vmul.f32 %v4134, %v4146
      %v4148 = vpack.c.bf16 %v4147, %v4147
      %s4149 = scalar_lea.vmem %s19, 32
      %v4150 = vld [vmem:[%s4149] sm:$0xf]
      %v4151 = vld [vmem:[%s4149 + $0x4] sm:$0xf]
      %v4152 = vld [vmem:[%s4149 + $0x8] sm:$0xf]
      %v4153 = vld [vmem:[%s4149 + $0xc] sm:$0xf]
      %v4154 = vld [vmem:[%s4149 + $0x10] sm:$0xf]
      %v4155 = vld [vmem:[%s4149 + $0x14] sm:$0xf]
      %v4156 = vld [vmem:[%s4149 + $0x18] sm:$0xf]
      %v4157 = vld [vmem:[%s4149 + $0x1c] sm:$0xf]
      %s4158 = scalar_lea.vmem %s20, 1
      %v4159 = vld [vmem:[%s4158] sm:$0x1]
      %v4161 = vlaneseq
      %v4162 = vshrl.u32 %v4161, 7
      %v4163 = vsub.s32 0, %v4162
      %v4164 = vrot.slane %v4159, %v4163
      %v4174 = vunpack.c.l.b16 %v4150
      %v4175 = vunpack.c.l.b16 %v4151
      %v4176 = vunpack.c.l.b16 %v4152
      %v4177 = vunpack.c.l.b16 %v4153
      %v4178 = vunpack.c.l.b16 %v4154
      %v4179 = vunpack.c.l.b16 %v4155
      %v4180 = vunpack.c.l.b16 %v4156
      %v4181 = vunpack.c.l.b16 %v4157
      %v4182 = vpack.c.b16 %v4175, %v4174
      %v4183 = vpack.c.b16 %v4177, %v4176
      %v4184 = vpack.c.b16 %v4179, %v4178
      %v4185 = vpack.c.b16 %v4181, %v4180
      %v4191 = vsel %vm2553, %v4148, 0
      %4193 = vmatprep.subr.bf16.mxu0 0
      %4194 = vmatpush1.bf16.msra.mxu0 0
      %4195 = vmatprep.subr.bf16.mxu0 0
      %4196 = vmatpush1.bf16.msra.mxu0 0
      %4197 = vmatprep.subr.bf16.mxu0 0
      %4198 = vmatpush1.bf16.msra.mxu0 0
      %4199 = vmatprep.subr.bf16.mxu0 0
      %4200 = vmatpush1.bf16.msra.mxu0 0
      %4201 = vmatprep.subr.bf16.mxu0 0
      %4202 = vmatpush1.bf16.msra.mxu0 %v4185
      %4203 = vmatprep.subr.bf16.mxu0 0
      %4204 = vmatpush1.bf16.msra.mxu0 %v4184
      %4205 = vmatprep.subr.bf16.mxu0 0
      %4206 = vmatpush1.bf16.msra.mxu0 %v4183
      %4207 = vmatprep.subr.bf16.mxu0 0
      %4208 = vmatpush1.bf16.msra.mxu0 %v4182
      %4209 = vmatprep.subr.bf16.mxu0 0
      %4210 = vmatpush2.bf16.msra.mxu0 0
      %4211 = vmatprep.subr.bf16.mxu0 0
      %4212 = vmatpush2.bf16.msra.mxu0 0
      %4213 = vmatprep.subr.bf16.mxu0 0
      %4214 = vmatpush2.bf16.msra.mxu0 0
      %4215 = vmatprep.subr.bf16.mxu0 0
      %4216 = vmatpush2.bf16.msra.mxu0 0
      %4217 = vmatprep.subr.bf16.mxu0 0
      %4218 = vmatpush2.bf16.msra.mxu0 0
      %4219 = vmatprep.subr.bf16.mxu0 0
      %4220 = vmatpush2.bf16.msra.mxu0 0
      %4221 = vmatprep.subr.bf16.mxu0 0
      %4222 = vmatpush2.bf16.msra.mxu0 0
      %4223 = vmatprep.subr.bf16.mxu0 0
      %4224 = vmatpush2.bf16.msra.mxu0 0
      %4225 = vmatprep.mubr.bf16.mxu0 0
      %4226 = vmatmul.mubr.bf16.gmra.mxu0 %v4191
      %v4227 = vpop.f32.mrf.mxu0
      %v4228 = vadd.f32 %v4164, %v4227
      %v4229 = vpop.f32.mrf.mxu0
      %v4230 = vpop.f32.mrf.mxu0
      %v4231 = vpop.f32.mrf.mxu0
      %4232 = vdwg.mxu0
      %v4233 = vadd.f32 %v4069, %v4228
      %s4234 = scalar_lea.vmem %s21, 1
      %v4235 = vld [vmem:[%s4234] sm:$0x1]
      %s4236 = scalar_lea.vmem %s22, 1
      %v4237 = vld [vmem:[%s4236] sm:$0x1]
      %v4238 = vsel %vm963, %v4233, 0.0
      %4239 = vadd.xlane.f32.xlu0 %v4238
      %v4240 = vpop.xlane.xlu0 %4239
      %v4241 = vmul.f32 %v4240, %v967
      %v4242 = vsub.f32 %v4233, %v4241
      %v4243 = vmul.f32 %v4242, %v4242
      %v4244 = vsel %vm963, %v4243, 0.0
      %4245 = vadd.xlane.f32.xlu0 %v4244
      %v4246 = vpop.xlane.xlu0 %4245
      %v4247 = vmul.f32 %v4246, %v967
      %v4248 = vadd.f32 %v4247, 1e-12
      %v4249 = vrsqrt.pop %v4248
      %v4250 = vmul.f32 %v4242, %v4249
      %v4252 = vlaneseq
      %v4253 = vshrl.u32 %v4252, 7
      %v4254 = vsub.s32 0, %v4253
      %v4255 = vrot.slane %v4235, %v4254
      %v4257 = vmul.f32 %v4250, %v4255
      %v4259 = vlaneseq
      %v4260 = vshrl.u32 %v4259, 7
      %v4261 = vsub.s32 0, %v4260
      %v4262 = vrot.slane %v4237, %v4261
      %v4264 = vadd.f32 %v4257, %v4262
      %v4265 = vld [vmem:[%s840] sm:$0x3f]
      %4266 = vset.pattern.permute.xlu0 0
      %4267 = vperm.xlu0 %4266, %v4265
      %v4268 = vpop.permute.xlu0 %4267
      %vm4269 = vcmp.eq.s32.totalorder %v848, %v4268
      %v4270 = vsel %vm4269, 1, 0
      %v4271 = vcvt.s32.f32 %v4270
      %v4272 = vpack.c.bf16 %v4271, %v4271
      %v4273 = vpack.c.bf16 %v4264, %v4264
      %v4275 = vsel %vm1770, %v4272, 0
      %v4278 = vsel %vm2018, %v4273, 0
      %4280 = vmatprep.subr.bf16.mxu0 0
      %4281 = vmatpush1.bf16.msra.mxu0 0
      %4282 = vmatprep.subr.bf16.mxu0 0
      %4283 = vmatpush1.bf16.msra.mxu0 0
      %4284 = vmatprep.subr.bf16.mxu0 0
      %4285 = vmatpush1.bf16.msra.mxu0 0
      %4286 = vmatprep.subr.bf16.mxu0 0
      %4287 = vmatpush1.bf16.msra.mxu0 0
      %4288 = vmatprep.subr.bf16.mxu0 0
      %4289 = vmatpush1.bf16.msra.mxu0 0
      %4290 = vmatprep.subr.bf16.mxu0 0
      %4291 = vmatpush1.bf16.msra.mxu0 0
      %4292 = vmatprep.subr.bf16.mxu0 0
      %4293 = vmatpush1.bf16.msra.mxu0 0
      %4294 = vmatprep.subr.bf16.mxu0 0
      %4295 = vmatpush1.bf16.msra.mxu0 %v4278
      %4296 = vmatprep.subr.bf16.mxu0 0
      %4297 = vmatpush2.bf16.msra.mxu0 0
      %4298 = vmatprep.subr.bf16.mxu0 0
      %4299 = vmatpush2.bf16.msra.mxu0 0
      %4300 = vmatprep.subr.bf16.mxu0 0
      %4301 = vmatpush2.bf16.msra.mxu0 0
      %4302 = vmatprep.subr.bf16.mxu0 0
      %4303 = vmatpush2.bf16.msra.mxu0 0
      %4304 = vmatprep.subr.bf16.mxu0 0
      %4305 = vmatpush2.bf16.msra.mxu0 0
      %4306 = vmatprep.subr.bf16.mxu0 0
      %4307 = vmatpush2.bf16.msra.mxu0 0
      %4308 = vmatprep.subr.bf16.mxu0 0
      %4309 = vmatpush2.bf16.msra.mxu0 0
      %4310 = vmatprep.subr.bf16.mxu0 0
      %4311 = vmatpush2.bf16.msra.mxu0 0
      %4312 = vmatprep.mubr.bf16.mxu0 0
      %4313 = vmatmul.mubr.bf16.gmra.mxu0 %v4275
      %v4314 = vpop.f32.mrf.mxu0
      %v4315 = vadd.f32 0.0, %v4314
      %v4316 = vpop.f32.mrf.mxu0
      %v4317 = vpop.f32.mrf.mxu0
      %v4318 = vpop.f32.mrf.mxu0
      %4319 = vdwg.mxu0
      %v4320 = vpack.c.bf16 %v4315, %v4315
      %v4321 = vld [vmem:[%s23] sm:$0xf]
      %v4322 = vld [vmem:[%s23 + $0x4] sm:$0xf]
      %v4323 = vld [vmem:[%s23 + $0x8] sm:$0xf]
      %v4324 = vld [vmem:[%s23 + $0xc] sm:$0xf]
      %v4325 = vld [vmem:[%s24] sm:$0x1]
      %v4327 = vlaneseq
      %v4328 = vshrl.u32 %v4327, 7
      %v4329 = vsub.s32 0, %v4328
      %v4330 = vrot.slane %v4325, %v4329
      %v4336 = vunpack.c.l.b16 %v4321
      %v4337 = vunpack.c.l.b16 %v4322
      %v4338 = vunpack.c.l.b16 %v4323
      %v4339 = vunpack.c.l.b16 %v4324
      %v4340 = vpack.c.b16 %v4337, %v4336
      %v4341 = vpack.c.b16 %v4339, %v4338
      %v4345 = vsel %vm963, %v4320, 0
      %4347 = vmatprep.subr.bf16.mxu0 0
      %4348 = vmatpush1.bf16.msra.mxu0 0
      %4349 = vmatprep.subr.bf16.mxu0 0
      %4350 = vmatpush1.bf16.msra.mxu0 0
      %4351 = vmatprep.subr.bf16.mxu0 0
      %4352 = vmatpush1.bf16.msra.mxu0 0
      %4353 = vmatprep.subr.bf16.mxu0 0
      %4354 = vmatpush1.bf16.msra.mxu0 0
      %4355 = vmatprep.subr.bf16.mxu0 0
      %4356 = vmatpush1.bf16.msra.mxu0 0
      %4357 = vmatprep.subr.bf16.mxu0 0
      %4358 = vmatpush1.bf16.msra.mxu0 0
      %4359 = vmatprep.subr.bf16.mxu0 0
      %4360 = vmatpush1.bf16.msra.mxu0 %v4341
      %4361 = vmatprep.subr.bf16.mxu0 0
      %4362 = vmatpush1.bf16.msra.mxu0 %v4340
      %4363 = vmatprep.subr.bf16.mxu0 0
      %4364 = vmatpush2.bf16.msra.mxu0 0
      %4365 = vmatprep.subr.bf16.mxu0 0
      %4366 = vmatpush2.bf16.msra.mxu0 0
      %4367 = vmatprep.subr.bf16.mxu0 0
      %4368 = vmatpush2.bf16.msra.mxu0 0
      %4369 = vmatprep.subr.bf16.mxu0 0
      %4370 = vmatpush2.bf16.msra.mxu0 0
      %4371 = vmatprep.subr.bf16.mxu0 0
      %4372 = vmatpush2.bf16.msra.mxu0 0
      %4373 = vmatprep.subr.bf16.mxu0 0
      %4374 = vmatpush2.bf16.msra.mxu0 0
      %4375 = vmatprep.subr.bf16.mxu0 0
      %4376 = vmatpush2.bf16.msra.mxu0 0
      %4377 = vmatprep.subr.bf16.mxu0 0
      %4378 = vmatpush2.bf16.msra.mxu0 0
      %4379 = vmatprep.mubr.bf16.mxu0 0
      %4380 = vmatmul.mubr.bf16.gmra.mxu0 %v4345
      %v4381 = vpop.f32.mrf.mxu0
      %v4382 = vadd.f32 %v4330, %v4381
      %v4383 = vpop.f32.mrf.mxu0
      %v4384 = vpop.f32.mrf.mxu0
      %v4385 = vpop.f32.mrf.mxu0
      %4386 = vdwg.mxu0
      %v4387 = vpack.c.bf16 %v4382, %v4382
      %v4388 = vld [vmem:[%s25] sm:$0xf]
      %v4389 = vld [vmem:[%s25 + $0x4] sm:$0xf]
      %v4390 = vld [vmem:[%s25 + $0x8] sm:$0xf]
      %v4391 = vld [vmem:[%s25 + $0xc] sm:$0xf]
      %v4392 = vld [vmem:[%s26] sm:$0x1]
      %v4394 = vlaneseq
      %v4395 = vshrl.u32 %v4394, 7
      %v4396 = vsub.s32 0, %v4395
      %v4397 = vrot.slane %v4392, %v4396
      %v4403 = vunpack.c.l.b16 %v4388
      %v4404 = vunpack.c.l.b16 %v4389
      %v4405 = vunpack.c.l.b16 %v4390
      %v4406 = vunpack.c.l.b16 %v4391
      %v4407 = vpack.c.b16 %v4404, %v4403
      %v4408 = vpack.c.b16 %v4406, %v4405
      %v4412 = vsel %vm963, %v4387, 0
      %4414 = vmatprep.subr.bf16.mxu0 0
      %4415 = vmatpush1.bf16.msra.mxu0 0
      %4416 = vmatprep.subr.bf16.mxu0 0
      %4417 = vmatpush1.bf16.msra.mxu0 0
      %4418 = vmatprep.subr.bf16.mxu0 0
      %4419 = vmatpush1.bf16.msra.mxu0 0
      %4420 = vmatprep.subr.bf16.mxu0 0
      %4421 = vmatpush1.bf16.msra.mxu0 0
      %4422 = vmatprep.subr.bf16.mxu0 0
      %4423 = vmatpush1.bf16.msra.mxu0 0
      %4424 = vmatprep.subr.bf16.mxu0 0
      %4425 = vmatpush1.bf16.msra.mxu0 0
      %4426 = vmatprep.subr.bf16.mxu0 0
      %4427 = vmatpush1.bf16.msra.mxu0 %v4408
      %4428 = vmatprep.subr.bf16.mxu0 0
      %4429 = vmatpush1.bf16.msra.mxu0 %v4407
      %4430 = vmatprep.subr.bf16.mxu0 0
      %4431 = vmatpush2.bf16.msra.mxu0 0
      %4432 = vmatprep.subr.bf16.mxu0 0
      %4433 = vmatpush2.bf16.msra.mxu0 0
      %4434 = vmatprep.subr.bf16.mxu0 0
      %4435 = vmatpush2.bf16.msra.mxu0 0
      %4436 = vmatprep.subr.bf16.mxu0 0
      %4437 = vmatpush2.bf16.msra.mxu0 0
      %4438 = vmatprep.subr.bf16.mxu0 0
      %4439 = vmatpush2.bf16.msra.mxu0 0
      %4440 = vmatprep.subr.bf16.mxu0 0
      %4441 = vmatpush2.bf16.msra.mxu0 0
      %4442 = vmatprep.subr.bf16.mxu0 0
      %4443 = vmatpush2.bf16.msra.mxu0 0
      %4444 = vmatprep.subr.bf16.mxu0 0
      %4445 = vmatpush2.bf16.msra.mxu0 0
      %4446 = vmatprep.mubr.bf16.mxu0 0
      %4447 = vmatmul.mubr.bf16.gmra.mxu0 %v4412
      %v4448 = vpop.f32.mrf.mxu0
      %v4449 = vadd.f32 %v4397, %v4448
      %v4450 = vpop.f32.mrf.mxu0
      %v4451 = vpop.f32.mrf.mxu0
      %v4452 = vpop.f32.mrf.mxu0
      %4453 = vdwg.mxu0
      %4454 = vst [vmem:[%s844] sm:$0x3f] %v4449
      %p4455 = scmp.lt.s32.totalorder %s38, 1
      %s4456 = scalar_select %p4455, %s38, 1
      %s4457 = smul.addr %s4456, 8
      %s4458 = scalar_lea.vmem %s27, %s4457
      // Predicated region
      $region129: #{bert_ner_forward.1} parent=127 // pred_check
        %p4459 = pneg %p638
      $region130: #{bert_ner_forward.1} parent=127 // pred_check_branch
        %4461 = sbr.rel (%p4459) target = $region132
      $region131: #{bert_ner_forward.1} parent=127 // pred_region
        _
      $region132: #{bert_ner_forward.1} parent=127 // pred_fallthru
        _
    $region128: #{bert_ner_forward.1} parent=5 // pred_fallthru
      _
    %p4462 = scmp.le.s32.totalorder 2, %s33
    // Predicated region
    $region133: #{bert_ner_forward.1} parent=5 // pred_check
      %p4463 = pneg %p4462
    $region134: #{bert_ner_forward.1} parent=5 // pred_check_branch
      %4465 = sbr.rel (%p4463) target = $region136
    $region135: #{bert_ner_forward.1} parent=5 // pred_region
      %s4466 = ssub.s32 %s33, 2
      // Predicated region
      $region137: #{bert_ner_forward.1} parent=135 // pred_check
        %p4467 = pneg %p644
      $region138: #{bert_ner_forward.1} parent=135 // pred_check_branch
        %4469 = sbr.rel (%p4467) target = $region140
      $region139: #{bert_ner_forward.1} parent=135 // pred_region
        %p4470 = scmp.lt.s32.totalorder %s39, 1
        %s4471 = scalar_select %p4470, %s39, 1
        %s4472 = smul.addr %s4471, 8
        %s4473 = scalar_lea.vmem %s27, %s4472
      $region140: #{bert_ner_forward.1} parent=135 // pred_fallthru
        _
    $region136: #{bert_ner_forward.1} parent=5 // pred_fallthru
      _
  $region6: #{bert_ner_forward.1} parent=0 // loop_footer
    %s37 = sadd.s32 1, %s33
  $region7: #{bert_ner_forward.1} parent=0 // loop_footer_branch
    %32 = sbr.rel target = $region3
  $region8: #{bert_ner_forward.1} parent=0 // loop_exit
    _

</llo_original>
